<compile_context>
chip_gen: v7x
topology: tpu7x:2x2x1
jax: 0.10.0
libtpu: 0.0.40
codegen_flags: <defaults>
</compile_context>

<pallas_src>
import jax
import jax.numpy as jnp
import numpy as np
from jax import lax
from jax.experimental import pallas as pl
from jax.experimental.pallas import tpu as pltpu

N, H, W = 2, 16, 16
CH = 16                        # hidden channels
KS = (2, 3, 5, 3)              # kernel sizes of the four convs
PAD = 2                        # fixed halo rows above/below each image inside the canvas
ROWB = H + 2 * PAD             # canvas rows per image block (20)
EPS = 1e-5                     # BatchNorm2d default eps
SLOPE = 0.01                   # LeakyReLU default negative_slope
INV_CNT = 1.0 / float(N * H * W)


# ----------------------------------------------------------------------------- kernel helpers
def _write_interior(pad_ref, y, ncols):
    """Place (N*H, ncols) activations into the canvas interior (halo rows stay zero)."""
    for n in range(N):
        pad_ref[n * ROWB + PAD:n * ROWB + PAD + H, 0:ncols] = y[n * H:(n + 1) * H, :]


def _conv(pad_ref, ncols_in, w_ref, k):
    """'same'-padded k x k conv as k block-Toeplitz matmuls (one per kernel row).

    pad_ref : (N*ROWB, W*CH) zero-haloed canvas holding the layer input in cols [0, ncols_in)
    w_ref   : (k, W*cin, W*cout) repacked weights ('same' padding along W baked in)
    returns : (N*H, W*cout) value
    """
    top = (k - 1) // 2                      # PyTorch 'same': smaller pad on top/left
    acc = None
    for di in range(k):
        r0 = PAD - top + di                 # row shift handled by the zero halo
        parts = [pad_ref[n * ROWB + r0:n * ROWB + r0 + H, 0:ncols_in] for n in range(N)]
        xs = jnp.concatenate(parts, axis=0)                       # (N*H, ncols_in)
        t = jnp.dot(xs, w_ref[di], preferred_element_type=jnp.float32)
        acc = t if acc is None else acc + t
    return acc


def _bn_leaky(y, g_ref, be_ref):
    """Training-mode BatchNorm2d (batch stats, biased var) + LeakyReLU(0.01), single pass.

    y: (N*H, W*CH) with channel = column % CH; gamma/beta refs: (1, CH).
    """
    rs = jnp.sum(y, axis=0, keepdims=True)           # (1, W*CH)
    rs2 = jnp.sum(y * y, axis=0, keepdims=True)      # (1, W*CH)
    # Fold the W groups of CH lanes down to per-channel sums: (1, 256) -> (1, 16).
    groups = W
    while groups > 1:
        half = (groups // 2) * CH
        rs = rs[:, 0:half] + rs[:, half:2 * half]
        rs2 = rs2[:, 0:half] + rs2[:, half:2 * half]
        groups //= 2
    mean = rs * INV_CNT                              # (1, CH)
    var = rs2 * INV_CNT - mean * mean                # biased variance (training-mode BN)
    scale = g_ref[...] * lax.rsqrt(var + EPS)        # (1, CH)
    shift = be_ref[...] - mean * scale
    # Broadcast the per-channel affine back to (1, W*CH) lane layout.
    scale_w = jnp.concatenate([scale] * W, axis=1)
    shift_w = jnp.concatenate([shift] * W, axis=1)
    yw = y * scale_w + shift_w
    return jnp.where(yw > 0.0, yw, SLOPE * yw)


def thinning_kernel(x_ref,
                    w1_ref, g1_ref, be1_ref,
                    w2_ref, g2_ref, be2_ref,
                    w3_ref, g3_ref, be3_ref,
                    w4_ref, b4_ref,
                    o_ref, pad_ref):
    # Zero the halo canvas ONCE; the halo rows are never written afterwards.
    pad_ref[...] = jnp.zeros(pad_ref.shape, jnp.float32)

    _write_interior(pad_ref, x_ref[...], W)              # layer-1 input occupies cols [0, W)

    y = _conv(pad_ref, W, w1_ref, 2)                     # layer1   -> (32, 256)
    y = _bn_leaky(y, g1_ref, be1_ref)                    # layer2 + layer3
    _write_interior(pad_ref, y, W * CH)
    y = _conv(pad_ref, W * CH, w2_ref, 3)                # layer4
    y = _bn_leaky(y, g2_ref, be2_ref)                    # layer5 + layer6
    _write_interior(pad_ref, y, W * CH)
    y = _conv(pad_ref, W * CH, w3_ref, 5)                # layer7
    y = _bn_leaky(y, g3_ref, be3_ref)                    # layer8 + layer9
    _write_interior(pad_ref, y, W * CH)
    y = _conv(pad_ref, W * CH, w4_ref, 3)                # layer10  -> (32, 16)
    o_ref[...] = y + b4_ref[...]                         # final conv bias (per-channel, Cout=1)


# ----------------------------------------------------------------------------- wrapper
def _toeplitz_weights(w, k):
    """Repack HWIO conv weights (k,k,cin,cout) -> (k, W*cin, W*cout) block-banded matrices.

    M_di[jp*cin+ci, j*cout+co] = w[di, jp-j+top, ci, co] if 0 <= jp-j+top < k else 0,
    which bakes the 'same' zero padding along W into the matmul.  Parameter layout plumbing
    only (done once in the wrapper, not on the activation path).
    """
    cin, cout = w.shape[2], w.shape[3]
    top = (k - 1) // 2
    jp = jnp.arange(W)[:, None]           # input column block
    j = jnp.arange(W)[None, :]            # output column block
    dj = jp - j + top
    valid = (dj >= 0) & (dj < k)
    djc = jnp.clip(dj, 0, k - 1)
    m = w[:, djc]                                          # (k, W, W, cin, cout)
    m = m * valid[None, :, :, None, None].astype(w.dtype)
    m = m.transpose(0, 1, 3, 2, 4).reshape(k, W * cin, W * cout)
    return m.astype(jnp.float32)


def thinning_net(x, params):
    """x: NHWC (N, H, W, 1) float32.  Returns NHWC (N, H, W, 1)."""
    (w1, b1, g1, be1, w2, b2, g2, be2, w3, b3, g3, be3, w4, b4) = params
    # Conv biases b1..b3 are exactly absorbed by the following training-mode BN (mean
    # subtraction), so they are not passed to the kernel.  Only b4 (no BN after) is used.
    w1m = _toeplitz_weights(w1, 2)
    w2m = _toeplitz_weights(w2, 3)
    w3m = _toeplitz_weights(w3, 5)
    w4m = _toeplitz_weights(w4, 3)
    b4row = jnp.broadcast_to(b4.reshape(1, 1), (1, W)).astype(jnp.float32)
    x2d = x.reshape(N * H, W).astype(jnp.float32)          # (n,i,j,0) -> row n*H+i, col j

    flat = [x2d, w1m, g1, be1, w2m, g2, be2, w3m, g3, be3, w4m, b4row]
    out2d = pl.pallas_call(
        thinning_kernel,
        out_shape=jax.ShapeDtypeStruct((N * H, W), jnp.float32),
        in_specs=[pl.BlockSpec(memory_space=pltpu.MemorySpace.VMEM) for _ in flat],
        out_specs=pl.BlockSpec(memory_space=pltpu.MemorySpace.VMEM),
        scratch_shapes=[pltpu.VMEM((N * ROWB, W * CH), jnp.float32)],   # zero-once halo canvas
    )(*flat)
    return out2d.reshape(N, H, W, 1)


# ----------------------------------------------------------------------------- params / reference
def init_params(key):
    """Deterministic parameter init per the module's __init__ shapes (synthetic values)."""
    ks = jax.random.split(key, 8)

    def conv(kk, k, cin, cout):
        fan_in = cin * k * k
        bound = 1.0 / np.sqrt(fan_in)
        w = jax.random.uniform(kk, (k, k, cin, cout), jnp.float32, -bound, bound)
        b = jax.random.uniform(jax.random.fold_in(kk, 1), (1, cout), jnp.float32,
                               -bound, bound)
        return w, b

    def bn(kk, c):
        g = 1.0 + 0.1 * jax.random.normal(kk, (1, c), jnp.float32)
        b = 0.1 * jax.random.normal(jax.random.fold_in(kk, 1), (1, c), jnp.float32)
        return g, b

    w1, b1 = conv(ks[0], 2, 1, CH);  g1, be1 = bn(ks[1], CH)
    w2, b2 = conv(ks[2], 3, CH, CH); g2, be2 = bn(ks[3], CH)
    w3, b3 = conv(ks[4], 5, CH, CH); g3, be3 = bn(ks[5], CH)
    w4, b4 = conv(ks[6], 3, CH, 1)
    return (w1, b1, g1, be1, w2, b2, g2, be2, w3, b3, g3, be3, w4, b4)


def ref_forward(x, params):
    """Pure-JAX reference (matches PyTorch semantics, uses ALL biases) for correctness."""
    (w1, b1, g1, be1, w2, b2, g2, be2, w3, b3, g3, be3, w4, b4) = params

    def conv(x, w, b, k):
        top = (k - 1) // 2
        bot = (k - 1) - top
        y = lax.conv_general_dilated(
            x, w, window_strides=(1, 1), padding=[(top, bot), (top, bot)],
            dimension_numbers=('NHWC', 'HWIO', 'NHWC'))
        return y + b.reshape(1, 1, 1, -1)

    def bn_lrelu(y, g, be):
        mu = jnp.mean(y, axis=(0, 1, 2), keepdims=True)
        var = jnp.mean((y - mu) ** 2, axis=(0, 1, 2), keepdims=True)
        y = (y - mu) / jnp.sqrt(var + EPS) * g.reshape(1, 1, 1, -1) + be.reshape(1, 1, 1, -1)
        return jnp.where(y > 0, y, SLOPE * y)

    y = bn_lrelu(conv(x, w1, b1, 2), g1, be1)
    y = bn_lrelu(conv(y, w2, b2, 3), g2, be2)
    y = bn_lrelu(conv(y, w3, b3, 5), g3, be3)
    return conv(y, w4, b4, 3)


if __name__ == "__main__":
    key = jax.random.PRNGKey(0)
    kx, kp = jax.random.split(key)
    x_nchw = jax.random.normal(kx, (N, 1, H, W), jnp.float32)    # PyTorch layout
    x = jnp.transpose(x_nchw, (0, 2, 3, 1))                      # NHWC for the kernel
    params = init_params(kp)

    out = thinning_net(x, params)
    out = jax.block_until_ready(out)

    ref = ref_forward(x, params)
    np.testing.assert_allclose(np.asarray(out), np.asarray(ref), atol=1e-3, rtol=1e-3)
    print("KERNEL_OK")
</pallas_src>

<mosaic_0001>
module attributes {stable_mosaic.version = 11 : i64} {
  func.func @thinning_kernel(%arg0: memref<32x16xf32, #tpu.memory_space<vmem>>, %arg1: memref<2x16x256xf32, #tpu.memory_space<vmem>>, %arg2: memref<1x16xf32, #tpu.memory_space<vmem>>, %arg3: memref<1x16xf32, #tpu.memory_space<vmem>>, %arg4: memref<3x256x256xf32, #tpu.memory_space<vmem>>, %arg5: memref<1x16xf32, #tpu.memory_space<vmem>>, %arg6: memref<1x16xf32, #tpu.memory_space<vmem>>, %arg7: memref<5x256x256xf32, #tpu.memory_space<vmem>>, %arg8: memref<1x16xf32, #tpu.memory_space<vmem>>, %arg9: memref<1x16xf32, #tpu.memory_space<vmem>>, %arg10: memref<3x256x16xf32, #tpu.memory_space<vmem>>, %arg11: memref<1x16xf32, #tpu.memory_space<vmem>>, %arg12: memref<32x16xf32, #tpu.memory_space<vmem>>, %arg13: memref<40x256xf32, #tpu.memory_space<vmem>>) attributes {dimension_semantics = [], scalar_prefetch = 0 : i64, scratch_operands = 1 : i64, tpu.core_type = #tpu.core_type<tc>} {
    %cst = arith.constant 0.000000e+00 : f32
    %0 = vector.broadcast %cst : f32 to vector<40x256xf32>
    %c0 = arith.constant 0 : index
    %c0_0 = arith.constant 0 : index
    %1 = vector.load %arg13[%c0, %c0_0] : memref<40x256xf32, #tpu.memory_space<vmem>>, vector<40x256xf32>
    tpu.vector_store %arg13[%c0, %c0_0], %0 {strides = array<i32>} : memref<40x256xf32, #tpu.memory_space<vmem>>, vector<40x256xf32>,
    %c0_1 = arith.constant 0 : index
    %c0_2 = arith.constant 0 : index
    %2 = vector.load %arg0[%c0_1, %c0_2] : memref<32x16xf32, #tpu.memory_space<vmem>>, vector<32x16xf32>
    %3 = vector.extract_strided_slice %2 {offsets = [0, 0], sizes = [16, 16], strides = [1, 1]} : vector<32x16xf32> to vector<16x16xf32>
    %c2 = arith.constant 2 : index
    %c0_3 = arith.constant 0 : index
    %4 = vector.load %arg13[%c2, %c0_3] : memref<40x256xf32, #tpu.memory_space<vmem>>, vector<16x16xf32>
    tpu.vector_store %arg13[%c2, %c0_3], %3 {strides = array<i32>} : memref<40x256xf32, #tpu.memory_space<vmem>>, vector<16x16xf32>,
    %5 = vector.extract_strided_slice %2 {offsets = [16, 0], sizes = [16, 16], strides = [1, 1]} : vector<32x16xf32> to vector<16x16xf32>
    %c22 = arith.constant 22 : index
    %c0_4 = arith.constant 0 : index
    %6 = vector.load %arg13[%c22, %c0_4] : memref<40x256xf32, #tpu.memory_space<vmem>>, vector<16x16xf32>
    tpu.vector_store %arg13[%c22, %c0_4], %5 {strides = array<i32>} : memref<40x256xf32, #tpu.memory_space<vmem>>, vector<16x16xf32>,
    %c2_5 = arith.constant 2 : index
    %c0_6 = arith.constant 0 : index
    %7 = vector.load %arg13[%c2_5, %c0_6] : memref<40x256xf32, #tpu.memory_space<vmem>>, vector<16x16xf32>
    %c22_7 = arith.constant 22 : index
    %c0_8 = arith.constant 0 : index
    %8 = vector.load %arg13[%c22_7, %c0_8] : memref<40x256xf32, #tpu.memory_space<vmem>>, vector<16x16xf32>
    %9 = tpu.concatenate %7, %8 in 0 : vector<16x16xf32>, vector<16x16xf32> -> vector<32x16xf32>
    %c0_9 = arith.constant 0 : index
    %c0_10 = arith.constant 0 : index
    %c0_11 = arith.constant 0 : index
    %10 = vector.load %arg1[%c0_9, %c0_10, %c0_11] : memref<2x16x256xf32, #tpu.memory_space<vmem>>, vector<1x16x256xf32>
    %11 = vector.shape_cast %10 : vector<1x16x256xf32> to vector<16x256xf32>
    %cst_12 = arith.constant dense<0.000000e+00> : vector<32x256xf32>
    %12 = tpu.matmul %9, %11, %cst_12 {dimension_numbers = #tpu.dot_dimension_numbers<[1], [0], [0], [1], [0, 0, 1, 1], [], []>} : vector<32x16xf32>, vector<16x256xf32>, vector<32x256xf32> -> vector<32x256xf32>
    %c3 = arith.constant 3 : index
    %c0_13 = arith.constant 0 : index
    %13 = vector.load %arg13[%c3, %c0_13] : memref<40x256xf32, #tpu.memory_space<vmem>>, vector<16x16xf32>
    %c23 = arith.constant 23 : index
    %c0_14 = arith.constant 0 : index
    %14 = vector.load %arg13[%c23, %c0_14] : memref<40x256xf32, #tpu.memory_space<vmem>>, vector<16x16xf32>
    %15 = tpu.concatenate %13, %14 in 0 : vector<16x16xf32>, vector<16x16xf32> -> vector<32x16xf32>
    %c1 = arith.constant 1 : index
    %c0_15 = arith.constant 0 : index
    %c0_16 = arith.constant 0 : index
    %16 = vector.load %arg1[%c1, %c0_15, %c0_16] : memref<2x16x256xf32, #tpu.memory_space<vmem>>, vector<1x16x256xf32>
    %17 = vector.shape_cast %16 : vector<1x16x256xf32> to vector<16x256xf32>
    %cst_17 = arith.constant dense<0.000000e+00> : vector<32x256xf32>
    %18 = tpu.matmul %15, %17, %cst_17 {dimension_numbers = #tpu.dot_dimension_numbers<[1], [0], [0], [1], [0, 0, 1, 1], [], []>} : vector<32x16xf32>, vector<16x256xf32>, vector<32x256xf32> -> vector<32x256xf32>
    %19 = arith.addf %12, %18 : vector<32x256xf32>
    %cst_18 = arith.constant dense<0.000000e+00> : vector<256xf32>
    %20 = vector.multi_reduction <add>, %19, %cst_18 [0] : vector<32x256xf32> to vector<256xf32>
    %21 = vector.shape_cast %20 : vector<256xf32> to vector<1x256xf32>
    %22 = arith.mulf %19, %19 : vector<32x256xf32>
    %cst_19 = arith.constant dense<0.000000e+00> : vector<256xf32>
    %23 = vector.multi_reduction <add>, %22, %cst_19 [0] : vector<32x256xf32> to vector<256xf32>
    %24 = vector.shape_cast %23 : vector<256xf32> to vector<1x256xf32>
    %25 = vector.extract_strided_slice %21 {offsets = [0, 0], sizes = [1, 128], strides = [1, 1]} : vector<1x256xf32> to vector<1x128xf32>
    %26 = vector.extract_strided_slice %21 {offsets = [0, 128], sizes = [1, 128], strides = [1, 1]} : vector<1x256xf32> to vector<1x128xf32>
    %27 = arith.addf %25, %26 : vector<1x128xf32>
    %28 = vector.extract_strided_slice %24 {offsets = [0, 0], sizes = [1, 128], strides = [1, 1]} : vector<1x256xf32> to vector<1x128xf32>
    %29 = vector.extract_strided_slice %24 {offsets = [0, 128], sizes = [1, 128], strides = [1, 1]} : vector<1x256xf32> to vector<1x128xf32>
    %30 = arith.addf %28, %29 : vector<1x128xf32>
    %31 = vector.extract_strided_slice %27 {offsets = [0, 0], sizes = [1, 64], strides = [1, 1]} : vector<1x128xf32> to vector<1x64xf32>
    %32 = vector.extract_strided_slice %27 {offsets = [0, 64], sizes = [1, 64], strides = [1, 1]} : vector<1x128xf32> to vector<1x64xf32>
    %33 = arith.addf %31, %32 : vector<1x64xf32>
    %34 = vector.extract_strided_slice %30 {offsets = [0, 0], sizes = [1, 64], strides = [1, 1]} : vector<1x128xf32> to vector<1x64xf32>
    %35 = vector.extract_strided_slice %30 {offsets = [0, 64], sizes = [1, 64], strides = [1, 1]} : vector<1x128xf32> to vector<1x64xf32>
    %36 = arith.addf %34, %35 : vector<1x64xf32>
    %37 = vector.extract_strided_slice %33 {offsets = [0, 0], sizes = [1, 32], strides = [1, 1]} : vector<1x64xf32> to vector<1x32xf32>
    %38 = vector.extract_strided_slice %33 {offsets = [0, 32], sizes = [1, 32], strides = [1, 1]} : vector<1x64xf32> to vector<1x32xf32>
    %39 = arith.addf %37, %38 : vector<1x32xf32>
    %40 = vector.extract_strided_slice %36 {offsets = [0, 0], sizes = [1, 32], strides = [1, 1]} : vector<1x64xf32> to vector<1x32xf32>
    %41 = vector.extract_strided_slice %36 {offsets = [0, 32], sizes = [1, 32], strides = [1, 1]} : vector<1x64xf32> to vector<1x32xf32>
    %42 = arith.addf %40, %41 : vector<1x32xf32>
    %43 = vector.extract_strided_slice %39 {offsets = [0, 0], sizes = [1, 16], strides = [1, 1]} : vector<1x32xf32> to vector<1x16xf32>
    %44 = vector.extract_strided_slice %39 {offsets = [0, 16], sizes = [1, 16], strides = [1, 1]} : vector<1x32xf32> to vector<1x16xf32>
    %45 = arith.addf %43, %44 : vector<1x16xf32>
    %46 = vector.extract_strided_slice %42 {offsets = [0, 0], sizes = [1, 16], strides = [1, 1]} : vector<1x32xf32> to vector<1x16xf32>
    %47 = vector.extract_strided_slice %42 {offsets = [0, 16], sizes = [1, 16], strides = [1, 1]} : vector<1x32xf32> to vector<1x16xf32>
    %48 = arith.addf %46, %47 : vector<1x16xf32>
    %cst_20 = arith.constant 0.001953125 : f32
    %49 = vector.broadcast %cst_20 : f32 to vector<1x16xf32>
    %50 = arith.mulf %45, %49 : vector<1x16xf32>
    %cst_21 = arith.constant 0.001953125 : f32
    %51 = vector.broadcast %cst_21 : f32 to vector<1x16xf32>
    %52 = arith.mulf %48, %51 : vector<1x16xf32>
    %53 = arith.mulf %50, %50 : vector<1x16xf32>
    %54 = arith.subf %52, %53 : vector<1x16xf32>
    %c0_22 = arith.constant 0 : index
    %c0_23 = arith.constant 0 : index
    %55 = vector.load %arg2[%c0_22, %c0_23] : memref<1x16xf32, #tpu.memory_space<vmem>>, vector<1x16xf32>
    %cst_24 = arith.constant 9.99999974E-6 : f32
    %56 = vector.broadcast %cst_24 : f32 to vector<1x16xf32>
    %57 = arith.addf %54, %56 : vector<1x16xf32>
    %58 = math.rsqrt %57 : vector<1x16xf32>
    %59 = arith.mulf %55, %58 : vector<1x16xf32>
    %c0_25 = arith.constant 0 : index
    %c0_26 = arith.constant 0 : index
    %60 = vector.load %arg3[%c0_25, %c0_26] : memref<1x16xf32, #tpu.memory_space<vmem>>, vector<1x16xf32>
    %61 = arith.mulf %50, %59 : vector<1x16xf32>
    %62 = arith.subf %60, %61 : vector<1x16xf32>
    %63 = tpu.concatenate %59, %59, %59, %59, %59, %59, %59, %59, %59, %59, %59, %59, %59, %59, %59, %59 in 1 : vector<1x16xf32>, vector<1x16xf32>, vector<1x16xf32>, vector<1x16xf32>, vector<1x16xf32>, vector<1x16xf32>, vector<1x16xf32>, vector<1x16xf32>, vector<1x16xf32>, vector<1x16xf32>, vector<1x16xf32>, vector<1x16xf32>, vector<1x16xf32>, vector<1x16xf32>, vector<1x16xf32>, vector<1x16xf32> -> vector<1x256xf32>
    %64 = tpu.concatenate %62, %62, %62, %62, %62, %62, %62, %62, %62, %62, %62, %62, %62, %62, %62, %62 in 1 : vector<1x16xf32>, vector<1x16xf32>, vector<1x16xf32>, vector<1x16xf32>, vector<1x16xf32>, vector<1x16xf32>, vector<1x16xf32>, vector<1x16xf32>, vector<1x16xf32>, vector<1x16xf32>, vector<1x16xf32>, vector<1x16xf32>, vector<1x16xf32>, vector<1x16xf32>, vector<1x16xf32>, vector<1x16xf32> -> vector<1x256xf32>
    %65 = vector.broadcast %63 : vector<1x256xf32> to vector<32x256xf32>
    %66 = arith.mulf %19, %65 : vector<32x256xf32>
    %67 = vector.broadcast %64 : vector<1x256xf32> to vector<32x256xf32>
    %68 = arith.addf %66, %67 : vector<32x256xf32>
    %cst_27 = arith.constant 0.000000e+00 : f32
    %69 = vector.broadcast %cst_27 : f32 to vector<32x256xf32>
    %70 = arith.cmpf ogt, %68, %69 : vector<32x256xf32>
    %cst_28 = arith.constant 0.00999999977 : f32
    %71 = vector.broadcast %cst_28 : f32 to vector<32x256xf32>
    %72 = arith.mulf %71, %68 : vector<32x256xf32>
    %73 = arith.select %70, %68, %72 : vector<32x256xi1>, vector<32x256xf32>
    %74 = vector.extract_strided_slice %73 {offsets = [0, 0], sizes = [16, 256], strides = [1, 1]} : vector<32x256xf32> to vector<16x256xf32>
    %c2_29 = arith.constant 2 : index
    %c0_30 = arith.constant 0 : index
    %75 = vector.load %arg13[%c2_29, %c0_30] : memref<40x256xf32, #tpu.memory_space<vmem>>, vector<16x256xf32>
    tpu.vector_store %arg13[%c2_29, %c0_30], %74 {strides = array<i32>} : memref<40x256xf32, #tpu.memory_space<vmem>>, vector<16x256xf32>,
    %76 = vector.extract_strided_slice %73 {offsets = [16, 0], sizes = [16, 256], strides = [1, 1]} : vector<32x256xf32> to vector<16x256xf32>
    %c22_31 = arith.constant 22 : index
    %c0_32 = arith.constant 0 : index
    %77 = vector.load %arg13[%c22_31, %c0_32] : memref<40x256xf32, #tpu.memory_space<vmem>>, vector<16x256xf32>
    tpu.vector_store %arg13[%c22_31, %c0_32], %76 {strides = array<i32>} : memref<40x256xf32, #tpu.memory_space<vmem>>, vector<16x256xf32>,
    %c1_33 = arith.constant 1 : index
    %c0_34 = arith.constant 0 : index
    %78 = vector.load %arg13[%c1_33, %c0_34] : memref<40x256xf32, #tpu.memory_space<vmem>>, vector<16x256xf32>
    %c21 = arith.constant 21 : index
    %c0_35 = arith.constant 0 : index
    %79 = vector.load %arg13[%c21, %c0_35] : memref<40x256xf32, #tpu.memory_space<vmem>>, vector<16x256xf32>
    %80 = tpu.concatenate %78, %79 in 0 : vector<16x256xf32>, vector<16x256xf32> -> vector<32x256xf32>
    %c0_36 = arith.constant 0 : index
    %c0_37 = arith.constant 0 : index
    %c0_38 = arith.constant 0 : index
    %81 = vector.load %arg4[%c0_36, %c0_37, %c0_38] : memref<3x256x256xf32, #tpu.memory_space<vmem>>, vector<1x256x256xf32>
    %82 = vector.shape_cast %81 : vector<1x256x256xf32> to vector<256x256xf32>
    %cst_39 = arith.constant dense<0.000000e+00> : vector<32x256xf32>
    %83 = tpu.matmul %80, %82, %cst_39 {dimension_numbers = #tpu.dot_dimension_numbers<[1], [0], [0], [1], [0, 0, 1, 1], [], []>} : vector<32x256xf32>, vector<256x256xf32>, vector<32x256xf32> -> vector<32x256xf32>
    %c2_40 = arith.constant 2 : index
    %c0_41 = arith.constant 0 : index
    %84 = vector.load %arg13[%c2_40, %c0_41] : memref<40x256xf32, #tpu.memory_space<vmem>>, vector<16x256xf32>
    %c22_42 = arith.constant 22 : index
    %c0_43 = arith.constant 0 : index
    %85 = vector.load %arg13[%c22_42, %c0_43] : memref<40x256xf32, #tpu.memory_space<vmem>>, vector<16x256xf32>
    %86 = tpu.concatenate %84, %85 in 0 : vector<16x256xf32>, vector<16x256xf32> -> vector<32x256xf32>
    %c1_44 = arith.constant 1 : index
    %c0_45 = arith.constant 0 : index
    %c0_46 = arith.constant 0 : index
    %87 = vector.load %arg4[%c1_44, %c0_45, %c0_46] : memref<3x256x256xf32, #tpu.memory_space<vmem>>, vector<1x256x256xf32>
    %88 = vector.shape_cast %87 : vector<1x256x256xf32> to vector<256x256xf32>
    %cst_47 = arith.constant dense<0.000000e+00> : vector<32x256xf32>
    %89 = tpu.matmul %86, %88, %cst_47 {dimension_numbers = #tpu.dot_dimension_numbers<[1], [0], [0], [1], [0, 0, 1, 1], [], []>} : vector<32x256xf32>, vector<256x256xf32>, vector<32x256xf32> -> vector<32x256xf32>
    %90 = arith.addf %83, %89 : vector<32x256xf32>
    %c3_48 = arith.constant 3 : index
    %c0_49 = arith.constant 0 : index
    %91 = vector.load %arg13[%c3_48, %c0_49] : memref<40x256xf32, #tpu.memory_space<vmem>>, vector<16x256xf32>
    %c23_50 = arith.constant 23 : index
    %c0_51 = arith.constant 0 : index
    %92 = vector.load %arg13[%c23_50, %c0_51] : memref<40x256xf32, #tpu.memory_space<vmem>>, vector<16x256xf32>
    %93 = tpu.concatenate %91, %92 in 0 : vector<16x256xf32>, vector<16x256xf32> -> vector<32x256xf32>
    %c2_52 = arith.constant 2 : index
    %c0_53 = arith.constant 0 : index
    %c0_54 = arith.constant 0 : index
    %94 = vector.load %arg4[%c2_52, %c0_53, %c0_54] : memref<3x256x256xf32, #tpu.memory_space<vmem>>, vector<1x256x256xf32>
    %95 = vector.shape_cast %94 : vector<1x256x256xf32> to vector<256x256xf32>
    %cst_55 = arith.constant dense<0.000000e+00> : vector<32x256xf32>
    %96 = tpu.matmul %93, %95, %cst_55 {dimension_numbers = #tpu.dot_dimension_numbers<[1], [0], [0], [1], [0, 0, 1, 1], [], []>} : vector<32x256xf32>, vector<256x256xf32>, vector<32x256xf32> -> vector<32x256xf32>
    %97 = arith.addf %90, %96 : vector<32x256xf32>
    %cst_56 = arith.constant dense<0.000000e+00> : vector<256xf32>
    %98 = vector.multi_reduction <add>, %97, %cst_56 [0] : vector<32x256xf32> to vector<256xf32>
    %99 = vector.shape_cast %98 : vector<256xf32> to vector<1x256xf32>
    %100 = arith.mulf %97, %97 : vector<32x256xf32>
    %cst_57 = arith.constant dense<0.000000e+00> : vector<256xf32>
    %101 = vector.multi_reduction <add>, %100, %cst_57 [0] : vector<32x256xf32> to vector<256xf32>
    %102 = vector.shape_cast %101 : vector<256xf32> to vector<1x256xf32>
    %103 = vector.extract_strided_slice %99 {offsets = [0, 0], sizes = [1, 128], strides = [1, 1]} : vector<1x256xf32> to vector<1x128xf32>
    %104 = vector.extract_strided_slice %99 {offsets = [0, 128], sizes = [1, 128], strides = [1, 1]} : vector<1x256xf32> to vector<1x128xf32>
    %105 = arith.addf %103, %104 : vector<1x128xf32>
    %106 = vector.extract_strided_slice %102 {offsets = [0, 0], sizes = [1, 128], strides = [1, 1]} : vector<1x256xf32> to vector<1x128xf32>
    %107 = vector.extract_strided_slice %102 {offsets = [0, 128], sizes = [1, 128], strides = [1, 1]} : vector<1x256xf32> to vector<1x128xf32>
    %108 = arith.addf %106, %107 : vector<1x128xf32>
    %109 = vector.extract_strided_slice %105 {offsets = [0, 0], sizes = [1, 64], strides = [1, 1]} : vector<1x128xf32> to vector<1x64xf32>
    %110 = vector.extract_strided_slice %105 {offsets = [0, 64], sizes = [1, 64], strides = [1, 1]} : vector<1x128xf32> to vector<1x64xf32>
    %111 = arith.addf %109, %110 : vector<1x64xf32>
    %112 = vector.extract_strided_slice %108 {offsets = [0, 0], sizes = [1, 64], strides = [1, 1]} : vector<1x128xf32> to vector<1x64xf32>
    %113 = vector.extract_strided_slice %108 {offsets = [0, 64], sizes = [1, 64], strides = [1, 1]} : vector<1x128xf32> to vector<1x64xf32>
    %114 = arith.addf %112, %113 : vector<1x64xf32>
    %115 = vector.extract_strided_slice %111 {offsets = [0, 0], sizes = [1, 32], strides = [1, 1]} : vector<1x64xf32> to vector<1x32xf32>
    %116 = vector.extract_strided_slice %111 {offsets = [0, 32], sizes = [1, 32], strides = [1, 1]} : vector<1x64xf32> to vector<1x32xf32>
    %117 = arith.addf %115, %116 : vector<1x32xf32>
    %118 = vector.extract_strided_slice %114 {offsets = [0, 0], sizes = [1, 32], strides = [1, 1]} : vector<1x64xf32> to vector<1x32xf32>
    %119 = vector.extract_strided_slice %114 {offsets = [0, 32], sizes = [1, 32], strides = [1, 1]} : vector<1x64xf32> to vector<1x32xf32>
    %120 = arith.addf %118, %119 : vector<1x32xf32>
    %121 = vector.extract_strided_slice %117 {offsets = [0, 0], sizes = [1, 16], strides = [1, 1]} : vector<1x32xf32> to vector<1x16xf32>
    %122 = vector.extract_strided_slice %117 {offsets = [0, 16], sizes = [1, 16], strides = [1, 1]} : vector<1x32xf32> to vector<1x16xf32>
    %123 = arith.addf %121, %122 : vector<1x16xf32>
    %124 = vector.extract_strided_slice %120 {offsets = [0, 0], sizes = [1, 16], strides = [1, 1]} : vector<1x32xf32> to vector<1x16xf32>
    %125 = vector.extract_strided_slice %120 {offsets = [0, 16], sizes = [1, 16], strides = [1, 1]} : vector<1x32xf32> to vector<1x16xf32>
    %126 = arith.addf %124, %125 : vector<1x16xf32>
    %cst_58 = arith.constant 0.001953125 : f32
    %127 = vector.broadcast %cst_58 : f32 to vector<1x16xf32>
    %128 = arith.mulf %123, %127 : vector<1x16xf32>
    %cst_59 = arith.constant 0.001953125 : f32
    %129 = vector.broadcast %cst_59 : f32 to vector<1x16xf32>
    %130 = arith.mulf %126, %129 : vector<1x16xf32>
    %131 = arith.mulf %128, %128 : vector<1x16xf32>
    %132 = arith.subf %130, %131 : vector<1x16xf32>
    %c0_60 = arith.constant 0 : index
    %c0_61 = arith.constant 0 : index
    %133 = vector.load %arg5[%c0_60, %c0_61] : memref<1x16xf32, #tpu.memory_space<vmem>>, vector<1x16xf32>
    %cst_62 = arith.constant 9.99999974E-6 : f32
    %134 = vector.broadcast %cst_62 : f32 to vector<1x16xf32>
    %135 = arith.addf %132, %134 : vector<1x16xf32>
    %136 = math.rsqrt %135 : vector<1x16xf32>
    %137 = arith.mulf %133, %136 : vector<1x16xf32>
    %c0_63 = arith.constant 0 : index
    %c0_64 = arith.constant 0 : index
    %138 = vector.load %arg6[%c0_63, %c0_64] : memref<1x16xf32, #tpu.memory_space<vmem>>, vector<1x16xf32>
    %139 = arith.mulf %128, %137 : vector<1x16xf32>
    %140 = arith.subf %138, %139 : vector<1x16xf32>
    %141 = tpu.concatenate %137, %137, %137, %137, %137, %137, %137, %137, %137, %137, %137, %137, %137, %137, %137, %137 in 1 : vector<1x16xf32>, vector<1x16xf32>, vector<1x16xf32>, vector<1x16xf32>, vector<1x16xf32>, vector<1x16xf32>, vector<1x16xf32>, vector<1x16xf32>, vector<1x16xf32>, vector<1x16xf32>, vector<1x16xf32>, vector<1x16xf32>, vector<1x16xf32>, vector<1x16xf32>, vector<1x16xf32>, vector<1x16xf32> -> vector<1x256xf32>
    %142 = tpu.concatenate %140, %140, %140, %140, %140, %140, %140, %140, %140, %140, %140, %140, %140, %140, %140, %140 in 1 : vector<1x16xf32>, vector<1x16xf32>, vector<1x16xf32>, vector<1x16xf32>, vector<1x16xf32>, vector<1x16xf32>, vector<1x16xf32>, vector<1x16xf32>, vector<1x16xf32>, vector<1x16xf32>, vector<1x16xf32>, vector<1x16xf32>, vector<1x16xf32>, vector<1x16xf32>, vector<1x16xf32>, vector<1x16xf32> -> vector<1x256xf32>
    %143 = vector.broadcast %141 : vector<1x256xf32> to vector<32x256xf32>
    %144 = arith.mulf %97, %143 : vector<32x256xf32>
    %145 = vector.broadcast %142 : vector<1x256xf32> to vector<32x256xf32>
    %146 = arith.addf %144, %145 : vector<32x256xf32>
    %cst_65 = arith.constant 0.000000e+00 : f32
    %147 = vector.broadcast %cst_65 : f32 to vector<32x256xf32>
    %148 = arith.cmpf ogt, %146, %147 : vector<32x256xf32>
    %cst_66 = arith.constant 0.00999999977 : f32
    %149 = vector.broadcast %cst_66 : f32 to vector<32x256xf32>
    %150 = arith.mulf %149, %146 : vector<32x256xf32>
    %151 = arith.select %148, %146, %150 : vector<32x256xi1>, vector<32x256xf32>
    %152 = vector.extract_strided_slice %151 {offsets = [0, 0], sizes = [16, 256], strides = [1, 1]} : vector<32x256xf32> to vector<16x256xf32>
    %c2_67 = arith.constant 2 : index
    %c0_68 = arith.constant 0 : index
    %153 = vector.load %arg13[%c2_67, %c0_68] : memref<40x256xf32, #tpu.memory_space<vmem>>, vector<16x256xf32>
    tpu.vector_store %arg13[%c2_67, %c0_68], %152 {strides = array<i32>} : memref<40x256xf32, #tpu.memory_space<vmem>>, vector<16x256xf32>,
    %154 = vector.extract_strided_slice %151 {offsets = [16, 0], sizes = [16, 256], strides = [1, 1]} : vector<32x256xf32> to vector<16x256xf32>
    %c22_69 = arith.constant 22 : index
    %c0_70 = arith.constant 0 : index
    %155 = vector.load %arg13[%c22_69, %c0_70] : memref<40x256xf32, #tpu.memory_space<vmem>>, vector<16x256xf32>
    tpu.vector_store %arg13[%c22_69, %c0_70], %154 {strides = array<i32>} : memref<40x256xf32, #tpu.memory_space<vmem>>, vector<16x256xf32>,
    %c0_71 = arith.constant 0 : index
    %c0_72 = arith.constant 0 : index
    %156 = vector.load %arg13[%c0_71, %c0_72] : memref<40x256xf32, #tpu.memory_space<vmem>>, vector<16x256xf32>
    %c20 = arith.constant 20 : index
    %c0_73 = arith.constant 0 : index
    %157 = vector.load %arg13[%c20, %c0_73] : memref<40x256xf32, #tpu.memory_space<vmem>>, vector<16x256xf32>
    %158 = tpu.concatenate %156, %157 in 0 : vector<16x256xf32>, vector<16x256xf32> -> vector<32x256xf32>
    %c0_74 = arith.constant 0 : index
    %c0_75 = arith.constant 0 : index
    %c0_76 = arith.constant 0 : index
    %159 = vector.load %arg7[%c0_74, %c0_75, %c0_76] : memref<5x256x256xf32, #tpu.memory_space<vmem>>, vector<1x256x256xf32>
    %160 = vector.shape_cast %159 : vector<1x256x256xf32> to vector<256x256xf32>
    %cst_77 = arith.constant dense<0.000000e+00> : vector<32x256xf32>
    %161 = tpu.matmul %158, %160, %cst_77 {dimension_numbers = #tpu.dot_dimension_numbers<[1], [0], [0], [1], [0, 0, 1, 1], [], []>} : vector<32x256xf32>, vector<256x256xf32>, vector<32x256xf32> -> vector<32x256xf32>
    %c1_78 = arith.constant 1 : index
    %c0_79 = arith.constant 0 : index
    %162 = vector.load %arg13[%c1_78, %c0_79] : memref<40x256xf32, #tpu.memory_space<vmem>>, vector<16x256xf32>
    %c21_80 = arith.constant 21 : index
    %c0_81 = arith.constant 0 : index
    %163 = vector.load %arg13[%c21_80, %c0_81] : memref<40x256xf32, #tpu.memory_space<vmem>>, vector<16x256xf32>
    %164 = tpu.concatenate %162, %163 in 0 : vector<16x256xf32>, vector<16x256xf32> -> vector<32x256xf32>
    %c1_82 = arith.constant 1 : index
    %c0_83 = arith.constant 0 : index
    %c0_84 = arith.constant 0 : index
    %165 = vector.load %arg7[%c1_82, %c0_83, %c0_84] : memref<5x256x256xf32, #tpu.memory_space<vmem>>, vector<1x256x256xf32>
    %166 = vector.shape_cast %165 : vector<1x256x256xf32> to vector<256x256xf32>
    %cst_85 = arith.constant dense<0.000000e+00> : vector<32x256xf32>
    %167 = tpu.matmul %164, %166, %cst_85 {dimension_numbers = #tpu.dot_dimension_numbers<[1], [0], [0], [1], [0, 0, 1, 1], [], []>} : vector<32x256xf32>, vector<256x256xf32>, vector<32x256xf32> -> vector<32x256xf32>
    %168 = arith.addf %161, %167 : vector<32x256xf32>
    %c2_86 = arith.constant 2 : index
    %c0_87 = arith.constant 0 : index
    %169 = vector.load %arg13[%c2_86, %c0_87] : memref<40x256xf32, #tpu.memory_space<vmem>>, vector<16x256xf32>
    %c22_88 = arith.constant 22 : index
    %c0_89 = arith.constant 0 : index
    %170 = vector.load %arg13[%c22_88, %c0_89] : memref<40x256xf32, #tpu.memory_space<vmem>>, vector<16x256xf32>
    %171 = tpu.concatenate %169, %170 in 0 : vector<16x256xf32>, vector<16x256xf32> -> vector<32x256xf32>
    %c2_90 = arith.constant 2 : index
    %c0_91 = arith.constant 0 : index
    %c0_92 = arith.constant 0 : index
    %172 = vector.load %arg7[%c2_90, %c0_91, %c0_92] : memref<5x256x256xf32, #tpu.memory_space<vmem>>, vector<1x256x256xf32>
    %173 = vector.shape_cast %172 : vector<1x256x256xf32> to vector<256x256xf32>
    %cst_93 = arith.constant dense<0.000000e+00> : vector<32x256xf32>
    %174 = tpu.matmul %171, %173, %cst_93 {dimension_numbers = #tpu.dot_dimension_numbers<[1], [0], [0], [1], [0, 0, 1, 1], [], []>} : vector<32x256xf32>, vector<256x256xf32>, vector<32x256xf32> -> vector<32x256xf32>
    %175 = arith.addf %168, %174 : vector<32x256xf32>
    %c3_94 = arith.constant 3 : index
    %c0_95 = arith.constant 0 : index
    %176 = vector.load %arg13[%c3_94, %c0_95] : memref<40x256xf32, #tpu.memory_space<vmem>>, vector<16x256xf32>
    %c23_96 = arith.constant 23 : index
    %c0_97 = arith.constant 0 : index
    %177 = vector.load %arg13[%c23_96, %c0_97] : memref<40x256xf32, #tpu.memory_space<vmem>>, vector<16x256xf32>
    %178 = tpu.concatenate %176, %177 in 0 : vector<16x256xf32>, vector<16x256xf32> -> vector<32x256xf32>
    %c3_98 = arith.constant 3 : index
    %c0_99 = arith.constant 0 : index
    %c0_100 = arith.constant 0 : index
    %179 = vector.load %arg7[%c3_98, %c0_99, %c0_100] : memref<5x256x256xf32, #tpu.memory_space<vmem>>, vector<1x256x256xf32>
    %180 = vector.shape_cast %179 : vector<1x256x256xf32> to vector<256x256xf32>
    %cst_101 = arith.constant dense<0.000000e+00> : vector<32x256xf32>
    %181 = tpu.matmul %178, %180, %cst_101 {dimension_numbers = #tpu.dot_dimension_numbers<[1], [0], [0], [1], [0, 0, 1, 1], [], []>} : vector<32x256xf32>, vector<256x256xf32>, vector<32x256xf32> -> vector<32x256xf32>
    %182 = arith.addf %175, %181 : vector<32x256xf32>
    %c4 = arith.constant 4 : index
    %c0_102 = arith.constant 0 : index
    %183 = vector.load %arg13[%c4, %c0_102] : memref<40x256xf32, #tpu.memory_space<vmem>>, vector<16x256xf32>
    %c24 = arith.constant 24 : index
    %c0_103 = arith.constant 0 : index
    %184 = vector.load %arg13[%c24, %c0_103] : memref<40x256xf32, #tpu.memory_space<vmem>>, vector<16x256xf32>
    %185 = tpu.concatenate %183, %184 in 0 : vector<16x256xf32>, vector<16x256xf32> -> vector<32x256xf32>
    %c4_104 = arith.constant 4 : index
    %c0_105 = arith.constant 0 : index
    %c0_106 = arith.constant 0 : index
    %186 = vector.load %arg7[%c4_104, %c0_105, %c0_106] : memref<5x256x256xf32, #tpu.memory_space<vmem>>, vector<1x256x256xf32>
    %187 = vector.shape_cast %186 : vector<1x256x256xf32> to vector<256x256xf32>
    %cst_107 = arith.constant dense<0.000000e+00> : vector<32x256xf32>
    %188 = tpu.matmul %185, %187, %cst_107 {dimension_numbers = #tpu.dot_dimension_numbers<[1], [0], [0], [1], [0, 0, 1, 1], [], []>} : vector<32x256xf32>, vector<256x256xf32>, vector<32x256xf32> -> vector<32x256xf32>
    %189 = arith.addf %182, %188 : vector<32x256xf32>
    %cst_108 = arith.constant dense<0.000000e+00> : vector<256xf32>
    %190 = vector.multi_reduction <add>, %189, %cst_108 [0] : vector<32x256xf32> to vector<256xf32>
    %191 = vector.shape_cast %190 : vector<256xf32> to vector<1x256xf32>
    %192 = arith.mulf %189, %189 : vector<32x256xf32>
    %cst_109 = arith.constant dense<0.000000e+00> : vector<256xf32>
    %193 = vector.multi_reduction <add>, %192, %cst_109 [0] : vector<32x256xf32> to vector<256xf32>
    %194 = vector.shape_cast %193 : vector<256xf32> to vector<1x256xf32>
    %195 = vector.extract_strided_slice %191 {offsets = [0, 0], sizes = [1, 128], strides = [1, 1]} : vector<1x256xf32> to vector<1x128xf32>
    %196 = vector.extract_strided_slice %191 {offsets = [0, 128], sizes = [1, 128], strides = [1, 1]} : vector<1x256xf32> to vector<1x128xf32>
    %197 = arith.addf %195, %196 : vector<1x128xf32>
    %198 = vector.extract_strided_slice %194 {offsets = [0, 0], sizes = [1, 128], strides = [1, 1]} : vector<1x256xf32> to vector<1x128xf32>
    %199 = vector.extract_strided_slice %194 {offsets = [0, 128], sizes = [1, 128], strides = [1, 1]} : vector<1x256xf32> to vector<1x128xf32>
    %200 = arith.addf %198, %199 : vector<1x128xf32>
    %201 = vector.extract_strided_slice %197 {offsets = [0, 0], sizes = [1, 64], strides = [1, 1]} : vector<1x128xf32> to vector<1x64xf32>
    %202 = vector.extract_strided_slice %197 {offsets = [0, 64], sizes = [1, 64], strides = [1, 1]} : vector<1x128xf32> to vector<1x64xf32>
    %203 = arith.addf %201, %202 : vector<1x64xf32>
    %204 = vector.extract_strided_slice %200 {offsets = [0, 0], sizes = [1, 64], strides = [1, 1]} : vector<1x128xf32> to vector<1x64xf32>
    %205 = vector.extract_strided_slice %200 {offsets = [0, 64], sizes = [1, 64], strides = [1, 1]} : vector<1x128xf32> to vector<1x64xf32>
    %206 = arith.addf %204, %205 : vector<1x64xf32>
    %207 = vector.extract_strided_slice %203 {offsets = [0, 0], sizes = [1, 32], strides = [1, 1]} : vector<1x64xf32> to vector<1x32xf32>
    %208 = vector.extract_strided_slice %203 {offsets = [0, 32], sizes = [1, 32], strides = [1, 1]} : vector<1x64xf32> to vector<1x32xf32>
    %209 = arith.addf %207, %208 : vector<1x32xf32>
    %210 = vector.extract_strided_slice %206 {offsets = [0, 0], sizes = [1, 32], strides = [1, 1]} : vector<1x64xf32> to vector<1x32xf32>
    %211 = vector.extract_strided_slice %206 {offsets = [0, 32], sizes = [1, 32], strides = [1, 1]} : vector<1x64xf32> to vector<1x32xf32>
    %212 = arith.addf %210, %211 : vector<1x32xf32>
    %213 = vector.extract_strided_slice %209 {offsets = [0, 0], sizes = [1, 16], strides = [1, 1]} : vector<1x32xf32> to vector<1x16xf32>
    %214 = vector.extract_strided_slice %209 {offsets = [0, 16], sizes = [1, 16], strides = [1, 1]} : vector<1x32xf32> to vector<1x16xf32>
    %215 = arith.addf %213, %214 : vector<1x16xf32>
    %216 = vector.extract_strided_slice %212 {offsets = [0, 0], sizes = [1, 16], strides = [1, 1]} : vector<1x32xf32> to vector<1x16xf32>
    %217 = vector.extract_strided_slice %212 {offsets = [0, 16], sizes = [1, 16], strides = [1, 1]} : vector<1x32xf32> to vector<1x16xf32>
    %218 = arith.addf %216, %217 : vector<1x16xf32>
    %cst_110 = arith.constant 0.001953125 : f32
    %219 = vector.broadcast %cst_110 : f32 to vector<1x16xf32>
    %220 = arith.mulf %215, %219 : vector<1x16xf32>
    %cst_111 = arith.constant 0.001953125 : f32
    %221 = vector.broadcast %cst_111 : f32 to vector<1x16xf32>
    %222 = arith.mulf %218, %221 : vector<1x16xf32>
    %223 = arith.mulf %220, %220 : vector<1x16xf32>
    %224 = arith.subf %222, %223 : vector<1x16xf32>
    %c0_112 = arith.constant 0 : index
    %c0_113 = arith.constant 0 : index
    %225 = vector.load %arg8[%c0_112, %c0_113] : memref<1x16xf32, #tpu.memory_space<vmem>>, vector<1x16xf32>
    %cst_114 = arith.constant 9.99999974E-6 : f32
    %226 = vector.broadcast %cst_114 : f32 to vector<1x16xf32>
    %227 = arith.addf %224, %226 : vector<1x16xf32>
    %228 = math.rsqrt %227 : vector<1x16xf32>
    %229 = arith.mulf %225, %228 : vector<1x16xf32>
    %c0_115 = arith.constant 0 : index
    %c0_116 = arith.constant 0 : index
    %230 = vector.load %arg9[%c0_115, %c0_116] : memref<1x16xf32, #tpu.memory_space<vmem>>, vector<1x16xf32>
    %231 = arith.mulf %220, %229 : vector<1x16xf32>
    %232 = arith.subf %230, %231 : vector<1x16xf32>
    %233 = tpu.concatenate %229, %229, %229, %229, %229, %229, %229, %229, %229, %229, %229, %229, %229, %229, %229, %229 in 1 : vector<1x16xf32>, vector<1x16xf32>, vector<1x16xf32>, vector<1x16xf32>, vector<1x16xf32>, vector<1x16xf32>, vector<1x16xf32>, vector<1x16xf32>, vector<1x16xf32>, vector<1x16xf32>, vector<1x16xf32>, vector<1x16xf32>, vector<1x16xf32>, vector<1x16xf32>, vector<1x16xf32>, vector<1x16xf32> -> vector<1x256xf32>
    %234 = tpu.concatenate %232, %232, %232, %232, %232, %232, %232, %232, %232, %232, %232, %232, %232, %232, %232, %232 in 1 : vector<1x16xf32>, vector<1x16xf32>, vector<1x16xf32>, vector<1x16xf32>, vector<1x16xf32>, vector<1x16xf32>, vector<1x16xf32>, vector<1x16xf32>, vector<1x16xf32>, vector<1x16xf32>, vector<1x16xf32>, vector<1x16xf32>, vector<1x16xf32>, vector<1x16xf32>, vector<1x16xf32>, vector<1x16xf32> -> vector<1x256xf32>
    %235 = vector.broadcast %233 : vector<1x256xf32> to vector<32x256xf32>
    %236 = arith.mulf %189, %235 : vector<32x256xf32>
    %237 = vector.broadcast %234 : vector<1x256xf32> to vector<32x256xf32>
    %238 = arith.addf %236, %237 : vector<32x256xf32>
    %cst_117 = arith.constant 0.000000e+00 : f32
    %239 = vector.broadcast %cst_117 : f32 to vector<32x256xf32>
    %240 = arith.cmpf ogt, %238, %239 : vector<32x256xf32>
    %cst_118 = arith.constant 0.00999999977 : f32
    %241 = vector.broadcast %cst_118 : f32 to vector<32x256xf32>
    %242 = arith.mulf %241, %238 : vector<32x256xf32>
    %243 = arith.select %240, %238, %242 : vector<32x256xi1>, vector<32x256xf32>
    %244 = vector.extract_strided_slice %243 {offsets = [0, 0], sizes = [16, 256], strides = [1, 1]} : vector<32x256xf32> to vector<16x256xf32>
    %c2_119 = arith.constant 2 : index
    %c0_120 = arith.constant 0 : index
    %245 = vector.load %arg13[%c2_119, %c0_120] : memref<40x256xf32, #tpu.memory_space<vmem>>, vector<16x256xf32>
    tpu.vector_store %arg13[%c2_119, %c0_120], %244 {strides = array<i32>} : memref<40x256xf32, #tpu.memory_space<vmem>>, vector<16x256xf32>,
    %246 = vector.extract_strided_slice %243 {offsets = [16, 0], sizes = [16, 256], strides = [1, 1]} : vector<32x256xf32> to vector<16x256xf32>
    %c22_121 = arith.constant 22 : index
    %c0_122 = arith.constant 0 : index
    %247 = vector.load %arg13[%c22_121, %c0_122] : memref<40x256xf32, #tpu.memory_space<vmem>>, vector<16x256xf32>
    tpu.vector_store %arg13[%c22_121, %c0_122], %246 {strides = array<i32>} : memref<40x256xf32, #tpu.memory_space<vmem>>, vector<16x256xf32>,
    %c1_123 = arith.constant 1 : index
    %c0_124 = arith.constant 0 : index
    %248 = vector.load %arg13[%c1_123, %c0_124] : memref<40x256xf32, #tpu.memory_space<vmem>>, vector<16x256xf32>
    %c21_125 = arith.constant 21 : index
    %c0_126 = arith.constant 0 : index
    %249 = vector.load %arg13[%c21_125, %c0_126] : memref<40x256xf32, #tpu.memory_space<vmem>>, vector<16x256xf32>
    %250 = tpu.concatenate %248, %249 in 0 : vector<16x256xf32>, vector<16x256xf32> -> vector<32x256xf32>
    %c0_127 = arith.constant 0 : index
    %c0_128 = arith.constant 0 : index
    %c0_129 = arith.constant 0 : index
    %251 = vector.load %arg10[%c0_127, %c0_128, %c0_129] : memref<3x256x16xf32, #tpu.memory_space<vmem>>, vector<1x256x16xf32>
    %252 = vector.shape_cast %251 : vector<1x256x16xf32> to vector<256x16xf32>
    %cst_130 = arith.constant dense<0.000000e+00> : vector<32x16xf32>
    %253 = tpu.matmul %250, %252, %cst_130 {dimension_numbers = #tpu.dot_dimension_numbers<[1], [0], [0], [1], [0, 0, 1, 1], [], []>} : vector<32x256xf32>, vector<256x16xf32>, vector<32x16xf32> -> vector<32x16xf32>
    %c2_131 = arith.constant 2 : index
    %c0_132 = arith.constant 0 : index
    %254 = vector.load %arg13[%c2_131, %c0_132] : memref<40x256xf32, #tpu.memory_space<vmem>>, vector<16x256xf32>
    %c22_133 = arith.constant 22 : index
    %c0_134 = arith.constant 0 : index
    %255 = vector.load %arg13[%c22_133, %c0_134] : memref<40x256xf32, #tpu.memory_space<vmem>>, vector<16x256xf32>
    %256 = tpu.concatenate %254, %255 in 0 : vector<16x256xf32>, vector<16x256xf32> -> vector<32x256xf32>
    %c1_135 = arith.constant 1 : index
    %c0_136 = arith.constant 0 : index
    %c0_137 = arith.constant 0 : index
    %257 = vector.load %arg10[%c1_135, %c0_136, %c0_137] : memref<3x256x16xf32, #tpu.memory_space<vmem>>, vector<1x256x16xf32>
    %258 = vector.shape_cast %257 : vector<1x256x16xf32> to vector<256x16xf32>
    %cst_138 = arith.constant dense<0.000000e+00> : vector<32x16xf32>
    %259 = tpu.matmul %256, %258, %cst_138 {dimension_numbers = #tpu.dot_dimension_numbers<[1], [0], [0], [1], [0, 0, 1, 1], [], []>} : vector<32x256xf32>, vector<256x16xf32>, vector<32x16xf32> -> vector<32x16xf32>
    %260 = arith.addf %253, %259 : vector<32x16xf32>
    %c3_139 = arith.constant 3 : index
    %c0_140 = arith.constant 0 : index
    %261 = vector.load %arg13[%c3_139, %c0_140] : memref<40x256xf32, #tpu.memory_space<vmem>>, vector<16x256xf32>
    %c23_141 = arith.constant 23 : index
    %c0_142 = arith.constant 0 : index
    %262 = vector.load %arg13[%c23_141, %c0_142] : memref<40x256xf32, #tpu.memory_space<vmem>>, vector<16x256xf32>
    %263 = tpu.concatenate %261, %262 in 0 : vector<16x256xf32>, vector<16x256xf32> -> vector<32x256xf32>
    %c2_143 = arith.constant 2 : index
    %c0_144 = arith.constant 0 : index
    %c0_145 = arith.constant 0 : index
    %264 = vector.load %arg10[%c2_143, %c0_144, %c0_145] : memref<3x256x16xf32, #tpu.memory_space<vmem>>, vector<1x256x16xf32>
    %265 = vector.shape_cast %264 : vector<1x256x16xf32> to vector<256x16xf32>
    %cst_146 = arith.constant dense<0.000000e+00> : vector<32x16xf32>
    %266 = tpu.matmul %263, %265, %cst_146 {dimension_numbers = #tpu.dot_dimension_numbers<[1], [0], [0], [1], [0, 0, 1, 1], [], []>} : vector<32x256xf32>, vector<256x16xf32>, vector<32x16xf32> -> vector<32x16xf32>
    %267 = arith.addf %260, %266 : vector<32x16xf32>
    %c0_147 = arith.constant 0 : index
    %c0_148 = arith.constant 0 : index
    %268 = vector.load %arg11[%c0_147, %c0_148] : memref<1x16xf32, #tpu.memory_space<vmem>>, vector<1x16xf32>
    %269 = vector.broadcast %268 : vector<1x16xf32> to vector<32x16xf32>
    %270 = arith.addf %267, %269 : vector<32x16xf32>
    %c0_149 = arith.constant 0 : index
    %c0_150 = arith.constant 0 : index
    %271 = vector.load %arg12[%c0_149, %c0_150] : memref<32x16xf32, #tpu.memory_space<vmem>>, vector<32x16xf32>
    tpu.vector_store %arg12[%c0_149, %c0_150], %270 {strides = array<i32>} : memref<32x16xf32, #tpu.memory_space<vmem>>, vector<32x16xf32>,
    return
  }
}

</mosaic_0001>

<llo_original>
// kernel: tpu_custom_call.1
$region0: #{tpu_custom_call.1}
  #allocation0 [shape = 'u32[]', space=smem, size = 0x4, offset = 0x4, fixed_abs, tag = 'smem constant byte address 0x4 - core index']
  #allocation1 [shape = 'u32[144,128]{1,0:T(1,128)}', space=vmem, size = 0x12000, scoped, tag = 'internal scratch']
  #allocation2 [shape = 'f32[40,256]{1,0:T(8,128)}', space=vmem, size = 0xa000, scoped, tag = 'scratch operand']
  %s0 = inlined_call_operand.vmem [shape: f32[32,16], index: 0, kind: input, shape index: {}]
  %s1 = inlined_call_operand.hbm [shape: f32[2,16,256], index: 1, kind: input, shape index: {}]
  %s2 = inlined_call_operand.hbm [shape: f32[1,16], index: 2, kind: input, shape index: {}]
  %s3 = inlined_call_operand.hbm [shape: f32[1,16], index: 3, kind: input, shape index: {}]
  %s4 = inlined_call_operand.hbm [shape: f32[3,256,256], index: 4, kind: input, shape index: {}]
  %s5 = inlined_call_operand.hbm [shape: f32[1,16], index: 5, kind: input, shape index: {}]
  %s6 = inlined_call_operand.hbm [shape: f32[1,16], index: 6, kind: input, shape index: {}]
  %s7 = inlined_call_operand.hbm [shape: f32[5,256,256], index: 7, kind: input, shape index: {}]
  %s8 = inlined_call_operand.hbm [shape: f32[1,16], index: 8, kind: input, shape index: {}]
  %s9 = inlined_call_operand.hbm [shape: f32[1,16], index: 9, kind: input, shape index: {}]
  %s10 = inlined_call_operand.vmem [shape: f32[3,256,16], index: 10, kind: input, shape index: {}]
  %s11 = inlined_call_operand.hbm [shape: f32[1,16], index: 11, kind: input, shape index: {}]
  %s12 = inlined_call_operand.vmem [shape: f32[32,16], index: 12, kind: output, shape index: {}]
  %s13 = sld [smem:[#allocation0]]
  $region98: #{tpu_custom_call.1} parent=0
    _
  %s15 = ssub.s32 1, %s13
  %s16 = scalar_select 0, %s15, %s13
  $region1: #{tpu_custom_call.1} parent=0
    #allocation3 [shape = 'u8[32768]{0}', space=vmem, size = 0x8000, scoped, tag = 'input window, operand 1, single buffered']
    #allocation4 [shape = 's32[1]{0}', space=sflag, size = 0x4, scoped, tag = 'scoped memory for tpu_custom_call.1']
    #allocation5 [shape = 'u8[512]{0}', space=vmem, size = 0x400, scoped, tag = 'input window, operand 2, single buffered']
    #allocation6 [shape = 's32[1]{0}', space=sflag, size = 0x4, scoped, tag = 'scoped memory for tpu_custom_call.1']
    #allocation7 [shape = 'u8[512]{0}', space=vmem, size = 0x400, scoped, tag = 'input window, operand 3, single buffered']
    #allocation8 [shape = 'u8[786432]{0}', space=vmem, size = 0xc0000, scoped, tag = 'input window, operand 4, single buffered']
    #allocation9 [shape = 's32[1]{0}', space=sflag, size = 0x4, scoped, tag = 'scoped memory for tpu_custom_call.1']
    #allocation10 [shape = 'u8[512]{0}', space=vmem, size = 0x400, scoped, tag = 'input window, operand 5, single buffered']
    #allocation11 [shape = 'u8[512]{0}', space=vmem, size = 0x400, scoped, tag = 'input window, operand 6, single buffered']
    #allocation12 [shape = 's32[1]{0}', space=sflag, size = 0x4, scoped, tag = 'scoped memory for tpu_custom_call.1']
    #allocation13 [shape = 'u8[1310720]{0}', space=vmem, size = 0x140000, scoped, tag = 'input window, operand 7, single buffered']
    #allocation14 [shape = 'u8[512]{0}', space=vmem, size = 0x400, scoped, tag = 'input window, operand 8, single buffered']
    #allocation15 [shape = 's32[1]{0}', space=sflag, size = 0x4, scoped, tag = 'scoped memory for tpu_custom_call.1']
    #allocation16 [shape = 'u8[512]{0}', space=vmem, size = 0x400, scoped, tag = 'input window, operand 9, single buffered']
    #allocation17 [shape = 'u8[512]{0}', space=vmem, size = 0x400, scoped, tag = 'input window, operand 11, single buffered']
    #allocation18 [shape = 's32[1]{0}', space=sflag, size = 0x4, scoped, tag = 'scoped memory for tpu_custom_call.1']
    %17 = vsyncpa [#allocation4], 0
    %18 = vsyncpa [#allocation6], 0
    %19 = vsyncpa [#allocation9], 0
    %20 = vsyncpa [#allocation12], 0
    %21 = vsyncpa [#allocation15], 0
    %22 = vsyncpa [#allocation18], 0
    // Predicated region
    $region2: #{tpu_custom_call.1} parent=1 // pred_check
      _
    $region3: #{tpu_custom_call.1} parent=1 // pred_check_branch
      %24 = sbr.rel (0) target = $region5
    $region4: #{tpu_custom_call.1} parent=1 // pred_region
      _
    $region5: #{tpu_custom_call.1} parent=1 // pred_fallthru
      _
    // Predicated region
    $region6: #{tpu_custom_call.1} parent=1 // pred_check
      _
    $region7: #{tpu_custom_call.1} parent=1 // pred_check_branch
      %26 = sbr.rel (0) target = $region9
    $region8: #{tpu_custom_call.1} parent=1 // pred_region
      %s28 = ssub.s32 1024, 1024
      %29 = vsyncadd [#allocation4], %s28
      %s30 = sshll.u32 [#allocation3], 4
      %s31 = int_to_ptr.vmem [resolvable:$true] %s30
      %36 = dma.hbm_to_vmem [thread:$0]  %s1, 1024, %s31, [#allocation4], 256, 256, 16
    $region9: #{tpu_custom_call.1} parent=1 // pred_fallthru
      _
    // Predicated region
    $region10: #{tpu_custom_call.1} parent=1 // pred_check
      _
    $region11: #{tpu_custom_call.1} parent=1 // pred_check_branch
      %38 = sbr.rel (0) target = $region13
    $region12: #{tpu_custom_call.1} parent=1 // pred_region
      %s40 = ssub.s32 16, 16
      %41 = vsyncadd [#allocation6], %s40
      %s43 = sshll.u32 [#allocation5], 4
      %s44 = int_to_ptr.vmem [resolvable:$true] %s43
      %46 = dma.hbm_to_vmem [thread:$0]  %s2, 16, %s44, [#allocation6]
    $region13: #{tpu_custom_call.1} parent=1 // pred_fallthru
      _
    // Predicated region
    $region14: #{tpu_custom_call.1} parent=1 // pred_check
      _
    $region15: #{tpu_custom_call.1} parent=1 // pred_check_branch
      %48 = sbr.rel (0) target = $region17
    $region16: #{tpu_custom_call.1} parent=1 // pred_region
      %s50 = ssub.s32 16, 16
      %51 = vsyncadd [#allocation6], %s50
      %s53 = sshll.u32 [#allocation7], 4
      %s54 = int_to_ptr.vmem [resolvable:$true] %s53
      %56 = dma.hbm_to_vmem [thread:$0]  %s3, 16, %s54, [#allocation6]
    $region17: #{tpu_custom_call.1} parent=1 // pred_fallthru
      _
    // Predicated region
    $region18: #{tpu_custom_call.1} parent=1 // pred_check
      _
    $region19: #{tpu_custom_call.1} parent=1 // pred_check_branch
      %58 = sbr.rel (0) target = $region21
    $region20: #{tpu_custom_call.1} parent=1 // pred_region
      %s60 = ssub.s32 24576, 24576
      %61 = vsyncadd [#allocation9], %s60
      %s62 = sshll.u32 [#allocation8], 4
      %s63 = int_to_ptr.vmem [resolvable:$true] %s62
      %68 = dma.hbm_to_vmem [thread:$0]  %s4, 24576, %s63, [#allocation9], 256, 256, 16
    $region21: #{tpu_custom_call.1} parent=1 // pred_fallthru
      _
    // Predicated region
    $region22: #{tpu_custom_call.1} parent=1 // pred_check
      _
    $region23: #{tpu_custom_call.1} parent=1 // pred_check_branch
      %70 = sbr.rel (0) target = $region25
    $region24: #{tpu_custom_call.1} parent=1 // pred_region
      %s72 = ssub.s32 16, 16
      %73 = vsyncadd [#allocation9], %s72
      %s75 = sshll.u32 [#allocation10], 4
      %s76 = int_to_ptr.vmem [resolvable:$true] %s75
      %78 = dma.hbm_to_vmem [thread:$0]  %s5, 16, %s76, [#allocation9]
    $region25: #{tpu_custom_call.1} parent=1 // pred_fallthru
      _
    // Predicated region
    $region26: #{tpu_custom_call.1} parent=1 // pred_check
      _
    $region27: #{tpu_custom_call.1} parent=1 // pred_check_branch
      %80 = sbr.rel (0) target = $region29
    $region28: #{tpu_custom_call.1} parent=1 // pred_region
      %s82 = ssub.s32 16, 16
      %83 = vsyncadd [#allocation12], %s82
      %s85 = sshll.u32 [#allocation11], 4
      %s86 = int_to_ptr.vmem [resolvable:$true] %s85
      %88 = dma.hbm_to_vmem [thread:$0]  %s6, 16, %s86, [#allocation12]
    $region29: #{tpu_custom_call.1} parent=1 // pred_fallthru
      _
    // Predicated region
    $region30: #{tpu_custom_call.1} parent=1 // pred_check
      _
    $region31: #{tpu_custom_call.1} parent=1 // pred_check_branch
      %90 = sbr.rel (0) target = $region33
    $region32: #{tpu_custom_call.1} parent=1 // pred_region
      %s92 = ssub.s32 40960, 40960
      %93 = vsyncadd [#allocation12], %s92
      %s94 = sshll.u32 [#allocation13], 4
      %s95 = int_to_ptr.vmem [resolvable:$true] %s94
      %100 = dma.hbm_to_vmem [thread:$0]  %s7, 40960, %s95, [#allocation12], 256, 256, 16
    $region33: #{tpu_custom_call.1} parent=1 // pred_fallthru
      _
    // Predicated region
    $region34: #{tpu_custom_call.1} parent=1 // pred_check
      _
    $region35: #{tpu_custom_call.1} parent=1 // pred_check_branch
      %102 = sbr.rel (0) target = $region37
    $region36: #{tpu_custom_call.1} parent=1 // pred_region
      %s104 = ssub.s32 16, 16
      %105 = vsyncadd [#allocation15], %s104
      %s107 = sshll.u32 [#allocation14], 4
      %s108 = int_to_ptr.vmem [resolvable:$true] %s107
      %110 = dma.hbm_to_vmem [thread:$0]  %s8, 16, %s108, [#allocation15]
    $region37: #{tpu_custom_call.1} parent=1 // pred_fallthru
      _
    // Predicated region
    $region38: #{tpu_custom_call.1} parent=1 // pred_check
      _
    $region39: #{tpu_custom_call.1} parent=1 // pred_check_branch
      %112 = sbr.rel (0) target = $region41
    $region40: #{tpu_custom_call.1} parent=1 // pred_region
      %s114 = ssub.s32 16, 16
      %115 = vsyncadd [#allocation15], %s114
      %s117 = sshll.u32 [#allocation16], 4
      %s118 = int_to_ptr.vmem [resolvable:$true] %s117
      %120 = dma.hbm_to_vmem [thread:$0]  %s9, 16, %s118, [#allocation15]
    $region41: #{tpu_custom_call.1} parent=1 // pred_fallthru
      _
    // Predicated region
    $region42: #{tpu_custom_call.1} parent=1 // pred_check
      _
    $region43: #{tpu_custom_call.1} parent=1 // pred_check_branch
      %122 = sbr.rel (0) target = $region45
    $region44: #{tpu_custom_call.1} parent=1 // pred_region
      _
    $region45: #{tpu_custom_call.1} parent=1 // pred_fallthru
      _
    // Predicated region
    $region46: #{tpu_custom_call.1} parent=1 // pred_check
      _
    $region47: #{tpu_custom_call.1} parent=1 // pred_check_branch
      %124 = sbr.rel (0) target = $region49
    $region48: #{tpu_custom_call.1} parent=1 // pred_region
      %s126 = ssub.s32 16, 16
      %127 = vsyncadd [#allocation18], %s126
      %s129 = sshll.u32 [#allocation17], 4
      %s130 = int_to_ptr.vmem [resolvable:$true] %s129
      %132 = dma.hbm_to_vmem [thread:$0]  %s11, 16, %s130, [#allocation18]
    $region49: #{tpu_custom_call.1} parent=1 // pred_fallthru
      _
    // Predicated region
    $region50: #{tpu_custom_call.1} parent=1 // pred_check
      _
    $region51: #{tpu_custom_call.1} parent=1 // pred_check_branch
      %134 = sbr.rel (0) target = $region53
    $region52: #{tpu_custom_call.1} parent=1 // pred_region
      %135 = dma.done [#allocation4], 1024
    $region53: #{tpu_custom_call.1} parent=1 // pred_fallthru
      _
    // Predicated region
    $region54: #{tpu_custom_call.1} parent=1 // pred_check
      _
    $region55: #{tpu_custom_call.1} parent=1 // pred_check_branch
      %137 = sbr.rel (0) target = $region57
    $region56: #{tpu_custom_call.1} parent=1 // pred_region
      %138 = dma.done [#allocation6], 16
    $region57: #{tpu_custom_call.1} parent=1 // pred_fallthru
      _
    // Predicated region
    $region58: #{tpu_custom_call.1} parent=1 // pred_check
      _
    $region59: #{tpu_custom_call.1} parent=1 // pred_check_branch
      %140 = sbr.rel (0) target = $region61
    $region60: #{tpu_custom_call.1} parent=1 // pred_region
      %141 = dma.done [#allocation6], 16
    $region61: #{tpu_custom_call.1} parent=1 // pred_fallthru
      _
    // Predicated region
    $region62: #{tpu_custom_call.1} parent=1 // pred_check
      _
    $region63: #{tpu_custom_call.1} parent=1 // pred_check_branch
      %143 = sbr.rel (0) target = $region65
    $region64: #{tpu_custom_call.1} parent=1 // pred_region
      %144 = dma.done [#allocation9], 24576
    $region65: #{tpu_custom_call.1} parent=1 // pred_fallthru
      _
    // Predicated region
    $region66: #{tpu_custom_call.1} parent=1 // pred_check
      _
    $region67: #{tpu_custom_call.1} parent=1 // pred_check_branch
      %146 = sbr.rel (0) target = $region69
    $region68: #{tpu_custom_call.1} parent=1 // pred_region
      %147 = dma.done [#allocation9], 16
    $region69: #{tpu_custom_call.1} parent=1 // pred_fallthru
      _
    // Predicated region
    $region70: #{tpu_custom_call.1} parent=1 // pred_check
      _
    $region71: #{tpu_custom_call.1} parent=1 // pred_check_branch
      %149 = sbr.rel (0) target = $region73
    $region72: #{tpu_custom_call.1} parent=1 // pred_region
      %150 = dma.done [#allocation12], 16
    $region73: #{tpu_custom_call.1} parent=1 // pred_fallthru
      _
    // Predicated region
    $region74: #{tpu_custom_call.1} parent=1 // pred_check
      _
    $region75: #{tpu_custom_call.1} parent=1 // pred_check_branch
      %152 = sbr.rel (0) target = $region77
    $region76: #{tpu_custom_call.1} parent=1 // pred_region
      %153 = dma.done [#allocation12], 40960
    $region77: #{tpu_custom_call.1} parent=1 // pred_fallthru
      _
    // Predicated region
    $region78: #{tpu_custom_call.1} parent=1 // pred_check
      _
    $region79: #{tpu_custom_call.1} parent=1 // pred_check_branch
      %155 = sbr.rel (0) target = $region81
    $region80: #{tpu_custom_call.1} parent=1 // pred_region
      %156 = dma.done [#allocation15], 16
    $region81: #{tpu_custom_call.1} parent=1 // pred_fallthru
      _
    // Predicated region
    $region82: #{tpu_custom_call.1} parent=1 // pred_check
      _
    $region83: #{tpu_custom_call.1} parent=1 // pred_check_branch
      %158 = sbr.rel (0) target = $region85
    $region84: #{tpu_custom_call.1} parent=1 // pred_region
      %159 = dma.done [#allocation15], 16
    $region85: #{tpu_custom_call.1} parent=1 // pred_fallthru
      _
    // Predicated region
    $region86: #{tpu_custom_call.1} parent=1 // pred_check
      _
    $region87: #{tpu_custom_call.1} parent=1 // pred_check_branch
      %161 = sbr.rel (0) target = $region89
    $region88: #{tpu_custom_call.1} parent=1 // pred_region
      %162 = dma.done [#allocation18], 16
    $region89: #{tpu_custom_call.1} parent=1 // pred_fallthru
      _
    %163 = vst [vmem:[#allocation2] sm:$0xff] 0.0
    %164 = vst [vmem:[#allocation2 + $0x8] sm:$0xff] 0.0
    %165 = vst [vmem:[#allocation2 + $0x10] sm:$0xff] 0.0
    %166 = vst [vmem:[#allocation2 + $0x18] sm:$0xff] 0.0
    %167 = vst [vmem:[#allocation2 + $0x20] sm:$0xff] 0.0
    %168 = vst [vmem:[#allocation2 + $0x28] sm:$0xff] 0.0
    %169 = vst [vmem:[#allocation2 + $0x30] sm:$0xff] 0.0
    %170 = vst [vmem:[#allocation2 + $0x38] sm:$0xff] 0.0
    %171 = vst [vmem:[#allocation2 + $0x40] sm:$0xff] 0.0
    %172 = vst [vmem:[#allocation2 + $0x48] sm:$0xff] 0.0
    %v173 = vld [vmem:[%s0] sm:$0xff]
    %v174 = vld [vmem:[%s0 + $0x8] sm:$0xff]
    %v175 = vld [vmem:[%s0 + $0x10] sm:$0xff]
    %v176 = vld [vmem:[%s0 + $0x18] sm:$0xff]
    %vm179 = vcmask 1041408
    %v180 = vrot.slane %v173, 6
    %v181 = vrot.slane %v174, 6
    %v182 = vsel %vm179, %v180, %v181
    %vm186 = vcmask 130050
    %187 = vst.msk [vmem:[#allocation2] sm:$0xfc] %vm186, %v180
    %vm188 = vcmask 130048
    %189 = vst.msk [vmem:[#allocation2 + $0x10] sm:$0xff] %vm188, %v182
    %vm190 = vcmask 123904
    %191 = vst.msk [vmem:[#allocation2 + $0x20] sm:$0x3] %vm190, %v181
    %vm194 = vcmask 1045504
    %v195 = vrot.slane %v175, 2
    %v196 = vrot.slane %v176, 2
    %v197 = vsel %vm194, %v195, %v196
    %vm201 = vcmask 130054
    %202 = vst.msk [vmem:[#allocation2 + $0x20] sm:$0xc0] %vm201, %v195
    %203 = vst.msk [vmem:[#allocation2 + $0x30] sm:$0xff] %vm188, %v197
    %vm204 = vcmask 128000
    %205 = vst.msk [vmem:[#allocation2 + $0x40] sm:$0x3f] %vm204, %v196
    %v206 = vld [vmem:[#allocation2] sm:$0xfc]
    %v207 = vld [vmem:[#allocation2 + $0x10] sm:$0xff]
    %v208 = vld [vmem:[#allocation2 + $0x20] sm:$0x3]
    %v209 = vld [vmem:[#allocation2 + $0x20] sm:$0xc0]
    %v210 = vld [vmem:[#allocation2 + $0x30] sm:$0xff]
    %v211 = vld [vmem:[#allocation2 + $0x40] sm:$0x3f]
    %v215 = vrot.slane %v206, 2
    %v216 = vrot.slane %v207, 2
    %v217 = vsel %vm194, %v215, %v216
    %v218 = vrot.slane %v208, 2
    %v219 = vsel %vm194, %v216, %v218
    %v223 = vrot.slane %v209, 6
    %v224 = vrot.slane %v210, 6
    %v225 = vsel %vm179, %v223, %v224
    %v226 = vrot.slane %v211, 6
    %v227 = vsel %vm179, %v224, %v226
    %v228 = vld [vmem:[#allocation3] sm:$0xff]
    %v229 = vld [vmem:[#allocation3 + $0x8] sm:$0xff]
    %v230 = vld [vmem:[#allocation3 + $0x10] sm:$0xff]
    %v231 = vld [vmem:[#allocation3 + $0x18] sm:$0xff]
    %v232 = vld [vmem:[#allocation2] sm:$0xf8]
    %v233 = vld [vmem:[#allocation2 + $0x20] sm:$0x7]
    %v234 = vld [vmem:[#allocation2 + $0x20] sm:$0x80]
    %v235 = vld [vmem:[#allocation2 + $0x40] sm:$0x7f]
    %vm238 = vcmask 1044480
    %v239 = vrot.slane %v232, 3
    %v240 = vrot.slane %v207, 3
    %v241 = vsel %vm238, %v239, %v240
    %v242 = vrot.slane %v233, 3
    %v243 = vsel %vm238, %v240, %v242
    %vm246 = vcmask 1040384
    %v247 = vrot.slane %v234, 7
    %v248 = vrot.slane %v210, 7
    %v249 = vsel %vm246, %v247, %v248
    %v250 = vrot.slane %v235, 7
    %v251 = vsel %vm246, %v248, %v250
    %s252 = scalar_lea.vmem [#allocation3], 32
    %v253 = vld [vmem:[%s252] sm:$0xff]
    %v254 = vld [vmem:[%s252 + $0x8] sm:$0xff]
    %v255 = vld [vmem:[%s252 + $0x10] sm:$0xff]
    %v256 = vld [vmem:[%s252 + $0x18] sm:$0xff]
    %v257 = vsel %vm188, %v241, 0
    %v259 = vsel %vm188, %v243, 0
    %v261 = vsel %vm188, %v249, 0
    %v263 = vsel %vm188, %v251, 0
    %265 = vmatprep.subr.mxu0 %v254
    %266 = vmatpush1.msra.mxu0 %v253
    %267 = vmatprep.subr.mxu0 %v256
    %268 = vmatpush1.msra.mxu0 %v255
    %269 = vmatprep.subr.mxu0 0.0
    %270 = vmatpush1.msra.mxu0 0.0
    %271 = vmatprep.subr.mxu0 0.0
    %272 = vmatpush1.msra.mxu0 0.0
    %273 = vmatprep.subr.mxu0 0.0
    %274 = vmatpush1.msra.mxu0 0.0
    %275 = vmatprep.subr.mxu0 0.0
    %276 = vmatpush1.msra.mxu0 0.0
    %277 = vmatprep.subr.mxu0 0.0
    %278 = vmatpush1.msra.mxu0 0.0
    %279 = vmatprep.subr.mxu0 0.0
    %280 = vmatpush1.msra.mxu0 0.0
    %281 = vmatprep.subr.mxu0 0.0
    %282 = vmatpush1.msra.mxu0 0.0
    %283 = vmatprep.subr.mxu0 0.0
    %284 = vmatpush1.msra.mxu0 0.0
    %285 = vmatprep.subr.mxu0 0.0
    %286 = vmatpush1.msra.mxu0 0.0
    %287 = vmatprep.subr.mxu0 0.0
    %288 = vmatpush1.msra.mxu0 0.0
    %289 = vmatprep.subr.mxu0 0.0
    %290 = vmatpush1.msra.mxu0 0.0
    %291 = vmatprep.subr.mxu0 0.0
    %292 = vmatpush1.msra.mxu0 0.0
    %293 = vmatprep.subr.mxu0 0.0
    %294 = vmatpush1.msra.mxu0 0.0
    %295 = vmatprep.subr.mxu0 0.0
    %296 = vmatpush1.msra.mxu0 0.0
    %297 = vmatprep.subr.mxu0 0.0
    %298 = vmatpush1.msra.mxu0 0.0
    %299 = vmatprep.subr.mxu0 0.0
    %300 = vmatpush1.msra.mxu0 0.0
    %301 = vmatprep.subr.mxu0 0.0
    %302 = vmatpush1.msra.mxu0 0.0
    %303 = vmatprep.subr.mxu0 0.0
    %304 = vmatpush1.msra.mxu0 0.0
    %305 = vmatprep.subr.mxu0 0.0
    %306 = vmatpush1.msra.mxu0 0.0
    %307 = vmatprep.subr.mxu0 0.0
    %308 = vmatpush1.msra.mxu0 0.0
    %309 = vmatprep.subr.mxu0 0.0
    %310 = vmatpush1.msra.mxu0 0.0
    %311 = vmatprep.subr.mxu0 0.0
    %312 = vmatpush1.msra.mxu0 0.0
    %313 = vmatprep.subr.mxu0 0.0
    %314 = vmatpush1.msra.mxu0 0.0
    %315 = vmatprep.subr.mxu0 0.0
    %316 = vmatpush1.msra.mxu0 0.0
    %317 = vmatprep.subr.mxu0 0.0
    %318 = vmatpush1.msra.mxu0 0.0
    %319 = vmatprep.subr.mxu0 0.0
    %320 = vmatpush1.msra.mxu0 0.0
    %321 = vmatprep.subr.mxu0 0.0
    %322 = vmatpush1.msra.mxu0 0.0
    %323 = vmatprep.subr.mxu0 0.0
    %324 = vmatpush1.msra.mxu0 0.0
    %325 = vmatprep.subr.mxu0 0.0
    %326 = vmatpush1.msra.mxu0 0.0
    %327 = vmatprep.subr.mxu0 0.0
    %328 = vmatpush1.msra.mxu0 0.0
    %329 = vmatprep.mubr.f32.mxu0 0.0
    %330 = vmatmul.mubr.f32.gmra.mrb[0].mxu0 %v257
    %v331 = vpop.f32.mrb[0].mxu0
    %v332 = vadd.f32 0.0, %v331
    %v333 = vpop.f32.mrb[0].mxu0
    %v334 = vadd.f32 0.0, %v333
    %335 = vmatprep.mubr.f32.mxu0 0.0
    %336 = vmatmul.mubr.f32.gmra.mrb[0].mxu0 %v259
    %v337 = vpop.f32.mrb[0].mxu0
    %v338 = vadd.f32 0.0, %v337
    %v339 = vpop.f32.mrb[0].mxu0
    %v340 = vadd.f32 0.0, %v339
    %341 = vmatprep.mubr.f32.mxu0 0.0
    %342 = vmatmul.mubr.f32.gmra.mrb[0].mxu0 %v261
    %v343 = vpop.f32.mrb[0].mxu0
    %v344 = vadd.f32 0.0, %v343
    %v345 = vpop.f32.mrb[0].mxu0
    %v346 = vadd.f32 0.0, %v345
    %347 = vmatprep.mubr.f32.mxu0 0.0
    %348 = vmatmul.mubr.f32.gmra.mrb[0].mxu0 %v263
    %v349 = vpop.f32.mrb[0].mxu0
    %v350 = vadd.f32 0.0, %v349
    %v351 = vpop.f32.mrb[0].mxu0
    %v352 = vadd.f32 0.0, %v351
    %353 = vdwg.mxu0
    %v354 = vsel %vm188, %v217, 0
    %v356 = vsel %vm188, %v219, 0
    %v358 = vsel %vm188, %v225, 0
    %v360 = vsel %vm188, %v227, 0
    %362 = vmatprep.subr.mxu0 %v229
    %363 = vmatpush1.msra.mxu0 %v228
    %364 = vmatprep.subr.mxu0 %v231
    %365 = vmatpush1.msra.mxu0 %v230
    %366 = vmatprep.subr.mxu0 0.0
    %367 = vmatpush1.msra.mxu0 0.0
    %368 = vmatprep.subr.mxu0 0.0
    %369 = vmatpush1.msra.mxu0 0.0
    %370 = vmatprep.subr.mxu0 0.0
    %371 = vmatpush1.msra.mxu0 0.0
    %372 = vmatprep.subr.mxu0 0.0
    %373 = vmatpush1.msra.mxu0 0.0
    %374 = vmatprep.subr.mxu0 0.0
    %375 = vmatpush1.msra.mxu0 0.0
    %376 = vmatprep.subr.mxu0 0.0
    %377 = vmatpush1.msra.mxu0 0.0
    %378 = vmatprep.subr.mxu0 0.0
    %379 = vmatpush1.msra.mxu0 0.0
    %380 = vmatprep.subr.mxu0 0.0
    %381 = vmatpush1.msra.mxu0 0.0
    %382 = vmatprep.subr.mxu0 0.0
    %383 = vmatpush1.msra.mxu0 0.0
    %384 = vmatprep.subr.mxu0 0.0
    %385 = vmatpush1.msra.mxu0 0.0
    %386 = vmatprep.subr.mxu0 0.0
    %387 = vmatpush1.msra.mxu0 0.0
    %388 = vmatprep.subr.mxu0 0.0
    %389 = vmatpush1.msra.mxu0 0.0
    %390 = vmatprep.subr.mxu0 0.0
    %391 = vmatpush1.msra.mxu0 0.0
    %392 = vmatprep.subr.mxu0 0.0
    %393 = vmatpush1.msra.mxu0 0.0
    %394 = vmatprep.subr.mxu0 0.0
    %395 = vmatpush1.msra.mxu0 0.0
    %396 = vmatprep.subr.mxu0 0.0
    %397 = vmatpush1.msra.mxu0 0.0
    %398 = vmatprep.subr.mxu0 0.0
    %399 = vmatpush1.msra.mxu0 0.0
    %400 = vmatprep.subr.mxu0 0.0
    %401 = vmatpush1.msra.mxu0 0.0
    %402 = vmatprep.subr.mxu0 0.0
    %403 = vmatpush1.msra.mxu0 0.0
    %404 = vmatprep.subr.mxu0 0.0
    %405 = vmatpush1.msra.mxu0 0.0
    %406 = vmatprep.subr.mxu0 0.0
    %407 = vmatpush1.msra.mxu0 0.0
    %408 = vmatprep.subr.mxu0 0.0
    %409 = vmatpush1.msra.mxu0 0.0
    %410 = vmatprep.subr.mxu0 0.0
    %411 = vmatpush1.msra.mxu0 0.0
    %412 = vmatprep.subr.mxu0 0.0
    %413 = vmatpush1.msra.mxu0 0.0
    %414 = vmatprep.subr.mxu0 0.0
    %415 = vmatpush1.msra.mxu0 0.0
    %416 = vmatprep.subr.mxu0 0.0
    %417 = vmatpush1.msra.mxu0 0.0
    %418 = vmatprep.subr.mxu0 0.0
    %419 = vmatpush1.msra.mxu0 0.0
    %420 = vmatprep.subr.mxu0 0.0
    %421 = vmatpush1.msra.mxu0 0.0
    %422 = vmatprep.subr.mxu0 0.0
    %423 = vmatpush1.msra.mxu0 0.0
    %424 = vmatprep.subr.mxu0 0.0
    %425 = vmatpush1.msra.mxu0 0.0
    %426 = vmatprep.mubr.f32.mxu0 0.0
    %427 = vmatmul.mubr.f32.gmra.mrb[0].mxu0 %v354
    %v428 = vpop.f32.mrb[0].mxu0
    %v429 = vadd.f32 %v332, %v428
    %v430 = vpop.f32.mrb[0].mxu0
    %v431 = vadd.f32 %v334, %v430
    %432 = vmatprep.mubr.f32.mxu0 0.0
    %433 = vmatmul.mubr.f32.gmra.mrb[0].mxu0 %v356
    %v434 = vpop.f32.mrb[0].mxu0
    %v435 = vadd.f32 %v338, %v434
    %v436 = vpop.f32.mrb[0].mxu0
    %v437 = vadd.f32 %v340, %v436
    %438 = vmatprep.mubr.f32.mxu0 0.0
    %439 = vmatmul.mubr.f32.gmra.mrb[0].mxu0 %v358
    %v440 = vpop.f32.mrb[0].mxu0
    %v441 = vadd.f32 %v344, %v440
    %v442 = vpop.f32.mrb[0].mxu0
    %v443 = vadd.f32 %v346, %v442
    %444 = vmatprep.mubr.f32.mxu0 0.0
    %445 = vmatmul.mubr.f32.gmra.mrb[0].mxu0 %v360
    %v446 = vpop.f32.mrb[0].mxu0
    %v447 = vadd.f32 %v350, %v446
    %v448 = vpop.f32.mrb[0].mxu0
    %v449 = vadd.f32 %v352, %v448
    %450 = vdwg.mxu0
    %v451 = vadd.f32 %v429, %v435
    %v452 = vadd.f32 %v451, %v441
    %v453 = vadd.f32 %v452, %v447
    %v454 = vrot.slane %v453, 4
    %v455 = vadd.f32 %v453, %v454
    %v456 = vrot.slane %v455, 2
    %v457 = vadd.f32 %v455, %v456
    %v458 = vrot.slane %v457, 1
    %v459 = vadd.f32 %v457, %v458
    %v460 = vadd.f32 %v431, %v437
    %v461 = vadd.f32 %v460, %v443
    %v462 = vadd.f32 %v461, %v449
    %v463 = vrot.slane %v462, 4
    %v464 = vadd.f32 %v462, %v463
    %v465 = vrot.slane %v464, 2
    %v466 = vadd.f32 %v464, %v465
    %v467 = vrot.slane %v466, 1
    %v468 = vadd.f32 %v466, %v467
    %v469 = vmul.f32 %v429, %v429
    %v470 = vmul.f32 %v431, %v431
    %v471 = vmul.f32 %v435, %v435
    %v472 = vmul.f32 %v437, %v437
    %v473 = vmul.f32 %v441, %v441
    %v474 = vmul.f32 %v443, %v443
    %v475 = vmul.f32 %v447, %v447
    %v476 = vmul.f32 %v449, %v449
    %v477 = vadd.f32 %v469, %v471
    %v478 = vadd.f32 %v477, %v473
    %v479 = vadd.f32 %v478, %v475
    %v480 = vrot.slane %v479, 4
    %v481 = vadd.f32 %v479, %v480
    %v482 = vrot.slane %v481, 2
    %v483 = vadd.f32 %v481, %v482
    %v484 = vrot.slane %v483, 1
    %v485 = vadd.f32 %v483, %v484
    %v486 = vadd.f32 %v470, %v472
    %v487 = vadd.f32 %v486, %v474
    %v488 = vadd.f32 %v487, %v476
    %v489 = vrot.slane %v488, 4
    %v490 = vadd.f32 %v488, %v489
    %v491 = vrot.slane %v490, 2
    %v492 = vadd.f32 %v490, %v491
    %v493 = vrot.slane %v492, 1
    %v494 = vadd.f32 %v492, %v493
    %v495 = vadd.f32 %v459, %v468
    %v496 = vadd.f32 %v485, %v494
    %498 = vrot.lane.b32.xlu0 %v495, 64
    %v499 = vpop.permute.xlu0 %498
    %v501 = vadd.f32 %v495, %v499
    %503 = vrot.lane.b32.xlu0 %v496, 64
    %v504 = vpop.permute.xlu0 %503
    %v506 = vadd.f32 %v496, %v504
    %508 = vrot.lane.b32.xlu0 %v501, 96
    %v509 = vpop.permute.xlu0 %508
    %v511 = vadd.f32 %v501, %v509
    %513 = vrot.lane.b32.xlu0 %v506, 96
    %v514 = vpop.permute.xlu0 %513
    %v516 = vadd.f32 %v506, %v514
    %518 = vrot.lane.b32.xlu0 %v511, 112
    %v519 = vpop.permute.xlu0 %518
    %v521 = vadd.f32 %v511, %v519
    %523 = vrot.lane.b32.xlu0 %v516, 112
    %v524 = vpop.permute.xlu0 %523
    %v526 = vadd.f32 %v516, %v524
    %v527 = vmul.f32 %v521, 0.001953125
    %v528 = vmul.f32 %v526, 0.001953125
    %v529 = vmul.f32 %v527, %v527
    %v530 = vsub.f32 %v528, %v529
    %v531 = vld [vmem:[#allocation5] sm:$0x1]
    %v532 = vadd.f32 %v530, 1e-05
    %v533 = vrsqrt.pop %v532
    %v534 = vmul.f32 %v531, %v533
    %v535 = vld [vmem:[#allocation7] sm:$0x1]
    %v536 = vmul.f32 %v527, %v534
    %v537 = vsub.f32 %v535, %v536
    %v539 = vlaneseq
    %v540 = vshrl.u32 %v539, 7
    %v541 = vsub.s32 0, %v540
    %v542 = vrot.slane %v534, %v541
    %543 = vrot.lane.b32.xlu0 %v542, 16
    %v544 = vpop.permute.xlu0 %543
    %546 = vrot.lane.b32.xlu0 %v542, 32
    %v547 = vpop.permute.xlu0 %546
    %549 = vrot.lane.b32.xlu0 %v542, 48
    %v550 = vpop.permute.xlu0 %549
    %552 = vrot.lane.b32.xlu0 %v542, 64
    %v553 = vpop.permute.xlu0 %552
    %555 = vrot.lane.b32.xlu0 %v542, 80
    %v556 = vpop.permute.xlu0 %555
    %558 = vrot.lane.b32.xlu0 %v542, 96
    %v559 = vpop.permute.xlu0 %558
    %561 = vrot.lane.b32.xlu0 %v542, 112
    %v562 = vpop.permute.xlu0 %561
    %v564 = vsel %vm188, %v534, %v544
    %vm565 = vcmask 261120
    %v566 = vsel %vm565, %v564, %v547
    %vm567 = vcmask 392192
    %v568 = vsel %vm567, %v566, %v550
    %vm569 = vcmask 523264
    %v570 = vsel %vm569, %v568, %v553
    %vm571 = vcmask 654336
    %v572 = vsel %vm571, %v570, %v556
    %vm573 = vcmask 785408
    %v574 = vsel %vm573, %v572, %v559
    %vm575 = vcmask 916480
    %v576 = vsel %vm575, %v574, %v562
    %v578 = vlaneseq
    %v579 = vshrl.u32 %v578, 7
    %v580 = vsub.s32 0, %v579
    %v581 = vrot.slane %v537, %v580
    %582 = vrot.lane.b32.xlu0 %v581, 16
    %v583 = vpop.permute.xlu0 %582
    %585 = vrot.lane.b32.xlu0 %v581, 32
    %v586 = vpop.permute.xlu0 %585
    %588 = vrot.lane.b32.xlu0 %v581, 48
    %v589 = vpop.permute.xlu0 %588
    %591 = vrot.lane.b32.xlu0 %v581, 64
    %v592 = vpop.permute.xlu0 %591
    %594 = vrot.lane.b32.xlu0 %v581, 80
    %v595 = vpop.permute.xlu0 %594
    %597 = vrot.lane.b32.xlu0 %v581, 96
    %v598 = vpop.permute.xlu0 %597
    %600 = vrot.lane.b32.xlu0 %v581, 112
    %v601 = vpop.permute.xlu0 %600
    %v603 = vsel %vm188, %v537, %v583
    %v604 = vsel %vm565, %v603, %v586
    %v605 = vsel %vm567, %v604, %v589
    %v606 = vsel %vm569, %v605, %v592
    %v607 = vsel %vm571, %v606, %v595
    %v608 = vsel %vm573, %v607, %v598
    %v609 = vsel %vm575, %v608, %v601
    %v610 = vlaneseq
    %v611 = vshrl.u32 %v610, 7
    %v612 = vsub.s32 0, %v611
    %v613 = vrot.slane %v576, %v612
    %v614 = vmul.f32 %v429, %v613
    %v615 = vmul.f32 %v431, %v613
    %v616 = vmul.f32 %v435, %v613
    %v617 = vmul.f32 %v437, %v613
    %v618 = vmul.f32 %v441, %v613
    %v619 = vmul.f32 %v443, %v613
    %v620 = vmul.f32 %v447, %v613
    %v621 = vmul.f32 %v449, %v613
    %v622 = vlaneseq
    %v623 = vshrl.u32 %v622, 7
    %v624 = vsub.s32 0, %v623
    %v625 = vrot.slane %v609, %v624
    %v626 = vadd.f32 %v614, %v625
    %v627 = vadd.f32 %v615, %v625
    %v628 = vadd.f32 %v616, %v625
    %v629 = vadd.f32 %v617, %v625
    %v630 = vadd.f32 %v618, %v625
    %v631 = vadd.f32 %v619, %v625
    %v632 = vadd.f32 %v620, %v625
    %v633 = vadd.f32 %v621, %v625
    %vm634 = vcmp.gt.f32.partialorder %v626, 0.0
    %vm635 = vcmp.gt.f32.partialorder %v627, 0.0
    %vm636 = vcmp.gt.f32.partialorder %v628, 0.0
    %vm637 = vcmp.gt.f32.partialorder %v629, 0.0
    %vm638 = vcmp.gt.f32.partialorder %v630, 0.0
    %vm639 = vcmp.gt.f32.partialorder %v631, 0.0
    %vm640 = vcmp.gt.f32.partialorder %v632, 0.0
    %vm641 = vcmp.gt.f32.partialorder %v633, 0.0
    %v642 = vmul.f32 %v626, 0.01
    %v643 = vmul.f32 %v627, 0.01
    %v644 = vmul.f32 %v628, 0.01
    %v645 = vmul.f32 %v629, 0.01
    %v646 = vmul.f32 %v630, 0.01
    %v647 = vmul.f32 %v631, 0.01
    %v648 = vmul.f32 %v632, 0.01
    %v649 = vmul.f32 %v633, 0.01
    %v650 = vsel %vm634, %v626, %v642
    %v651 = vsel %vm635, %v627, %v643
    %v652 = vsel %vm636, %v628, %v644
    %v653 = vsel %vm637, %v629, %v645
    %v654 = vsel %vm638, %v630, %v646
    %v655 = vsel %vm639, %v631, %v647
    %v656 = vsel %vm640, %v632, %v648
    %v657 = vsel %vm641, %v633, %v649
    %v662 = vrot.slane %v650, 6
    %v663 = vrot.slane %v651, 6
    %v664 = vrot.slane %v652, 6
    %v665 = vsel %vm179, %v662, %v664
    %v666 = vrot.slane %v653, 6
    %v667 = vsel %vm179, %v663, %v666
    %674 = vst [vmem:[#allocation2] sm:$0xfc] %v662
    %675 = vst [vmem:[#allocation2 + $0x8] sm:$0xfc] %v663
    %676 = vst [vmem:[#allocation2 + $0x10] sm:$0xff] %v665
    %677 = vst [vmem:[#allocation2 + $0x18] sm:$0xff] %v667
    %678 = vst [vmem:[#allocation2 + $0x20] sm:$0x3] %v664
    %679 = vst [vmem:[#allocation2 + $0x28] sm:$0x3] %v666
    %v684 = vrot.slane %v654, 2
    %v685 = vrot.slane %v655, 2
    %v686 = vrot.slane %v656, 2
    %v687 = vsel %vm194, %v684, %v686
    %v688 = vrot.slane %v657, 2
    %v689 = vsel %vm194, %v685, %v688
    %696 = vst [vmem:[#allocation2 + $0x20] sm:$0xc0] %v684
    %697 = vst [vmem:[#allocation2 + $0x28] sm:$0xc0] %v685
    %698 = vst [vmem:[#allocation2 + $0x30] sm:$0xff] %v687
    %699 = vst [vmem:[#allocation2 + $0x38] sm:$0xff] %v689
    %700 = vst [vmem:[#allocation2 + $0x40] sm:$0x3f] %v686
    %701 = vst [vmem:[#allocation2 + $0x48] sm:$0x3f] %v688
    %v702 = vld [vmem:[#allocation2] sm:$0xfe]
    %v703 = vld [vmem:[#allocation2 + $0x8] sm:$0xfe]
    %v704 = vld [vmem:[#allocation2 + $0x10] sm:$0xff]
    %v705 = vld [vmem:[#allocation2 + $0x18] sm:$0xff]
    %v706 = vld [vmem:[#allocation2 + $0x20] sm:$0x1]
    %v707 = vld [vmem:[#allocation2 + $0x28] sm:$0x1]
    %v708 = vld [vmem:[#allocation2 + $0x20] sm:$0xe0]
    %v709 = vld [vmem:[#allocation2 + $0x28] sm:$0xe0]
    %v710 = vld [vmem:[#allocation2 + $0x30] sm:$0xff]
    %v711 = vld [vmem:[#allocation2 + $0x38] sm:$0xff]
    %v712 = vld [vmem:[#allocation2 + $0x40] sm:$0x1f]
    %v713 = vld [vmem:[#allocation2 + $0x48] sm:$0x1f]
    %vm720 = vcmask 1046528
    %v721 = vrot.slane %v702, 1
    %v722 = vrot.slane %v704, 1
    %v723 = vsel %vm720, %v721, %v722
    %v724 = vrot.slane %v703, 1
    %v725 = vrot.slane %v705, 1
    %v726 = vsel %vm720, %v724, %v725
    %v727 = vrot.slane %v706, 1
    %v728 = vsel %vm720, %v722, %v727
    %v729 = vrot.slane %v707, 1
    %v730 = vsel %vm720, %v725, %v729
    %vm741 = vcmask 1042432
    %v742 = vrot.slane %v708, 5
    %v743 = vrot.slane %v710, 5
    %v744 = vsel %vm741, %v742, %v743
    %v745 = vrot.slane %v709, 5
    %v746 = vrot.slane %v711, 5
    %v747 = vsel %vm741, %v745, %v746
    %v748 = vrot.slane %v712, 5
    %v749 = vsel %vm741, %v743, %v748
    %v750 = vrot.slane %v713, 5
    %v751 = vsel %vm741, %v746, %v750
    %v756 = vld [vmem:[#allocation8] sm:$0xff]
    %v757 = vld [vmem:[#allocation8 + $0x8] sm:$0xff]
    %v758 = vld [vmem:[#allocation8 + $0x10] sm:$0xff]
    %v759 = vld [vmem:[#allocation8 + $0x18] sm:$0xff]
    %v760 = vld [vmem:[#allocation8 + $0x20] sm:$0xff]
    %v761 = vld [vmem:[#allocation8 + $0x28] sm:$0xff]
    %v762 = vld [vmem:[#allocation8 + $0x30] sm:$0xff]
    %v763 = vld [vmem:[#allocation8 + $0x38] sm:$0xff]
    %v764 = vld [vmem:[#allocation8 + $0x40] sm:$0xff]
    %v765 = vld [vmem:[#allocation8 + $0x48] sm:$0xff]
    %v766 = vld [vmem:[#allocation8 + $0x50] sm:$0xff]
    %v767 = vld [vmem:[#allocation8 + $0x58] sm:$0xff]
    %v768 = vld [vmem:[#allocation8 + $0x60] sm:$0xff]
    %v769 = vld [vmem:[#allocation8 + $0x68] sm:$0xff]
    %v770 = vld [vmem:[#allocation8 + $0x70] sm:$0xff]
    %v771 = vld [vmem:[#allocation8 + $0x78] sm:$0xff]
    %v772 = vld [vmem:[#allocation8 + $0x80] sm:$0xff]
    %v773 = vld [vmem:[#allocation8 + $0x88] sm:$0xff]
    %v774 = vld [vmem:[#allocation8 + $0x90] sm:$0xff]
    %v775 = vld [vmem:[#allocation8 + $0x98] sm:$0xff]
    %v776 = vld [vmem:[#allocation8 + $0xa0] sm:$0xff]
    %v777 = vld [vmem:[#allocation8 + $0xa8] sm:$0xff]
    %v778 = vld [vmem:[#allocation8 + $0xb0] sm:$0xff]
    %v779 = vld [vmem:[#allocation8 + $0xb8] sm:$0xff]
    %v780 = vld [vmem:[#allocation8 + $0xc0] sm:$0xff]
    %v781 = vld [vmem:[#allocation8 + $0xc8] sm:$0xff]
    %v782 = vld [vmem:[#allocation8 + $0xd0] sm:$0xff]
    %v783 = vld [vmem:[#allocation8 + $0xd8] sm:$0xff]
    %v784 = vld [vmem:[#allocation8 + $0xe0] sm:$0xff]
    %v785 = vld [vmem:[#allocation8 + $0xe8] sm:$0xff]
    %v786 = vld [vmem:[#allocation8 + $0xf0] sm:$0xff]
    %v787 = vld [vmem:[#allocation8 + $0xf8] sm:$0xff]
    %v788 = vld [vmem:[#allocation8 + $0x100] sm:$0xff]
    %v789 = vld [vmem:[#allocation8 + $0x108] sm:$0xff]
    %v790 = vld [vmem:[#allocation8 + $0x110] sm:$0xff]
    %v791 = vld [vmem:[#allocation8 + $0x118] sm:$0xff]
    %v792 = vld [vmem:[#allocation8 + $0x120] sm:$0xff]
    %v793 = vld [vmem:[#allocation8 + $0x128] sm:$0xff]
    %v794 = vld [vmem:[#allocation8 + $0x130] sm:$0xff]
    %v795 = vld [vmem:[#allocation8 + $0x138] sm:$0xff]
    %v796 = vld [vmem:[#allocation8 + $0x140] sm:$0xff]
    %v797 = vld [vmem:[#allocation8 + $0x148] sm:$0xff]
    %v798 = vld [vmem:[#allocation8 + $0x150] sm:$0xff]
    %v799 = vld [vmem:[#allocation8 + $0x158] sm:$0xff]
    %v800 = vld [vmem:[#allocation8 + $0x160] sm:$0xff]
    %v801 = vld [vmem:[#allocation8 + $0x168] sm:$0xff]
    %v802 = vld [vmem:[#allocation8 + $0x170] sm:$0xff]
    %v803 = vld [vmem:[#allocation8 + $0x178] sm:$0xff]
    %v804 = vld [vmem:[#allocation8 + $0x180] sm:$0xff]
    %v805 = vld [vmem:[#allocation8 + $0x188] sm:$0xff]
    %v806 = vld [vmem:[#allocation8 + $0x190] sm:$0xff]
    %v807 = vld [vmem:[#allocation8 + $0x198] sm:$0xff]
    %v808 = vld [vmem:[#allocation8 + $0x1a0] sm:$0xff]
    %v809 = vld [vmem:[#allocation8 + $0x1a8] sm:$0xff]
    %v810 = vld [vmem:[#allocation8 + $0x1b0] sm:$0xff]
    %v811 = vld [vmem:[#allocation8 + $0x1b8] sm:$0xff]
    %v812 = vld [vmem:[#allocation8 + $0x1c0] sm:$0xff]
    %v813 = vld [vmem:[#allocation8 + $0x1c8] sm:$0xff]
    %v814 = vld [vmem:[#allocation8 + $0x1d0] sm:$0xff]
    %v815 = vld [vmem:[#allocation8 + $0x1d8] sm:$0xff]
    %v816 = vld [vmem:[#allocation8 + $0x1e0] sm:$0xff]
    %v817 = vld [vmem:[#allocation8 + $0x1e8] sm:$0xff]
    %v818 = vld [vmem:[#allocation8 + $0x1f0] sm:$0xff]
    %v819 = vld [vmem:[#allocation8 + $0x1f8] sm:$0xff]
    %v820 = vld [vmem:[#allocation2] sm:$0xfc]
    %v821 = vld [vmem:[#allocation2 + $0x8] sm:$0xfc]
    %v822 = vld [vmem:[#allocation2 + $0x20] sm:$0x3]
    %v823 = vld [vmem:[#allocation2 + $0x28] sm:$0x3]
    %v824 = vld [vmem:[#allocation2 + $0x20] sm:$0xc0]
    %v825 = vld [vmem:[#allocation2 + $0x28] sm:$0xc0]
    %v826 = vld [vmem:[#allocation2 + $0x40] sm:$0x3f]
    %v827 = vld [vmem:[#allocation2 + $0x48] sm:$0x3f]
    %v832 = vrot.slane %v820, 2
    %v833 = vrot.slane %v704, 2
    %v834 = vsel %vm194, %v832, %v833
    %v835 = vrot.slane %v821, 2
    %v836 = vrot.slane %v705, 2
    %v837 = vsel %vm194, %v835, %v836
    %v838 = vrot.slane %v822, 2
    %v839 = vsel %vm194, %v833, %v838
    %v840 = vrot.slane %v823, 2
    %v841 = vsel %vm194, %v836, %v840
    %v850 = vrot.slane %v824, 6
    %v851 = vrot.slane %v710, 6
    %v852 = vsel %vm179, %v850, %v851
    %v853 = vrot.slane %v825, 6
    %v854 = vrot.slane %v711, 6
    %v855 = vsel %vm179, %v853, %v854
    %v856 = vrot.slane %v826, 6
    %v857 = vsel %vm179, %v851, %v856
    %v858 = vrot.slane %v827, 6
    %v859 = vsel %vm179, %v854, %v858
    %s864 = scalar_lea.vmem [#allocation8], 512
    %v865 = vld [vmem:[%s864] sm:$0xff]
    %v866 = vld [vmem:[%s864 + $0x8] sm:$0xff]
    %v867 = vld [vmem:[%s864 + $0x10] sm:$0xff]
    %v868 = vld [vmem:[%s864 + $0x18] sm:$0xff]
    %v869 = vld [vmem:[%s864 + $0x20] sm:$0xff]
    %v870 = vld [vmem:[%s864 + $0x28] sm:$0xff]
    %v871 = vld [vmem:[%s864 + $0x30] sm:$0xff]
    %v872 = vld [vmem:[%s864 + $0x38] sm:$0xff]
    %v873 = vld [vmem:[%s864 + $0x40] sm:$0xff]
    %v874 = vld [vmem:[%s864 + $0x48] sm:$0xff]
    %v875 = vld [vmem:[%s864 + $0x50] sm:$0xff]
    %v876 = vld [vmem:[%s864 + $0x58] sm:$0xff]
    %v877 = vld [vmem:[%s864 + $0x60] sm:$0xff]
    %v878 = vld [vmem:[%s864 + $0x68] sm:$0xff]
    %v879 = vld [vmem:[%s864 + $0x70] sm:$0xff]
    %v880 = vld [vmem:[%s864 + $0x78] sm:$0xff]
    %v881 = vld [vmem:[%s864 + $0x80] sm:$0xff]
    %v882 = vld [vmem:[%s864 + $0x88] sm:$0xff]
    %v883 = vld [vmem:[%s864 + $0x90] sm:$0xff]
    %v884 = vld [vmem:[%s864 + $0x98] sm:$0xff]
    %v885 = vld [vmem:[%s864 + $0xa0] sm:$0xff]
    %v886 = vld [vmem:[%s864 + $0xa8] sm:$0xff]
    %v887 = vld [vmem:[%s864 + $0xb0] sm:$0xff]
    %v888 = vld [vmem:[%s864 + $0xb8] sm:$0xff]
    %v889 = vld [vmem:[%s864 + $0xc0] sm:$0xff]
    %v890 = vld [vmem:[%s864 + $0xc8] sm:$0xff]
    %v891 = vld [vmem:[%s864 + $0xd0] sm:$0xff]
    %v892 = vld [vmem:[%s864 + $0xd8] sm:$0xff]
    %v893 = vld [vmem:[%s864 + $0xe0] sm:$0xff]
    %v894 = vld [vmem:[%s864 + $0xe8] sm:$0xff]
    %v895 = vld [vmem:[%s864 + $0xf0] sm:$0xff]
    %v896 = vld [vmem:[%s864 + $0xf8] sm:$0xff]
    %v897 = vld [vmem:[%s864 + $0x100] sm:$0xff]
    %v898 = vld [vmem:[%s864 + $0x108] sm:$0xff]
    %v899 = vld [vmem:[%s864 + $0x110] sm:$0xff]
    %v900 = vld [vmem:[%s864 + $0x118] sm:$0xff]
    %v901 = vld [vmem:[%s864 + $0x120] sm:$0xff]
    %v902 = vld [vmem:[%s864 + $0x128] sm:$0xff]
    %v903 = vld [vmem:[%s864 + $0x130] sm:$0xff]
    %v904 = vld [vmem:[%s864 + $0x138] sm:$0xff]
    %v905 = vld [vmem:[%s864 + $0x140] sm:$0xff]
    %v906 = vld [vmem:[%s864 + $0x148] sm:$0xff]
    %v907 = vld [vmem:[%s864 + $0x150] sm:$0xff]
    %v908 = vld [vmem:[%s864 + $0x158] sm:$0xff]
    %v909 = vld [vmem:[%s864 + $0x160] sm:$0xff]
    %v910 = vld [vmem:[%s864 + $0x168] sm:$0xff]
    %v911 = vld [vmem:[%s864 + $0x170] sm:$0xff]
    %v912 = vld [vmem:[%s864 + $0x178] sm:$0xff]
    %v913 = vld [vmem:[%s864 + $0x180] sm:$0xff]
    %v914 = vld [vmem:[%s864 + $0x188] sm:$0xff]
    %v915 = vld [vmem:[%s864 + $0x190] sm:$0xff]
    %v916 = vld [vmem:[%s864 + $0x198] sm:$0xff]
    %v917 = vld [vmem:[%s864 + $0x1a0] sm:$0xff]
    %v918 = vld [vmem:[%s864 + $0x1a8] sm:$0xff]
    %v919 = vld [vmem:[%s864 + $0x1b0] sm:$0xff]
    %v920 = vld [vmem:[%s864 + $0x1b8] sm:$0xff]
    %v921 = vld [vmem:[%s864 + $0x1c0] sm:$0xff]
    %v922 = vld [vmem:[%s864 + $0x1c8] sm:$0xff]
    %v923 = vld [vmem:[%s864 + $0x1d0] sm:$0xff]
    %v924 = vld [vmem:[%s864 + $0x1d8] sm:$0xff]
    %v925 = vld [vmem:[%s864 + $0x1e0] sm:$0xff]
    %v926 = vld [vmem:[%s864 + $0x1e8] sm:$0xff]
    %v927 = vld [vmem:[%s864 + $0x1f0] sm:$0xff]
    %v928 = vld [vmem:[%s864 + $0x1f8] sm:$0xff]
    %929 = vmatprep.subr.mxu0 %v866
    %930 = vmatpush1.msra.mxu0 %v865
    %931 = vmatprep.subr.mxu0 %v868
    %932 = vmatpush1.msra.mxu0 %v867
    %933 = vmatprep.subr.mxu0 %v870
    %934 = vmatpush1.msra.mxu0 %v869
    %935 = vmatprep.subr.mxu0 %v872
    %936 = vmatpush1.msra.mxu0 %v871
    %937 = vmatprep.subr.mxu0 %v874
    %938 = vmatpush1.msra.mxu0 %v873
    %939 = vmatprep.subr.mxu0 %v876
    %940 = vmatpush1.msra.mxu0 %v875
    %941 = vmatprep.subr.mxu0 %v878
    %942 = vmatpush1.msra.mxu0 %v877
    %943 = vmatprep.subr.mxu0 %v880
    %944 = vmatpush1.msra.mxu0 %v879
    %945 = vmatprep.subr.mxu0 %v882
    %946 = vmatpush1.msra.mxu0 %v881
    %947 = vmatprep.subr.mxu0 %v884
    %948 = vmatpush1.msra.mxu0 %v883
    %949 = vmatprep.subr.mxu0 %v886
    %950 = vmatpush1.msra.mxu0 %v885
    %951 = vmatprep.subr.mxu0 %v888
    %952 = vmatpush1.msra.mxu0 %v887
    %953 = vmatprep.subr.mxu0 %v890
    %954 = vmatpush1.msra.mxu0 %v889
    %955 = vmatprep.subr.mxu0 %v892
    %956 = vmatpush1.msra.mxu0 %v891
    %957 = vmatprep.subr.mxu0 %v894
    %958 = vmatpush1.msra.mxu0 %v893
    %959 = vmatprep.subr.mxu0 %v896
    %960 = vmatpush1.msra.mxu0 %v895
    %961 = vmatprep.subr.mxu0 %v898
    %962 = vmatpush1.msra.mxu0 %v897
    %963 = vmatprep.subr.mxu0 %v900
    %964 = vmatpush1.msra.mxu0 %v899
    %965 = vmatprep.subr.mxu0 %v902
    %966 = vmatpush1.msra.mxu0 %v901
    %967 = vmatprep.subr.mxu0 %v904
    %968 = vmatpush1.msra.mxu0 %v903
    %969 = vmatprep.subr.mxu0 %v906
    %970 = vmatpush1.msra.mxu0 %v905
    %971 = vmatprep.subr.mxu0 %v908
    %972 = vmatpush1.msra.mxu0 %v907
    %973 = vmatprep.subr.mxu0 %v910
    %974 = vmatpush1.msra.mxu0 %v909
    %975 = vmatprep.subr.mxu0 %v912
    %976 = vmatpush1.msra.mxu0 %v911
    %977 = vmatprep.subr.mxu0 %v914
    %978 = vmatpush1.msra.mxu0 %v913
    %979 = vmatprep.subr.mxu0 %v916
    %980 = vmatpush1.msra.mxu0 %v915
    %981 = vmatprep.subr.mxu0 %v918
    %982 = vmatpush1.msra.mxu0 %v917
    %983 = vmatprep.subr.mxu0 %v920
    %984 = vmatpush1.msra.mxu0 %v919
    %985 = vmatprep.subr.mxu0 %v922
    %986 = vmatpush1.msra.mxu0 %v921
    %987 = vmatprep.subr.mxu0 %v924
    %988 = vmatpush1.msra.mxu0 %v923
    %989 = vmatprep.subr.mxu0 %v926
    %990 = vmatpush1.msra.mxu0 %v925
    %991 = vmatprep.subr.mxu0 %v928
    %992 = vmatpush1.msra.mxu0 %v927
    %993 = vmatprep.mubr.f32.mxu0 %v837
    %994 = vmatmul.mubr.f32.gmra.mrb[0].mxu0 %v834
    %v995 = vpop.f32.mrb[0].mxu0
    %v996 = vadd.f32 0.0, %v995
    %v997 = vpop.f32.mrb[0].mxu0
    %v998 = vadd.f32 0.0, %v997
    %999 = vmatprep.mubr.f32.mxu0 %v841
    %1000 = vmatmul.mubr.f32.gmra.mrb[0].mxu0 %v839
    %v1001 = vpop.f32.mrb[0].mxu0
    %v1002 = vadd.f32 0.0, %v1001
    %v1003 = vpop.f32.mrb[0].mxu0
    %v1004 = vadd.f32 0.0, %v1003
    %1005 = vmatprep.mubr.f32.mxu0 %v855
    %1006 = vmatmul.mubr.f32.gmra.mrb[0].mxu0 %v852
    %v1007 = vpop.f32.mrb[0].mxu0
    %v1008 = vadd.f32 0.0, %v1007
    %v1009 = vpop.f32.mrb[0].mxu0
    %v1010 = vadd.f32 0.0, %v1009
    %1011 = vmatprep.mubr.f32.mxu0 %v859
    %1012 = vmatmul.mubr.f32.gmra.mrb[0].mxu0 %v857
    %v1013 = vpop.f32.mrb[0].mxu0
    %v1014 = vadd.f32 0.0, %v1013
    %v1015 = vpop.f32.mrb[0].mxu0
    %v1016 = vadd.f32 0.0, %v1015
    %1017 = vdwg.mxu0
    %1018 = vmatprep.subr.mxu0 %v757
    %1019 = vmatpush1.msra.mxu0 %v756
    %1020 = vmatprep.subr.mxu0 %v759
    %1021 = vmatpush1.msra.mxu0 %v758
    %1022 = vmatprep.subr.mxu0 %v761
    %1023 = vmatpush1.msra.mxu0 %v760
    %1024 = vmatprep.subr.mxu0 %v763
    %1025 = vmatpush1.msra.mxu0 %v762
    %1026 = vmatprep.subr.mxu0 %v765
    %1027 = vmatpush1.msra.mxu0 %v764
    %1028 = vmatprep.subr.mxu0 %v767
    %1029 = vmatpush1.msra.mxu0 %v766
    %1030 = vmatprep.subr.mxu0 %v769
    %1031 = vmatpush1.msra.mxu0 %v768
    %1032 = vmatprep.subr.mxu0 %v771
    %1033 = vmatpush1.msra.mxu0 %v770
    %1034 = vmatprep.subr.mxu0 %v773
    %1035 = vmatpush1.msra.mxu0 %v772
    %1036 = vmatprep.subr.mxu0 %v775
    %1037 = vmatpush1.msra.mxu0 %v774
    %1038 = vmatprep.subr.mxu0 %v777
    %1039 = vmatpush1.msra.mxu0 %v776
    %1040 = vmatprep.subr.mxu0 %v779
    %1041 = vmatpush1.msra.mxu0 %v778
    %1042 = vmatprep.subr.mxu0 %v781
    %1043 = vmatpush1.msra.mxu0 %v780
    %1044 = vmatprep.subr.mxu0 %v783
    %1045 = vmatpush1.msra.mxu0 %v782
    %1046 = vmatprep.subr.mxu0 %v785
    %1047 = vmatpush1.msra.mxu0 %v784
    %1048 = vmatprep.subr.mxu0 %v787
    %1049 = vmatpush1.msra.mxu0 %v786
    %1050 = vmatprep.subr.mxu0 %v789
    %1051 = vmatpush1.msra.mxu0 %v788
    %1052 = vmatprep.subr.mxu0 %v791
    %1053 = vmatpush1.msra.mxu0 %v790
    %1054 = vmatprep.subr.mxu0 %v793
    %1055 = vmatpush1.msra.mxu0 %v792
    %1056 = vmatprep.subr.mxu0 %v795
    %1057 = vmatpush1.msra.mxu0 %v794
    %1058 = vmatprep.subr.mxu0 %v797
    %1059 = vmatpush1.msra.mxu0 %v796
    %1060 = vmatprep.subr.mxu0 %v799
    %1061 = vmatpush1.msra.mxu0 %v798
    %1062 = vmatprep.subr.mxu0 %v801
    %1063 = vmatpush1.msra.mxu0 %v800
    %1064 = vmatprep.subr.mxu0 %v803
    %1065 = vmatpush1.msra.mxu0 %v802
    %1066 = vmatprep.subr.mxu0 %v805
    %1067 = vmatpush1.msra.mxu0 %v804
    %1068 = vmatprep.subr.mxu0 %v807
    %1069 = vmatpush1.msra.mxu0 %v806
    %1070 = vmatprep.subr.mxu0 %v809
    %1071 = vmatpush1.msra.mxu0 %v808
    %1072 = vmatprep.subr.mxu0 %v811
    %1073 = vmatpush1.msra.mxu0 %v810
    %1074 = vmatprep.subr.mxu0 %v813
    %1075 = vmatpush1.msra.mxu0 %v812
    %1076 = vmatprep.subr.mxu0 %v815
    %1077 = vmatpush1.msra.mxu0 %v814
    %1078 = vmatprep.subr.mxu0 %v817
    %1079 = vmatpush1.msra.mxu0 %v816
    %1080 = vmatprep.subr.mxu0 %v819
    %1081 = vmatpush1.msra.mxu0 %v818
    %1082 = vmatprep.mubr.f32.mxu0 %v726
    %1083 = vmatmul.mubr.f32.gmra.mrb[0].mxu0 %v723
    %v1084 = vpop.f32.mrb[0].mxu0
    %v1085 = vadd.f32 %v996, %v1084
    %v1086 = vpop.f32.mrb[0].mxu0
    %v1087 = vadd.f32 %v998, %v1086
    %1088 = vmatprep.mubr.f32.mxu0 %v730
    %1089 = vmatmul.mubr.f32.gmra.mrb[0].mxu0 %v728
    %v1090 = vpop.f32.mrb[0].mxu0
    %v1091 = vadd.f32 %v1002, %v1090
    %v1092 = vpop.f32.mrb[0].mxu0
    %v1093 = vadd.f32 %v1004, %v1092
    %1094 = vmatprep.mubr.f32.mxu0 %v747
    %1095 = vmatmul.mubr.f32.gmra.mrb[0].mxu0 %v744
    %v1096 = vpop.f32.mrb[0].mxu0
    %v1097 = vadd.f32 %v1008, %v1096
    %v1098 = vpop.f32.mrb[0].mxu0
    %v1099 = vadd.f32 %v1010, %v1098
    %1100 = vmatprep.mubr.f32.mxu0 %v751
    %1101 = vmatmul.mubr.f32.gmra.mrb[0].mxu0 %v749
    %v1102 = vpop.f32.mrb[0].mxu0
    %v1103 = vadd.f32 %v1014, %v1102
    %v1104 = vpop.f32.mrb[0].mxu0
    %v1105 = vadd.f32 %v1016, %v1104
    %1106 = vdwg.mxu0
    %v1107 = vld [vmem:[#allocation2] sm:$0xf8]
    %v1108 = vld [vmem:[#allocation2 + $0x8] sm:$0xf8]
    %v1109 = vld [vmem:[#allocation2 + $0x20] sm:$0x7]
    %v1110 = vld [vmem:[#allocation2 + $0x28] sm:$0x7]
    %v1111 = vld [vmem:[#allocation2 + $0x20] sm:$0x80]
    %v1112 = vld [vmem:[#allocation2 + $0x28] sm:$0x80]
    %v1113 = vld [vmem:[#allocation2 + $0x40] sm:$0x7f]
    %v1114 = vld [vmem:[#allocation2 + $0x48] sm:$0x7f]
    %v1119 = vrot.slane %v1107, 3
    %v1120 = vrot.slane %v704, 3
    %v1121 = vsel %vm238, %v1119, %v1120
    %v1122 = vrot.slane %v1108, 3
    %v1123 = vrot.slane %v705, 3
    %v1124 = vsel %vm238, %v1122, %v1123
    %v1125 = vrot.slane %v1109, 3
    %v1126 = vsel %vm238, %v1120, %v1125
    %v1127 = vrot.slane %v1110, 3
    %v1128 = vsel %vm238, %v1123, %v1127
    %v1137 = vrot.slane %v1111, 7
    %v1138 = vrot.slane %v710, 7
    %v1139 = vsel %vm246, %v1137, %v1138
    %v1140 = vrot.slane %v1112, 7
    %v1141 = vrot.slane %v711, 7
    %v1142 = vsel %vm246, %v1140, %v1141
    %v1143 = vrot.slane %v1113, 7
    %v1144 = vsel %vm246, %v1138, %v1143
    %v1145 = vrot.slane %v1114, 7
    %v1146 = vsel %vm246, %v1141, %v1145
    %s1151 = scalar_lea.vmem [#allocation8], 1024
    %v1152 = vld [vmem:[%s1151] sm:$0xff]
    %v1153 = vld [vmem:[%s1151 + $0x8] sm:$0xff]
    %v1154 = vld [vmem:[%s1151 + $0x10] sm:$0xff]
    %v1155 = vld [vmem:[%s1151 + $0x18] sm:$0xff]
    %v1156 = vld [vmem:[%s1151 + $0x20] sm:$0xff]
    %v1157 = vld [vmem:[%s1151 + $0x28] sm:$0xff]
    %v1158 = vld [vmem:[%s1151 + $0x30] sm:$0xff]
    %v1159 = vld [vmem:[%s1151 + $0x38] sm:$0xff]
    %v1160 = vld [vmem:[%s1151 + $0x40] sm:$0xff]
    %v1161 = vld [vmem:[%s1151 + $0x48] sm:$0xff]
    %v1162 = vld [vmem:[%s1151 + $0x50] sm:$0xff]
    %v1163 = vld [vmem:[%s1151 + $0x58] sm:$0xff]
    %v1164 = vld [vmem:[%s1151 + $0x60] sm:$0xff]
    %v1165 = vld [vmem:[%s1151 + $0x68] sm:$0xff]
    %v1166 = vld [vmem:[%s1151 + $0x70] sm:$0xff]
    %v1167 = vld [vmem:[%s1151 + $0x78] sm:$0xff]
    %v1168 = vld [vmem:[%s1151 + $0x80] sm:$0xff]
    %v1169 = vld [vmem:[%s1151 + $0x88] sm:$0xff]
    %v1170 = vld [vmem:[%s1151 + $0x90] sm:$0xff]
    %v1171 = vld [vmem:[%s1151 + $0x98] sm:$0xff]
    %v1172 = vld [vmem:[%s1151 + $0xa0] sm:$0xff]
    %v1173 = vld [vmem:[%s1151 + $0xa8] sm:$0xff]
    %v1174 = vld [vmem:[%s1151 + $0xb0] sm:$0xff]
    %v1175 = vld [vmem:[%s1151 + $0xb8] sm:$0xff]
    %v1176 = vld [vmem:[%s1151 + $0xc0] sm:$0xff]
    %v1177 = vld [vmem:[%s1151 + $0xc8] sm:$0xff]
    %v1178 = vld [vmem:[%s1151 + $0xd0] sm:$0xff]
    %v1179 = vld [vmem:[%s1151 + $0xd8] sm:$0xff]
    %v1180 = vld [vmem:[%s1151 + $0xe0] sm:$0xff]
    %v1181 = vld [vmem:[%s1151 + $0xe8] sm:$0xff]
    %v1182 = vld [vmem:[%s1151 + $0xf0] sm:$0xff]
    %v1183 = vld [vmem:[%s1151 + $0xf8] sm:$0xff]
    %v1184 = vld [vmem:[%s1151 + $0x100] sm:$0xff]
    %v1185 = vld [vmem:[%s1151 + $0x108] sm:$0xff]
    %v1186 = vld [vmem:[%s1151 + $0x110] sm:$0xff]
    %v1187 = vld [vmem:[%s1151 + $0x118] sm:$0xff]
    %v1188 = vld [vmem:[%s1151 + $0x120] sm:$0xff]
    %v1189 = vld [vmem:[%s1151 + $0x128] sm:$0xff]
    %v1190 = vld [vmem:[%s1151 + $0x130] sm:$0xff]
    %v1191 = vld [vmem:[%s1151 + $0x138] sm:$0xff]
    %v1192 = vld [vmem:[%s1151 + $0x140] sm:$0xff]
    %v1193 = vld [vmem:[%s1151 + $0x148] sm:$0xff]
    %v1194 = vld [vmem:[%s1151 + $0x150] sm:$0xff]
    %v1195 = vld [vmem:[%s1151 + $0x158] sm:$0xff]
    %v1196 = vld [vmem:[%s1151 + $0x160] sm:$0xff]
    %v1197 = vld [vmem:[%s1151 + $0x168] sm:$0xff]
    %v1198 = vld [vmem:[%s1151 + $0x170] sm:$0xff]
    %v1199 = vld [vmem:[%s1151 + $0x178] sm:$0xff]
    %v1200 = vld [vmem:[%s1151 + $0x180] sm:$0xff]
    %v1201 = vld [vmem:[%s1151 + $0x188] sm:$0xff]
    %v1202 = vld [vmem:[%s1151 + $0x190] sm:$0xff]
    %v1203 = vld [vmem:[%s1151 + $0x198] sm:$0xff]
    %v1204 = vld [vmem:[%s1151 + $0x1a0] sm:$0xff]
    %v1205 = vld [vmem:[%s1151 + $0x1a8] sm:$0xff]
    %v1206 = vld [vmem:[%s1151 + $0x1b0] sm:$0xff]
    %v1207 = vld [vmem:[%s1151 + $0x1b8] sm:$0xff]
    %v1208 = vld [vmem:[%s1151 + $0x1c0] sm:$0xff]
    %v1209 = vld [vmem:[%s1151 + $0x1c8] sm:$0xff]
    %v1210 = vld [vmem:[%s1151 + $0x1d0] sm:$0xff]
    %v1211 = vld [vmem:[%s1151 + $0x1d8] sm:$0xff]
    %v1212 = vld [vmem:[%s1151 + $0x1e0] sm:$0xff]
    %v1213 = vld [vmem:[%s1151 + $0x1e8] sm:$0xff]
    %v1214 = vld [vmem:[%s1151 + $0x1f0] sm:$0xff]
    %v1215 = vld [vmem:[%s1151 + $0x1f8] sm:$0xff]
    %1216 = vmatprep.subr.mxu0 %v1153
    %1217 = vmatpush1.msra.mxu0 %v1152
    %1218 = vmatprep.subr.mxu0 %v1155
    %1219 = vmatpush1.msra.mxu0 %v1154
    %1220 = vmatprep.subr.mxu0 %v1157
    %1221 = vmatpush1.msra.mxu0 %v1156
    %1222 = vmatprep.subr.mxu0 %v1159
    %1223 = vmatpush1.msra.mxu0 %v1158
    %1224 = vmatprep.subr.mxu0 %v1161
    %1225 = vmatpush1.msra.mxu0 %v1160
    %1226 = vmatprep.subr.mxu0 %v1163
    %1227 = vmatpush1.msra.mxu0 %v1162
    %1228 = vmatprep.subr.mxu0 %v1165
    %1229 = vmatpush1.msra.mxu0 %v1164
    %1230 = vmatprep.subr.mxu0 %v1167
    %1231 = vmatpush1.msra.mxu0 %v1166
    %1232 = vmatprep.subr.mxu0 %v1169
    %1233 = vmatpush1.msra.mxu0 %v1168
    %1234 = vmatprep.subr.mxu0 %v1171
    %1235 = vmatpush1.msra.mxu0 %v1170
    %1236 = vmatprep.subr.mxu0 %v1173
    %1237 = vmatpush1.msra.mxu0 %v1172
    %1238 = vmatprep.subr.mxu0 %v1175
    %1239 = vmatpush1.msra.mxu0 %v1174
    %1240 = vmatprep.subr.mxu0 %v1177
    %1241 = vmatpush1.msra.mxu0 %v1176
    %1242 = vmatprep.subr.mxu0 %v1179
    %1243 = vmatpush1.msra.mxu0 %v1178
    %1244 = vmatprep.subr.mxu0 %v1181
    %1245 = vmatpush1.msra.mxu0 %v1180
    %1246 = vmatprep.subr.mxu0 %v1183
    %1247 = vmatpush1.msra.mxu0 %v1182
    %1248 = vmatprep.subr.mxu0 %v1185
    %1249 = vmatpush1.msra.mxu0 %v1184
    %1250 = vmatprep.subr.mxu0 %v1187
    %1251 = vmatpush1.msra.mxu0 %v1186
    %1252 = vmatprep.subr.mxu0 %v1189
    %1253 = vmatpush1.msra.mxu0 %v1188
    %1254 = vmatprep.subr.mxu0 %v1191
    %1255 = vmatpush1.msra.mxu0 %v1190
    %1256 = vmatprep.subr.mxu0 %v1193
    %1257 = vmatpush1.msra.mxu0 %v1192
    %1258 = vmatprep.subr.mxu0 %v1195
    %1259 = vmatpush1.msra.mxu0 %v1194
    %1260 = vmatprep.subr.mxu0 %v1197
    %1261 = vmatpush1.msra.mxu0 %v1196
    %1262 = vmatprep.subr.mxu0 %v1199
    %1263 = vmatpush1.msra.mxu0 %v1198
    %1264 = vmatprep.subr.mxu0 %v1201
    %1265 = vmatpush1.msra.mxu0 %v1200
    %1266 = vmatprep.subr.mxu0 %v1203
    %1267 = vmatpush1.msra.mxu0 %v1202
    %1268 = vmatprep.subr.mxu0 %v1205
    %1269 = vmatpush1.msra.mxu0 %v1204
    %1270 = vmatprep.subr.mxu0 %v1207
    %1271 = vmatpush1.msra.mxu0 %v1206
    %1272 = vmatprep.subr.mxu0 %v1209
    %1273 = vmatpush1.msra.mxu0 %v1208
    %1274 = vmatprep.subr.mxu0 %v1211
    %1275 = vmatpush1.msra.mxu0 %v1210
    %1276 = vmatprep.subr.mxu0 %v1213
    %1277 = vmatpush1.msra.mxu0 %v1212
    %1278 = vmatprep.subr.mxu0 %v1215
    %1279 = vmatpush1.msra.mxu0 %v1214
    %1280 = vmatprep.mubr.f32.mxu0 %v1124
    %1281 = vmatmul.mubr.f32.gmra.mrb[0].mxu0 %v1121
    %v1282 = vpop.f32.mrb[0].mxu0
    %v1283 = vadd.f32 0.0, %v1282
    %v1284 = vpop.f32.mrb[0].mxu0
    %v1285 = vadd.f32 0.0, %v1284
    %1286 = vmatprep.mubr.f32.mxu0 %v1128
    %1287 = vmatmul.mubr.f32.gmra.mrb[0].mxu0 %v1126
    %v1288 = vpop.f32.mrb[0].mxu0
    %v1289 = vadd.f32 0.0, %v1288
    %v1290 = vpop.f32.mrb[0].mxu0
    %v1291 = vadd.f32 0.0, %v1290
    %1292 = vmatprep.mubr.f32.mxu0 %v1142
    %1293 = vmatmul.mubr.f32.gmra.mrb[0].mxu0 %v1139
    %v1294 = vpop.f32.mrb[0].mxu0
    %v1295 = vadd.f32 0.0, %v1294
    %v1296 = vpop.f32.mrb[0].mxu0
    %v1297 = vadd.f32 0.0, %v1296
    %1298 = vmatprep.mubr.f32.mxu0 %v1146
    %1299 = vmatmul.mubr.f32.gmra.mrb[0].mxu0 %v1144
    %v1300 = vpop.f32.mrb[0].mxu0
    %v1301 = vadd.f32 0.0, %v1300
    %v1302 = vpop.f32.mrb[0].mxu0
    %v1303 = vadd.f32 0.0, %v1302
    %1304 = vdwg.mxu0
    %v1305 = vadd.f32 %v1085, %v1283
    %v1306 = vadd.f32 %v1087, %v1285
    %v1307 = vadd.f32 %v1091, %v1289
    %v1308 = vadd.f32 %v1093, %v1291
    %v1309 = vadd.f32 %v1097, %v1295
    %v1310 = vadd.f32 %v1099, %v1297
    %v1311 = vadd.f32 %v1103, %v1301
    %v1312 = vadd.f32 %v1105, %v1303
    %v1313 = vadd.f32 %v1305, %v1307
    %v1314 = vadd.f32 %v1313, %v1309
    %v1315 = vadd.f32 %v1314, %v1311
    %v1316 = vrot.slane %v1315, 4
    %v1317 = vadd.f32 %v1315, %v1316
    %v1318 = vrot.slane %v1317, 2
    %v1319 = vadd.f32 %v1317, %v1318
    %v1320 = vrot.slane %v1319, 1
    %v1321 = vadd.f32 %v1319, %v1320
    %v1322 = vadd.f32 %v1306, %v1308
    %v1323 = vadd.f32 %v1322, %v1310
    %v1324 = vadd.f32 %v1323, %v1312
    %v1325 = vrot.slane %v1324, 4
    %v1326 = vadd.f32 %v1324, %v1325
    %v1327 = vrot.slane %v1326, 2
    %v1328 = vadd.f32 %v1326, %v1327
    %v1329 = vrot.slane %v1328, 1
    %v1330 = vadd.f32 %v1328, %v1329
    %v1331 = vmul.f32 %v1305, %v1305
    %v1332 = vmul.f32 %v1306, %v1306
    %v1333 = vmul.f32 %v1307, %v1307
    %v1334 = vmul.f32 %v1308, %v1308
    %v1335 = vmul.f32 %v1309, %v1309
    %v1336 = vmul.f32 %v1310, %v1310
    %v1337 = vmul.f32 %v1311, %v1311
    %v1338 = vmul.f32 %v1312, %v1312
    %v1339 = vadd.f32 %v1331, %v1333
    %v1340 = vadd.f32 %v1339, %v1335
    %v1341 = vadd.f32 %v1340, %v1337
    %v1342 = vrot.slane %v1341, 4
    %v1343 = vadd.f32 %v1341, %v1342
    %v1344 = vrot.slane %v1343, 2
    %v1345 = vadd.f32 %v1343, %v1344
    %v1346 = vrot.slane %v1345, 1
    %v1347 = vadd.f32 %v1345, %v1346
    %v1348 = vadd.f32 %v1332, %v1334
    %v1349 = vadd.f32 %v1348, %v1336
    %v1350 = vadd.f32 %v1349, %v1338
    %v1351 = vrot.slane %v1350, 4
    %v1352 = vadd.f32 %v1350, %v1351
    %v1353 = vrot.slane %v1352, 2
    %v1354 = vadd.f32 %v1352, %v1353
    %v1355 = vrot.slane %v1354, 1
    %v1356 = vadd.f32 %v1354, %v1355
    %v1357 = vadd.f32 %v1321, %v1330
    %v1358 = vadd.f32 %v1347, %v1356
    %1360 = vrot.lane.b32.xlu0 %v1357, 64
    %v1361 = vpop.permute.xlu0 %1360
    %v1363 = vadd.f32 %v1357, %v1361
    %1365 = vrot.lane.b32.xlu0 %v1358, 64
    %v1366 = vpop.permute.xlu0 %1365
    %v1368 = vadd.f32 %v1358, %v1366
    %1370 = vrot.lane.b32.xlu0 %v1363, 96
    %v1371 = vpop.permute.xlu0 %1370
    %v1373 = vadd.f32 %v1363, %v1371
    %1375 = vrot.lane.b32.xlu0 %v1368, 96
    %v1376 = vpop.permute.xlu0 %1375
    %v1378 = vadd.f32 %v1368, %v1376
    %1380 = vrot.lane.b32.xlu0 %v1373, 112
    %v1381 = vpop.permute.xlu0 %1380
    %v1383 = vadd.f32 %v1373, %v1381
    %1385 = vrot.lane.b32.xlu0 %v1378, 112
    %v1386 = vpop.permute.xlu0 %1385
    %v1388 = vadd.f32 %v1378, %v1386
    %v1389 = vmul.f32 %v1383, 0.001953125
    %v1390 = vmul.f32 %v1388, 0.001953125
    %v1391 = vmul.f32 %v1389, %v1389
    %v1392 = vsub.f32 %v1390, %v1391
    %v1393 = vld [vmem:[#allocation10] sm:$0x1]
    %v1394 = vadd.f32 %v1392, 1e-05
    %v1395 = vrsqrt.pop %v1394
    %v1396 = vmul.f32 %v1393, %v1395
    %v1397 = vld [vmem:[#allocation11] sm:$0x1]
    %v1398 = vmul.f32 %v1389, %v1396
    %v1399 = vsub.f32 %v1397, %v1398
    %v1401 = vlaneseq
    %v1402 = vshrl.u32 %v1401, 7
    %v1403 = vsub.s32 0, %v1402
    %v1404 = vrot.slane %v1396, %v1403
    %1405 = vrot.lane.b32.xlu0 %v1404, 16
    %v1406 = vpop.permute.xlu0 %1405
    %1408 = vrot.lane.b32.xlu0 %v1404, 32
    %v1409 = vpop.permute.xlu0 %1408
    %1411 = vrot.lane.b32.xlu0 %v1404, 48
    %v1412 = vpop.permute.xlu0 %1411
    %1414 = vrot.lane.b32.xlu0 %v1404, 64
    %v1415 = vpop.permute.xlu0 %1414
    %1417 = vrot.lane.b32.xlu0 %v1404, 80
    %v1418 = vpop.permute.xlu0 %1417
    %1420 = vrot.lane.b32.xlu0 %v1404, 96
    %v1421 = vpop.permute.xlu0 %1420
    %1423 = vrot.lane.b32.xlu0 %v1404, 112
    %v1424 = vpop.permute.xlu0 %1423
    %v1426 = vsel %vm188, %v1396, %v1406
    %v1427 = vsel %vm565, %v1426, %v1409
    %v1428 = vsel %vm567, %v1427, %v1412
    %v1429 = vsel %vm569, %v1428, %v1415
    %v1430 = vsel %vm571, %v1429, %v1418
    %v1431 = vsel %vm573, %v1430, %v1421
    %v1432 = vsel %vm575, %v1431, %v1424
    %v1434 = vlaneseq
    %v1435 = vshrl.u32 %v1434, 7
    %v1436 = vsub.s32 0, %v1435
    %v1437 = vrot.slane %v1399, %v1436
    %1438 = vrot.lane.b32.xlu0 %v1437, 16
    %v1439 = vpop.permute.xlu0 %1438
    %1441 = vrot.lane.b32.xlu0 %v1437, 32
    %v1442 = vpop.permute.xlu0 %1441
    %1444 = vrot.lane.b32.xlu0 %v1437, 48
    %v1445 = vpop.permute.xlu0 %1444
    %1447 = vrot.lane.b32.xlu0 %v1437, 64
    %v1448 = vpop.permute.xlu0 %1447
    %1450 = vrot.lane.b32.xlu0 %v1437, 80
    %v1451 = vpop.permute.xlu0 %1450
    %1453 = vrot.lane.b32.xlu0 %v1437, 96
    %v1454 = vpop.permute.xlu0 %1453
    %1456 = vrot.lane.b32.xlu0 %v1437, 112
    %v1457 = vpop.permute.xlu0 %1456
    %v1459 = vsel %vm188, %v1399, %v1439
    %v1460 = vsel %vm565, %v1459, %v1442
    %v1461 = vsel %vm567, %v1460, %v1445
    %v1462 = vsel %vm569, %v1461, %v1448
    %v1463 = vsel %vm571, %v1462, %v1451
    %v1464 = vsel %vm573, %v1463, %v1454
    %v1465 = vsel %vm575, %v1464, %v1457
    %v1466 = vlaneseq
    %v1467 = vshrl.u32 %v1466, 7
    %v1468 = vsub.s32 0, %v1467
    %v1469 = vrot.slane %v1432, %v1468
    %v1470 = vmul.f32 %v1305, %v1469
    %v1471 = vmul.f32 %v1306, %v1469
    %v1472 = vmul.f32 %v1307, %v1469
    %v1473 = vmul.f32 %v1308, %v1469
    %v1474 = vmul.f32 %v1309, %v1469
    %v1475 = vmul.f32 %v1310, %v1469
    %v1476 = vmul.f32 %v1311, %v1469
    %v1477 = vmul.f32 %v1312, %v1469
    %v1478 = vlaneseq
    %v1479 = vshrl.u32 %v1478, 7
    %v1480 = vsub.s32 0, %v1479
    %v1481 = vrot.slane %v1465, %v1480
    %v1482 = vadd.f32 %v1470, %v1481
    %v1483 = vadd.f32 %v1471, %v1481
    %v1484 = vadd.f32 %v1472, %v1481
    %v1485 = vadd.f32 %v1473, %v1481
    %v1486 = vadd.f32 %v1474, %v1481
    %v1487 = vadd.f32 %v1475, %v1481
    %v1488 = vadd.f32 %v1476, %v1481
    %v1489 = vadd.f32 %v1477, %v1481
    %vm1490 = vcmp.gt.f32.partialorder %v1482, 0.0
    %vm1491 = vcmp.gt.f32.partialorder %v1483, 0.0
    %vm1492 = vcmp.gt.f32.partialorder %v1484, 0.0
    %vm1493 = vcmp.gt.f32.partialorder %v1485, 0.0
    %vm1494 = vcmp.gt.f32.partialorder %v1486, 0.0
    %vm1495 = vcmp.gt.f32.partialorder %v1487, 0.0
    %vm1496 = vcmp.gt.f32.partialorder %v1488, 0.0
    %vm1497 = vcmp.gt.f32.partialorder %v1489, 0.0
    %v1498 = vmul.f32 %v1482, 0.01
    %v1499 = vmul.f32 %v1483, 0.01
    %v1500 = vmul.f32 %v1484, 0.01
    %v1501 = vmul.f32 %v1485, 0.01
    %v1502 = vmul.f32 %v1486, 0.01
    %v1503 = vmul.f32 %v1487, 0.01
    %v1504 = vmul.f32 %v1488, 0.01
    %v1505 = vmul.f32 %v1489, 0.01
    %v1506 = vsel %vm1490, %v1482, %v1498
    %v1507 = vsel %vm1491, %v1483, %v1499
    %v1508 = vsel %vm1492, %v1484, %v1500
    %v1509 = vsel %vm1493, %v1485, %v1501
    %v1510 = vsel %vm1494, %v1486, %v1502
    %v1511 = vsel %vm1495, %v1487, %v1503
    %v1512 = vsel %vm1496, %v1488, %v1504
    %v1513 = vsel %vm1497, %v1489, %v1505
    %v1518 = vrot.slane %v1506, 6
    %v1519 = vrot.slane %v1507, 6
    %v1520 = vrot.slane %v1508, 6
    %v1521 = vsel %vm179, %v1518, %v1520
    %v1522 = vrot.slane %v1509, 6
    %v1523 = vsel %vm179, %v1519, %v1522
    %1530 = vst [vmem:[#allocation2] sm:$0xfc] %v1518
    %1531 = vst [vmem:[#allocation2 + $0x8] sm:$0xfc] %v1519
    %1532 = vst [vmem:[#allocation2 + $0x10] sm:$0xff] %v1521
    %1533 = vst [vmem:[#allocation2 + $0x18] sm:$0xff] %v1523
    %1534 = vst [vmem:[#allocation2 + $0x20] sm:$0x3] %v1520
    %1535 = vst [vmem:[#allocation2 + $0x28] sm:$0x3] %v1522
    %v1540 = vrot.slane %v1510, 2
    %v1541 = vrot.slane %v1511, 2
    %v1542 = vrot.slane %v1512, 2
    %v1543 = vsel %vm194, %v1540, %v1542
    %v1544 = vrot.slane %v1513, 2
    %v1545 = vsel %vm194, %v1541, %v1544
    %1552 = vst [vmem:[#allocation2 + $0x20] sm:$0xc0] %v1540
    %1553 = vst [vmem:[#allocation2 + $0x28] sm:$0xc0] %v1541
    %1554 = vst [vmem:[#allocation2 + $0x30] sm:$0xff] %v1543
    %1555 = vst [vmem:[#allocation2 + $0x38] sm:$0xff] %v1545
    %1556 = vst [vmem:[#allocation2 + $0x40] sm:$0x3f] %v1542
    %1557 = vst [vmem:[#allocation2 + $0x48] sm:$0x3f] %v1544
    %v1558 = vld [vmem:[#allocation2] sm:$0xff]
    %v1559 = vld [vmem:[#allocation2 + $0x8] sm:$0xff]
    %v1560 = vld [vmem:[#allocation2 + $0x10] sm:$0xff]
    %v1561 = vld [vmem:[#allocation2 + $0x18] sm:$0xff]
    %v1562 = vld [vmem:[#allocation2 + $0x20] sm:$0xf0]
    %v1563 = vld [vmem:[#allocation2 + $0x28] sm:$0xf0]
    %v1564 = vld [vmem:[#allocation2 + $0x30] sm:$0xff]
    %v1565 = vld [vmem:[#allocation2 + $0x38] sm:$0xff]
    %v1566 = vld [vmem:[#allocation2 + $0x40] sm:$0xf]
    %v1567 = vld [vmem:[#allocation2 + $0x48] sm:$0xf]
    %vm1574 = vcmask 1043456
    %v1575 = vrot.slane %v1562, 4
    %v1576 = vrot.slane %v1564, 4
    %v1577 = vsel %vm1574, %v1575, %v1576
    %v1578 = vrot.slane %v1563, 4
    %v1579 = vrot.slane %v1565, 4
    %v1580 = vsel %vm1574, %v1578, %v1579
    %v1581 = vrot.slane %v1566, 4
    %v1582 = vsel %vm1574, %v1576, %v1581
    %v1583 = vrot.slane %v1567, 4
    %v1584 = vsel %vm1574, %v1579, %v1583
    %v1589 = vld [vmem:[#allocation13] sm:$0xff]
    %v1590 = vld [vmem:[#allocation13 + $0x8] sm:$0xff]
    %v1591 = vld [vmem:[#allocation13 + $0x10] sm:$0xff]
    %v1592 = vld [vmem:[#allocation13 + $0x18] sm:$0xff]
    %v1593 = vld [vmem:[#allocation13 + $0x20] sm:$0xff]
    %v1594 = vld [vmem:[#allocation13 + $0x28] sm:$0xff]
    %v1595 = vld [vmem:[#allocation13 + $0x30] sm:$0xff]
    %v1596 = vld [vmem:[#allocation13 + $0x38] sm:$0xff]
    %v1597 = vld [vmem:[#allocation13 + $0x40] sm:$0xff]
    %v1598 = vld [vmem:[#allocation13 + $0x48] sm:$0xff]
    %v1599 = vld [vmem:[#allocation13 + $0x50] sm:$0xff]
    %v1600 = vld [vmem:[#allocation13 + $0x58] sm:$0xff]
    %v1601 = vld [vmem:[#allocation13 + $0x60] sm:$0xff]
    %v1602 = vld [vmem:[#allocation13 + $0x68] sm:$0xff]
    %v1603 = vld [vmem:[#allocation13 + $0x70] sm:$0xff]
    %v1604 = vld [vmem:[#allocation13 + $0x78] sm:$0xff]
    %v1605 = vld [vmem:[#allocation13 + $0x80] sm:$0xff]
    %v1606 = vld [vmem:[#allocation13 + $0x88] sm:$0xff]
    %v1607 = vld [vmem:[#allocation13 + $0x90] sm:$0xff]
    %v1608 = vld [vmem:[#allocation13 + $0x98] sm:$0xff]
    %v1609 = vld [vmem:[#allocation13 + $0xa0] sm:$0xff]
    %v1610 = vld [vmem:[#allocation13 + $0xa8] sm:$0xff]
    %v1611 = vld [vmem:[#allocation13 + $0xb0] sm:$0xff]
    %v1612 = vld [vmem:[#allocation13 + $0xb8] sm:$0xff]
    %v1613 = vld [vmem:[#allocation13 + $0xc0] sm:$0xff]
    %v1614 = vld [vmem:[#allocation13 + $0xc8] sm:$0xff]
    %v1615 = vld [vmem:[#allocation13 + $0xd0] sm:$0xff]
    %v1616 = vld [vmem:[#allocation13 + $0xd8] sm:$0xff]
    %v1617 = vld [vmem:[#allocation13 + $0xe0] sm:$0xff]
    %v1618 = vld [vmem:[#allocation13 + $0xe8] sm:$0xff]
    %v1619 = vld [vmem:[#allocation13 + $0xf0] sm:$0xff]
    %v1620 = vld [vmem:[#allocation13 + $0xf8] sm:$0xff]
    %v1621 = vld [vmem:[#allocation13 + $0x100] sm:$0xff]
    %v1622 = vld [vmem:[#allocation13 + $0x108] sm:$0xff]
    %v1623 = vld [vmem:[#allocation13 + $0x110] sm:$0xff]
    %v1624 = vld [vmem:[#allocation13 + $0x118] sm:$0xff]
    %v1625 = vld [vmem:[#allocation13 + $0x120] sm:$0xff]
    %v1626 = vld [vmem:[#allocation13 + $0x128] sm:$0xff]
    %v1627 = vld [vmem:[#allocation13 + $0x130] sm:$0xff]
    %v1628 = vld [vmem:[#allocation13 + $0x138] sm:$0xff]
    %v1629 = vld [vmem:[#allocation13 + $0x140] sm:$0xff]
    %v1630 = vld [vmem:[#allocation13 + $0x148] sm:$0xff]
    %v1631 = vld [vmem:[#allocation13 + $0x150] sm:$0xff]
    %v1632 = vld [vmem:[#allocation13 + $0x158] sm:$0xff]
    %v1633 = vld [vmem:[#allocation13 + $0x160] sm:$0xff]
    %v1634 = vld [vmem:[#allocation13 + $0x168] sm:$0xff]
    %v1635 = vld [vmem:[#allocation13 + $0x170] sm:$0xff]
    %v1636 = vld [vmem:[#allocation13 + $0x178] sm:$0xff]
    %v1637 = vld [vmem:[#allocation13 + $0x180] sm:$0xff]
    %v1638 = vld [vmem:[#allocation13 + $0x188] sm:$0xff]
    %v1639 = vld [vmem:[#allocation13 + $0x190] sm:$0xff]
    %v1640 = vld [vmem:[#allocation13 + $0x198] sm:$0xff]
    %v1641 = vld [vmem:[#allocation13 + $0x1a0] sm:$0xff]
    %v1642 = vld [vmem:[#allocation13 + $0x1a8] sm:$0xff]
    %v1643 = vld [vmem:[#allocation13 + $0x1b0] sm:$0xff]
    %v1644 = vld [vmem:[#allocation13 + $0x1b8] sm:$0xff]
    %v1645 = vld [vmem:[#allocation13 + $0x1c0] sm:$0xff]
    %v1646 = vld [vmem:[#allocation13 + $0x1c8] sm:$0xff]
    %v1647 = vld [vmem:[#allocation13 + $0x1d0] sm:$0xff]
    %v1648 = vld [vmem:[#allocation13 + $0x1d8] sm:$0xff]
    %v1649 = vld [vmem:[#allocation13 + $0x1e0] sm:$0xff]
    %v1650 = vld [vmem:[#allocation13 + $0x1e8] sm:$0xff]
    %v1651 = vld [vmem:[#allocation13 + $0x1f0] sm:$0xff]
    %v1652 = vld [vmem:[#allocation13 + $0x1f8] sm:$0xff]
    %v1653 = vld [vmem:[#allocation2] sm:$0xfe]
    %v1654 = vld [vmem:[#allocation2 + $0x8] sm:$0xfe]
    %v1655 = vld [vmem:[#allocation2 + $0x20] sm:$0x1]
    %v1656 = vld [vmem:[#allocation2 + $0x28] sm:$0x1]
    %v1657 = vld [vmem:[#allocation2 + $0x20] sm:$0xe0]
    %v1658 = vld [vmem:[#allocation2 + $0x28] sm:$0xe0]
    %v1659 = vld [vmem:[#allocation2 + $0x40] sm:$0x1f]
    %v1660 = vld [vmem:[#allocation2 + $0x48] sm:$0x1f]
    %v1667 = vrot.slane %v1653, 1
    %v1668 = vrot.slane %v1560, 1
    %v1669 = vsel %vm720, %v1667, %v1668
    %v1670 = vrot.slane %v1654, 1
    %v1671 = vrot.slane %v1561, 1
    %v1672 = vsel %vm720, %v1670, %v1671
    %v1673 = vrot.slane %v1655, 1
    %v1674 = vsel %vm720, %v1668, %v1673
    %v1675 = vrot.slane %v1656, 1
    %v1676 = vsel %vm720, %v1671, %v1675
    %v1685 = vrot.slane %v1657, 5
    %v1686 = vrot.slane %v1564, 5
    %v1687 = vsel %vm741, %v1685, %v1686
    %v1688 = vrot.slane %v1658, 5
    %v1689 = vrot.slane %v1565, 5
    %v1690 = vsel %vm741, %v1688, %v1689
    %v1691 = vrot.slane %v1659, 5
    %v1692 = vsel %vm741, %v1686, %v1691
    %v1693 = vrot.slane %v1660, 5
    %v1694 = vsel %vm741, %v1689, %v1693
    %s1699 = scalar_lea.vmem [#allocation13], 512
    %v1700 = vld [vmem:[%s1699] sm:$0xff]
    %v1701 = vld [vmem:[%s1699 + $0x8] sm:$0xff]
    %v1702 = vld [vmem:[%s1699 + $0x10] sm:$0xff]
    %v1703 = vld [vmem:[%s1699 + $0x18] sm:$0xff]
    %v1704 = vld [vmem:[%s1699 + $0x20] sm:$0xff]
    %v1705 = vld [vmem:[%s1699 + $0x28] sm:$0xff]
    %v1706 = vld [vmem:[%s1699 + $0x30] sm:$0xff]
    %v1707 = vld [vmem:[%s1699 + $0x38] sm:$0xff]
    %v1708 = vld [vmem:[%s1699 + $0x40] sm:$0xff]
    %v1709 = vld [vmem:[%s1699 + $0x48] sm:$0xff]
    %v1710 = vld [vmem:[%s1699 + $0x50] sm:$0xff]
    %v1711 = vld [vmem:[%s1699 + $0x58] sm:$0xff]
    %v1712 = vld [vmem:[%s1699 + $0x60] sm:$0xff]
    %v1713 = vld [vmem:[%s1699 + $0x68] sm:$0xff]
    %v1714 = vld [vmem:[%s1699 + $0x70] sm:$0xff]
    %v1715 = vld [vmem:[%s1699 + $0x78] sm:$0xff]
    %v1716 = vld [vmem:[%s1699 + $0x80] sm:$0xff]
    %v1717 = vld [vmem:[%s1699 + $0x88] sm:$0xff]
    %v1718 = vld [vmem:[%s1699 + $0x90] sm:$0xff]
    %v1719 = vld [vmem:[%s1699 + $0x98] sm:$0xff]
    %v1720 = vld [vmem:[%s1699 + $0xa0] sm:$0xff]
    %v1721 = vld [vmem:[%s1699 + $0xa8] sm:$0xff]
    %v1722 = vld [vmem:[%s1699 + $0xb0] sm:$0xff]
    %v1723 = vld [vmem:[%s1699 + $0xb8] sm:$0xff]
    %v1724 = vld [vmem:[%s1699 + $0xc0] sm:$0xff]
    %v1725 = vld [vmem:[%s1699 + $0xc8] sm:$0xff]
    %v1726 = vld [vmem:[%s1699 + $0xd0] sm:$0xff]
    %v1727 = vld [vmem:[%s1699 + $0xd8] sm:$0xff]
    %v1728 = vld [vmem:[%s1699 + $0xe0] sm:$0xff]
    %v1729 = vld [vmem:[%s1699 + $0xe8] sm:$0xff]
    %v1730 = vld [vmem:[%s1699 + $0xf0] sm:$0xff]
    %v1731 = vld [vmem:[%s1699 + $0xf8] sm:$0xff]
    %v1732 = vld [vmem:[%s1699 + $0x100] sm:$0xff]
    %v1733 = vld [vmem:[%s1699 + $0x108] sm:$0xff]
    %v1734 = vld [vmem:[%s1699 + $0x110] sm:$0xff]
    %v1735 = vld [vmem:[%s1699 + $0x118] sm:$0xff]
    %v1736 = vld [vmem:[%s1699 + $0x120] sm:$0xff]
    %v1737 = vld [vmem:[%s1699 + $0x128] sm:$0xff]
    %v1738 = vld [vmem:[%s1699 + $0x130] sm:$0xff]
    %v1739 = vld [vmem:[%s1699 + $0x138] sm:$0xff]
    %v1740 = vld [vmem:[%s1699 + $0x140] sm:$0xff]
    %v1741 = vld [vmem:[%s1699 + $0x148] sm:$0xff]
    %v1742 = vld [vmem:[%s1699 + $0x150] sm:$0xff]
    %v1743 = vld [vmem:[%s1699 + $0x158] sm:$0xff]
    %v1744 = vld [vmem:[%s1699 + $0x160] sm:$0xff]
    %v1745 = vld [vmem:[%s1699 + $0x168] sm:$0xff]
    %v1746 = vld [vmem:[%s1699 + $0x170] sm:$0xff]
    %v1747 = vld [vmem:[%s1699 + $0x178] sm:$0xff]
    %v1748 = vld [vmem:[%s1699 + $0x180] sm:$0xff]
    %v1749 = vld [vmem:[%s1699 + $0x188] sm:$0xff]
    %v1750 = vld [vmem:[%s1699 + $0x190] sm:$0xff]
    %v1751 = vld [vmem:[%s1699 + $0x198] sm:$0xff]
    %v1752 = vld [vmem:[%s1699 + $0x1a0] sm:$0xff]
    %v1753 = vld [vmem:[%s1699 + $0x1a8] sm:$0xff]
    %v1754 = vld [vmem:[%s1699 + $0x1b0] sm:$0xff]
    %v1755 = vld [vmem:[%s1699 + $0x1b8] sm:$0xff]
    %v1756 = vld [vmem:[%s1699 + $0x1c0] sm:$0xff]
    %v1757 = vld [vmem:[%s1699 + $0x1c8] sm:$0xff]
    %v1758 = vld [vmem:[%s1699 + $0x1d0] sm:$0xff]
    %v1759 = vld [vmem:[%s1699 + $0x1d8] sm:$0xff]
    %v1760 = vld [vmem:[%s1699 + $0x1e0] sm:$0xff]
    %v1761 = vld [vmem:[%s1699 + $0x1e8] sm:$0xff]
    %v1762 = vld [vmem:[%s1699 + $0x1f0] sm:$0xff]
    %v1763 = vld [vmem:[%s1699 + $0x1f8] sm:$0xff]
    %1764 = vmatprep.subr.mxu0 %v1701
    %1765 = vmatpush1.msra.mxu0 %v1700
    %1766 = vmatprep.subr.mxu0 %v1703
    %1767 = vmatpush1.msra.mxu0 %v1702
    %1768 = vmatprep.subr.mxu0 %v1705
    %1769 = vmatpush1.msra.mxu0 %v1704
    %1770 = vmatprep.subr.mxu0 %v1707
    %1771 = vmatpush1.msra.mxu0 %v1706
    %1772 = vmatprep.subr.mxu0 %v1709
    %1773 = vmatpush1.msra.mxu0 %v1708
    %1774 = vmatprep.subr.mxu0 %v1711
    %1775 = vmatpush1.msra.mxu0 %v1710
    %1776 = vmatprep.subr.mxu0 %v1713
    %1777 = vmatpush1.msra.mxu0 %v1712
    %1778 = vmatprep.subr.mxu0 %v1715
    %1779 = vmatpush1.msra.mxu0 %v1714
    %1780 = vmatprep.subr.mxu0 %v1717
    %1781 = vmatpush1.msra.mxu0 %v1716
    %1782 = vmatprep.subr.mxu0 %v1719
    %1783 = vmatpush1.msra.mxu0 %v1718
    %1784 = vmatprep.subr.mxu0 %v1721
    %1785 = vmatpush1.msra.mxu0 %v1720
    %1786 = vmatprep.subr.mxu0 %v1723
    %1787 = vmatpush1.msra.mxu0 %v1722
    %1788 = vmatprep.subr.mxu0 %v1725
    %1789 = vmatpush1.msra.mxu0 %v1724
    %1790 = vmatprep.subr.mxu0 %v1727
    %1791 = vmatpush1.msra.mxu0 %v1726
    %1792 = vmatprep.subr.mxu0 %v1729
    %1793 = vmatpush1.msra.mxu0 %v1728
    %1794 = vmatprep.subr.mxu0 %v1731
    %1795 = vmatpush1.msra.mxu0 %v1730
    %1796 = vmatprep.subr.mxu0 %v1733
    %1797 = vmatpush1.msra.mxu0 %v1732
    %1798 = vmatprep.subr.mxu0 %v1735
    %1799 = vmatpush1.msra.mxu0 %v1734
    %1800 = vmatprep.subr.mxu0 %v1737
    %1801 = vmatpush1.msra.mxu0 %v1736
    %1802 = vmatprep.subr.mxu0 %v1739
    %1803 = vmatpush1.msra.mxu0 %v1738
    %1804 = vmatprep.subr.mxu0 %v1741
    %1805 = vmatpush1.msra.mxu0 %v1740
    %1806 = vmatprep.subr.mxu0 %v1743
    %1807 = vmatpush1.msra.mxu0 %v1742
    %1808 = vmatprep.subr.mxu0 %v1745
    %1809 = vmatpush1.msra.mxu0 %v1744
    %1810 = vmatprep.subr.mxu0 %v1747
    %1811 = vmatpush1.msra.mxu0 %v1746
    %1812 = vmatprep.subr.mxu0 %v1749
    %1813 = vmatpush1.msra.mxu0 %v1748
    %1814 = vmatprep.subr.mxu0 %v1751
    %1815 = vmatpush1.msra.mxu0 %v1750
    %1816 = vmatprep.subr.mxu0 %v1753
    %1817 = vmatpush1.msra.mxu0 %v1752
    %1818 = vmatprep.subr.mxu0 %v1755
    %1819 = vmatpush1.msra.mxu0 %v1754
    %1820 = vmatprep.subr.mxu0 %v1757
    %1821 = vmatpush1.msra.mxu0 %v1756
    %1822 = vmatprep.subr.mxu0 %v1759
    %1823 = vmatpush1.msra.mxu0 %v1758
    %1824 = vmatprep.subr.mxu0 %v1761
    %1825 = vmatpush1.msra.mxu0 %v1760
    %1826 = vmatprep.subr.mxu0 %v1763
    %1827 = vmatpush1.msra.mxu0 %v1762
    %1828 = vmatprep.mubr.f32.mxu0 %v1672
    %1829 = vmatmul.mubr.f32.gmra.mrb[0].mxu0 %v1669
    %v1830 = vpop.f32.mrb[0].mxu0
    %v1831 = vadd.f32 0.0, %v1830
    %v1832 = vpop.f32.mrb[0].mxu0
    %v1833 = vadd.f32 0.0, %v1832
    %1834 = vmatprep.mubr.f32.mxu0 %v1676
    %1835 = vmatmul.mubr.f32.gmra.mrb[0].mxu0 %v1674
    %v1836 = vpop.f32.mrb[0].mxu0
    %v1837 = vadd.f32 0.0, %v1836
    %v1838 = vpop.f32.mrb[0].mxu0
    %v1839 = vadd.f32 0.0, %v1838
    %1840 = vmatprep.mubr.f32.mxu0 %v1690
    %1841 = vmatmul.mubr.f32.gmra.mrb[0].mxu0 %v1687
    %v1842 = vpop.f32.mrb[0].mxu0
    %v1843 = vadd.f32 0.0, %v1842
    %v1844 = vpop.f32.mrb[0].mxu0
    %v1845 = vadd.f32 0.0, %v1844
    %1846 = vmatprep.mubr.f32.mxu0 %v1694
    %1847 = vmatmul.mubr.f32.gmra.mrb[0].mxu0 %v1692
    %v1848 = vpop.f32.mrb[0].mxu0
    %v1849 = vadd.f32 0.0, %v1848
    %v1850 = vpop.f32.mrb[0].mxu0
    %v1851 = vadd.f32 0.0, %v1850
    %1852 = vdwg.mxu0
    %1853 = vmatprep.subr.mxu0 %v1590
    %1854 = vmatpush1.msra.mxu0 %v1589
    %1855 = vmatprep.subr.mxu0 %v1592
    %1856 = vmatpush1.msra.mxu0 %v1591
    %1857 = vmatprep.subr.mxu0 %v1594
    %1858 = vmatpush1.msra.mxu0 %v1593
    %1859 = vmatprep.subr.mxu0 %v1596
    %1860 = vmatpush1.msra.mxu0 %v1595
    %1861 = vmatprep.subr.mxu0 %v1598
    %1862 = vmatpush1.msra.mxu0 %v1597
    %1863 = vmatprep.subr.mxu0 %v1600
    %1864 = vmatpush1.msra.mxu0 %v1599
    %1865 = vmatprep.subr.mxu0 %v1602
    %1866 = vmatpush1.msra.mxu0 %v1601
    %1867 = vmatprep.subr.mxu0 %v1604
    %1868 = vmatpush1.msra.mxu0 %v1603
    %1869 = vmatprep.subr.mxu0 %v1606
    %1870 = vmatpush1.msra.mxu0 %v1605
    %1871 = vmatprep.subr.mxu0 %v1608
    %1872 = vmatpush1.msra.mxu0 %v1607
    %1873 = vmatprep.subr.mxu0 %v1610
    %1874 = vmatpush1.msra.mxu0 %v1609
    %1875 = vmatprep.subr.mxu0 %v1612
    %1876 = vmatpush1.msra.mxu0 %v1611
    %1877 = vmatprep.subr.mxu0 %v1614
    %1878 = vmatpush1.msra.mxu0 %v1613
    %1879 = vmatprep.subr.mxu0 %v1616
    %1880 = vmatpush1.msra.mxu0 %v1615
    %1881 = vmatprep.subr.mxu0 %v1618
    %1882 = vmatpush1.msra.mxu0 %v1617
    %1883 = vmatprep.subr.mxu0 %v1620
    %1884 = vmatpush1.msra.mxu0 %v1619
    %1885 = vmatprep.subr.mxu0 %v1622
    %1886 = vmatpush1.msra.mxu0 %v1621
    %1887 = vmatprep.subr.mxu0 %v1624
    %1888 = vmatpush1.msra.mxu0 %v1623
    %1889 = vmatprep.subr.mxu0 %v1626
    %1890 = vmatpush1.msra.mxu0 %v1625
    %1891 = vmatprep.subr.mxu0 %v1628
    %1892 = vmatpush1.msra.mxu0 %v1627
    %1893 = vmatprep.subr.mxu0 %v1630
    %1894 = vmatpush1.msra.mxu0 %v1629
    %1895 = vmatprep.subr.mxu0 %v1632
    %1896 = vmatpush1.msra.mxu0 %v1631
    %1897 = vmatprep.subr.mxu0 %v1634
    %1898 = vmatpush1.msra.mxu0 %v1633
    %1899 = vmatprep.subr.mxu0 %v1636
    %1900 = vmatpush1.msra.mxu0 %v1635
    %1901 = vmatprep.subr.mxu0 %v1638
    %1902 = vmatpush1.msra.mxu0 %v1637
    %1903 = vmatprep.subr.mxu0 %v1640
    %1904 = vmatpush1.msra.mxu0 %v1639
    %1905 = vmatprep.subr.mxu0 %v1642
    %1906 = vmatpush1.msra.mxu0 %v1641
    %1907 = vmatprep.subr.mxu0 %v1644
    %1908 = vmatpush1.msra.mxu0 %v1643
    %1909 = vmatprep.subr.mxu0 %v1646
    %1910 = vmatpush1.msra.mxu0 %v1645
    %1911 = vmatprep.subr.mxu0 %v1648
    %1912 = vmatpush1.msra.mxu0 %v1647
    %1913 = vmatprep.subr.mxu0 %v1650
    %1914 = vmatpush1.msra.mxu0 %v1649
    %1915 = vmatprep.subr.mxu0 %v1652
    %1916 = vmatpush1.msra.mxu0 %v1651
    %1917 = vmatprep.mubr.f32.mxu0 %v1559
    %1918 = vmatmul.mubr.f32.gmra.mrb[0].mxu0 %v1558
    %v1919 = vpop.f32.mrb[0].mxu0
    %v1920 = vadd.f32 %v1831, %v1919
    %v1921 = vpop.f32.mrb[0].mxu0
    %v1922 = vadd.f32 %v1833, %v1921
    %1923 = vmatprep.mubr.f32.mxu0 %v1561
    %1924 = vmatmul.mubr.f32.gmra.mrb[0].mxu0 %v1560
    %v1925 = vpop.f32.mrb[0].mxu0
    %v1926 = vadd.f32 %v1837, %v1925
    %v1927 = vpop.f32.mrb[0].mxu0
    %v1928 = vadd.f32 %v1839, %v1927
    %1929 = vmatprep.mubr.f32.mxu0 %v1580
    %1930 = vmatmul.mubr.f32.gmra.mrb[0].mxu0 %v1577
    %v1931 = vpop.f32.mrb[0].mxu0
    %v1932 = vadd.f32 %v1843, %v1931
    %v1933 = vpop.f32.mrb[0].mxu0
    %v1934 = vadd.f32 %v1845, %v1933
    %1935 = vmatprep.mubr.f32.mxu0 %v1584
    %1936 = vmatmul.mubr.f32.gmra.mrb[0].mxu0 %v1582
    %v1937 = vpop.f32.mrb[0].mxu0
    %v1938 = vadd.f32 %v1849, %v1937
    %v1939 = vpop.f32.mrb[0].mxu0
    %v1940 = vadd.f32 %v1851, %v1939
    %1941 = vdwg.mxu0
    %v1942 = vld [vmem:[#allocation2] sm:$0xfc]
    %v1943 = vld [vmem:[#allocation2 + $0x8] sm:$0xfc]
    %v1944 = vld [vmem:[#allocation2 + $0x20] sm:$0x3]
    %v1945 = vld [vmem:[#allocation2 + $0x28] sm:$0x3]
    %v1946 = vld [vmem:[#allocation2 + $0x20] sm:$0xc0]
    %v1947 = vld [vmem:[#allocation2 + $0x28] sm:$0xc0]
    %v1948 = vld [vmem:[#allocation2 + $0x40] sm:$0x3f]
    %v1949 = vld [vmem:[#allocation2 + $0x48] sm:$0x3f]
    %v1954 = vrot.slane %v1942, 2
    %v1955 = vrot.slane %v1560, 2
    %v1956 = vsel %vm194, %v1954, %v1955
    %v1957 = vrot.slane %v1943, 2
    %v1958 = vrot.slane %v1561, 2
    %v1959 = vsel %vm194, %v1957, %v1958
    %v1960 = vrot.slane %v1944, 2
    %v1961 = vsel %vm194, %v1955, %v1960
    %v1962 = vrot.slane %v1945, 2
    %v1963 = vsel %vm194, %v1958, %v1962
    %v1972 = vrot.slane %v1946, 6
    %v1973 = vrot.slane %v1564, 6
    %v1974 = vsel %vm179, %v1972, %v1973
    %v1975 = vrot.slane %v1947, 6
    %v1976 = vrot.slane %v1565, 6
    %v1977 = vsel %vm179, %v1975, %v1976
    %v1978 = vrot.slane %v1948, 6
    %v1979 = vsel %vm179, %v1973, %v1978
    %v1980 = vrot.slane %v1949, 6
    %v1981 = vsel %vm179, %v1976, %v1980
    %s1986 = scalar_lea.vmem [#allocation13], 1024
    %v1987 = vld [vmem:[%s1986] sm:$0xff]
    %v1988 = vld [vmem:[%s1986 + $0x8] sm:$0xff]
    %v1989 = vld [vmem:[%s1986 + $0x10] sm:$0xff]
    %v1990 = vld [vmem:[%s1986 + $0x18] sm:$0xff]
    %v1991 = vld [vmem:[%s1986 + $0x20] sm:$0xff]
    %v1992 = vld [vmem:[%s1986 + $0x28] sm:$0xff]
    %v1993 = vld [vmem:[%s1986 + $0x30] sm:$0xff]
    %v1994 = vld [vmem:[%s1986 + $0x38] sm:$0xff]
    %v1995 = vld [vmem:[%s1986 + $0x40] sm:$0xff]
    %v1996 = vld [vmem:[%s1986 + $0x48] sm:$0xff]
    %v1997 = vld [vmem:[%s1986 + $0x50] sm:$0xff]
    %v1998 = vld [vmem:[%s1986 + $0x58] sm:$0xff]
    %v1999 = vld [vmem:[%s1986 + $0x60] sm:$0xff]
    %v2000 = vld [vmem:[%s1986 + $0x68] sm:$0xff]
    %v2001 = vld [vmem:[%s1986 + $0x70] sm:$0xff]
    %v2002 = vld [vmem:[%s1986 + $0x78] sm:$0xff]
    %v2003 = vld [vmem:[%s1986 + $0x80] sm:$0xff]
    %v2004 = vld [vmem:[%s1986 + $0x88] sm:$0xff]
    %v2005 = vld [vmem:[%s1986 + $0x90] sm:$0xff]
    %v2006 = vld [vmem:[%s1986 + $0x98] sm:$0xff]
    %v2007 = vld [vmem:[%s1986 + $0xa0] sm:$0xff]
    %v2008 = vld [vmem:[%s1986 + $0xa8] sm:$0xff]
    %v2009 = vld [vmem:[%s1986 + $0xb0] sm:$0xff]
    %v2010 = vld [vmem:[%s1986 + $0xb8] sm:$0xff]
    %v2011 = vld [vmem:[%s1986 + $0xc0] sm:$0xff]
    %v2012 = vld [vmem:[%s1986 + $0xc8] sm:$0xff]
    %v2013 = vld [vmem:[%s1986 + $0xd0] sm:$0xff]
    %v2014 = vld [vmem:[%s1986 + $0xd8] sm:$0xff]
    %v2015 = vld [vmem:[%s1986 + $0xe0] sm:$0xff]
    %v2016 = vld [vmem:[%s1986 + $0xe8] sm:$0xff]
    %v2017 = vld [vmem:[%s1986 + $0xf0] sm:$0xff]
    %v2018 = vld [vmem:[%s1986 + $0xf8] sm:$0xff]
    %v2019 = vld [vmem:[%s1986 + $0x100] sm:$0xff]
    %v2020 = vld [vmem:[%s1986 + $0x108] sm:$0xff]
    %v2021 = vld [vmem:[%s1986 + $0x110] sm:$0xff]
    %v2022 = vld [vmem:[%s1986 + $0x118] sm:$0xff]
    %v2023 = vld [vmem:[%s1986 + $0x120] sm:$0xff]
    %v2024 = vld [vmem:[%s1986 + $0x128] sm:$0xff]
    %v2025 = vld [vmem:[%s1986 + $0x130] sm:$0xff]
    %v2026 = vld [vmem:[%s1986 + $0x138] sm:$0xff]
    %v2027 = vld [vmem:[%s1986 + $0x140] sm:$0xff]
    %v2028 = vld [vmem:[%s1986 + $0x148] sm:$0xff]
    %v2029 = vld [vmem:[%s1986 + $0x150] sm:$0xff]
    %v2030 = vld [vmem:[%s1986 + $0x158] sm:$0xff]
    %v2031 = vld [vmem:[%s1986 + $0x160] sm:$0xff]
    %v2032 = vld [vmem:[%s1986 + $0x168] sm:$0xff]
    %v2033 = vld [vmem:[%s1986 + $0x170] sm:$0xff]
    %v2034 = vld [vmem:[%s1986 + $0x178] sm:$0xff]
    %v2035 = vld [vmem:[%s1986 + $0x180] sm:$0xff]
    %v2036 = vld [vmem:[%s1986 + $0x188] sm:$0xff]
    %v2037 = vld [vmem:[%s1986 + $0x190] sm:$0xff]
    %v2038 = vld [vmem:[%s1986 + $0x198] sm:$0xff]
    %v2039 = vld [vmem:[%s1986 + $0x1a0] sm:$0xff]
    %v2040 = vld [vmem:[%s1986 + $0x1a8] sm:$0xff]
    %v2041 = vld [vmem:[%s1986 + $0x1b0] sm:$0xff]
    %v2042 = vld [vmem:[%s1986 + $0x1b8] sm:$0xff]
    %v2043 = vld [vmem:[%s1986 + $0x1c0] sm:$0xff]
    %v2044 = vld [vmem:[%s1986 + $0x1c8] sm:$0xff]
    %v2045 = vld [vmem:[%s1986 + $0x1d0] sm:$0xff]
    %v2046 = vld [vmem:[%s1986 + $0x1d8] sm:$0xff]
    %v2047 = vld [vmem:[%s1986 + $0x1e0] sm:$0xff]
    %v2048 = vld [vmem:[%s1986 + $0x1e8] sm:$0xff]
    %v2049 = vld [vmem:[%s1986 + $0x1f0] sm:$0xff]
    %v2050 = vld [vmem:[%s1986 + $0x1f8] sm:$0xff]
    %2051 = vmatprep.subr.mxu0 %v1988
    %2052 = vmatpush1.msra.mxu0 %v1987
    %2053 = vmatprep.subr.mxu0 %v1990
    %2054 = vmatpush1.msra.mxu0 %v1989
    %2055 = vmatprep.subr.mxu0 %v1992
    %2056 = vmatpush1.msra.mxu0 %v1991
    %2057 = vmatprep.subr.mxu0 %v1994
    %2058 = vmatpush1.msra.mxu0 %v1993
    %2059 = vmatprep.subr.mxu0 %v1996
    %2060 = vmatpush1.msra.mxu0 %v1995
    %2061 = vmatprep.subr.mxu0 %v1998
    %2062 = vmatpush1.msra.mxu0 %v1997
    %2063 = vmatprep.subr.mxu0 %v2000
    %2064 = vmatpush1.msra.mxu0 %v1999
    %2065 = vmatprep.subr.mxu0 %v2002
    %2066 = vmatpush1.msra.mxu0 %v2001
    %2067 = vmatprep.subr.mxu0 %v2004
    %2068 = vmatpush1.msra.mxu0 %v2003
    %2069 = vmatprep.subr.mxu0 %v2006
    %2070 = vmatpush1.msra.mxu0 %v2005
    %2071 = vmatprep.subr.mxu0 %v2008
    %2072 = vmatpush1.msra.mxu0 %v2007
    %2073 = vmatprep.subr.mxu0 %v2010
    %2074 = vmatpush1.msra.mxu0 %v2009
    %2075 = vmatprep.subr.mxu0 %v2012
    %2076 = vmatpush1.msra.mxu0 %v2011
    %2077 = vmatprep.subr.mxu0 %v2014
    %2078 = vmatpush1.msra.mxu0 %v2013
    %2079 = vmatprep.subr.mxu0 %v2016
    %2080 = vmatpush1.msra.mxu0 %v2015
    %2081 = vmatprep.subr.mxu0 %v2018
    %2082 = vmatpush1.msra.mxu0 %v2017
    %2083 = vmatprep.subr.mxu0 %v2020
    %2084 = vmatpush1.msra.mxu0 %v2019
    %2085 = vmatprep.subr.mxu0 %v2022
    %2086 = vmatpush1.msra.mxu0 %v2021
    %2087 = vmatprep.subr.mxu0 %v2024
    %2088 = vmatpush1.msra.mxu0 %v2023
    %2089 = vmatprep.subr.mxu0 %v2026
    %2090 = vmatpush1.msra.mxu0 %v2025
    %2091 = vmatprep.subr.mxu0 %v2028
    %2092 = vmatpush1.msra.mxu0 %v2027
    %2093 = vmatprep.subr.mxu0 %v2030
    %2094 = vmatpush1.msra.mxu0 %v2029
    %2095 = vmatprep.subr.mxu0 %v2032
    %2096 = vmatpush1.msra.mxu0 %v2031
    %2097 = vmatprep.subr.mxu0 %v2034
    %2098 = vmatpush1.msra.mxu0 %v2033
    %2099 = vmatprep.subr.mxu0 %v2036
    %2100 = vmatpush1.msra.mxu0 %v2035
    %2101 = vmatprep.subr.mxu0 %v2038
    %2102 = vmatpush1.msra.mxu0 %v2037
    %2103 = vmatprep.subr.mxu0 %v2040
    %2104 = vmatpush1.msra.mxu0 %v2039
    %2105 = vmatprep.subr.mxu0 %v2042
    %2106 = vmatpush1.msra.mxu0 %v2041
    %2107 = vmatprep.subr.mxu0 %v2044
    %2108 = vmatpush1.msra.mxu0 %v2043
    %2109 = vmatprep.subr.mxu0 %v2046
    %2110 = vmatpush1.msra.mxu0 %v2045
    %2111 = vmatprep.subr.mxu0 %v2048
    %2112 = vmatpush1.msra.mxu0 %v2047
    %2113 = vmatprep.subr.mxu0 %v2050
    %2114 = vmatpush1.msra.mxu0 %v2049
    %2115 = vmatprep.mubr.f32.mxu0 %v1959
    %2116 = vmatmul.mubr.f32.gmra.mrb[0].mxu0 %v1956
    %v2117 = vpop.f32.mrb[0].mxu0
    %v2118 = vadd.f32 0.0, %v2117
    %v2119 = vpop.f32.mrb[0].mxu0
    %v2120 = vadd.f32 0.0, %v2119
    %2121 = vmatprep.mubr.f32.mxu0 %v1963
    %2122 = vmatmul.mubr.f32.gmra.mrb[0].mxu0 %v1961
    %v2123 = vpop.f32.mrb[0].mxu0
    %v2124 = vadd.f32 0.0, %v2123
    %v2125 = vpop.f32.mrb[0].mxu0
    %v2126 = vadd.f32 0.0, %v2125
    %2127 = vmatprep.mubr.f32.mxu0 %v1977
    %2128 = vmatmul.mubr.f32.gmra.mrb[0].mxu0 %v1974
    %v2129 = vpop.f32.mrb[0].mxu0
    %v2130 = vadd.f32 0.0, %v2129
    %v2131 = vpop.f32.mrb[0].mxu0
    %v2132 = vadd.f32 0.0, %v2131
    %2133 = vmatprep.mubr.f32.mxu0 %v1981
    %2134 = vmatmul.mubr.f32.gmra.mrb[0].mxu0 %v1979
    %v2135 = vpop.f32.mrb[0].mxu0
    %v2136 = vadd.f32 0.0, %v2135
    %v2137 = vpop.f32.mrb[0].mxu0
    %v2138 = vadd.f32 0.0, %v2137
    %2139 = vdwg.mxu0
    %v2140 = vadd.f32 %v1920, %v2118
    %v2141 = vadd.f32 %v1922, %v2120
    %v2142 = vadd.f32 %v1926, %v2124
    %v2143 = vadd.f32 %v1928, %v2126
    %v2144 = vadd.f32 %v1932, %v2130
    %v2145 = vadd.f32 %v1934, %v2132
    %v2146 = vadd.f32 %v1938, %v2136
    %v2147 = vadd.f32 %v1940, %v2138
    %v2148 = vld [vmem:[#allocation2] sm:$0xf8]
    %v2149 = vld [vmem:[#allocation2 + $0x8] sm:$0xf8]
    %v2150 = vld [vmem:[#allocation2 + $0x20] sm:$0x7]
    %v2151 = vld [vmem:[#allocation2 + $0x28] sm:$0x7]
    %v2152 = vld [vmem:[#allocation2 + $0x20] sm:$0x80]
    %v2153 = vld [vmem:[#allocation2 + $0x28] sm:$0x80]
    %v2154 = vld [vmem:[#allocation2 + $0x40] sm:$0x7f]
    %v2155 = vld [vmem:[#allocation2 + $0x48] sm:$0x7f]
    %v2160 = vrot.slane %v2148, 3
    %v2161 = vrot.slane %v1560, 3
    %v2162 = vsel %vm238, %v2160, %v2161
    %v2163 = vrot.slane %v2149, 3
    %v2164 = vrot.slane %v1561, 3
    %v2165 = vsel %vm238, %v2163, %v2164
    %v2166 = vrot.slane %v2150, 3
    %v2167 = vsel %vm238, %v2161, %v2166
    %v2168 = vrot.slane %v2151, 3
    %v2169 = vsel %vm238, %v2164, %v2168
    %v2178 = vrot.slane %v2152, 7
    %v2179 = vrot.slane %v1564, 7
    %v2180 = vsel %vm246, %v2178, %v2179
    %v2181 = vrot.slane %v2153, 7
    %v2182 = vrot.slane %v1565, 7
    %v2183 = vsel %vm246, %v2181, %v2182
    %v2184 = vrot.slane %v2154, 7
    %v2185 = vsel %vm246, %v2179, %v2184
    %v2186 = vrot.slane %v2155, 7
    %v2187 = vsel %vm246, %v2182, %v2186
    %s2192 = scalar_lea.vmem [#allocation13], 1536
    %v2193 = vld [vmem:[%s2192] sm:$0xff]
    %v2194 = vld [vmem:[%s2192 + $0x8] sm:$0xff]
    %v2195 = vld [vmem:[%s2192 + $0x10] sm:$0xff]
    %v2196 = vld [vmem:[%s2192 + $0x18] sm:$0xff]
    %v2197 = vld [vmem:[%s2192 + $0x20] sm:$0xff]
    %v2198 = vld [vmem:[%s2192 + $0x28] sm:$0xff]
    %v2199 = vld [vmem:[%s2192 + $0x30] sm:$0xff]
    %v2200 = vld [vmem:[%s2192 + $0x38] sm:$0xff]
    %v2201 = vld [vmem:[%s2192 + $0x40] sm:$0xff]
    %v2202 = vld [vmem:[%s2192 + $0x48] sm:$0xff]
    %v2203 = vld [vmem:[%s2192 + $0x50] sm:$0xff]
    %v2204 = vld [vmem:[%s2192 + $0x58] sm:$0xff]
    %v2205 = vld [vmem:[%s2192 + $0x60] sm:$0xff]
    %v2206 = vld [vmem:[%s2192 + $0x68] sm:$0xff]
    %v2207 = vld [vmem:[%s2192 + $0x70] sm:$0xff]
    %v2208 = vld [vmem:[%s2192 + $0x78] sm:$0xff]
    %v2209 = vld [vmem:[%s2192 + $0x80] sm:$0xff]
    %v2210 = vld [vmem:[%s2192 + $0x88] sm:$0xff]
    %v2211 = vld [vmem:[%s2192 + $0x90] sm:$0xff]
    %v2212 = vld [vmem:[%s2192 + $0x98] sm:$0xff]
    %v2213 = vld [vmem:[%s2192 + $0xa0] sm:$0xff]
    %v2214 = vld [vmem:[%s2192 + $0xa8] sm:$0xff]
    %v2215 = vld [vmem:[%s2192 + $0xb0] sm:$0xff]
    %v2216 = vld [vmem:[%s2192 + $0xb8] sm:$0xff]
    %v2217 = vld [vmem:[%s2192 + $0xc0] sm:$0xff]
    %v2218 = vld [vmem:[%s2192 + $0xc8] sm:$0xff]
    %v2219 = vld [vmem:[%s2192 + $0xd0] sm:$0xff]
    %v2220 = vld [vmem:[%s2192 + $0xd8] sm:$0xff]
    %v2221 = vld [vmem:[%s2192 + $0xe0] sm:$0xff]
    %v2222 = vld [vmem:[%s2192 + $0xe8] sm:$0xff]
    %v2223 = vld [vmem:[%s2192 + $0xf0] sm:$0xff]
    %v2224 = vld [vmem:[%s2192 + $0xf8] sm:$0xff]
    %v2225 = vld [vmem:[%s2192 + $0x100] sm:$0xff]
    %v2226 = vld [vmem:[%s2192 + $0x108] sm:$0xff]
    %v2227 = vld [vmem:[%s2192 + $0x110] sm:$0xff]
    %v2228 = vld [vmem:[%s2192 + $0x118] sm:$0xff]
    %v2229 = vld [vmem:[%s2192 + $0x120] sm:$0xff]
    %v2230 = vld [vmem:[%s2192 + $0x128] sm:$0xff]
    %v2231 = vld [vmem:[%s2192 + $0x130] sm:$0xff]
    %v2232 = vld [vmem:[%s2192 + $0x138] sm:$0xff]
    %v2233 = vld [vmem:[%s2192 + $0x140] sm:$0xff]
    %v2234 = vld [vmem:[%s2192 + $0x148] sm:$0xff]
    %v2235 = vld [vmem:[%s2192 + $0x150] sm:$0xff]
    %v2236 = vld [vmem:[%s2192 + $0x158] sm:$0xff]
    %v2237 = vld [vmem:[%s2192 + $0x160] sm:$0xff]
    %v2238 = vld [vmem:[%s2192 + $0x168] sm:$0xff]
    %v2239 = vld [vmem:[%s2192 + $0x170] sm:$0xff]
    %v2240 = vld [vmem:[%s2192 + $0x178] sm:$0xff]
    %v2241 = vld [vmem:[%s2192 + $0x180] sm:$0xff]
    %v2242 = vld [vmem:[%s2192 + $0x188] sm:$0xff]
    %v2243 = vld [vmem:[%s2192 + $0x190] sm:$0xff]
    %v2244 = vld [vmem:[%s2192 + $0x198] sm:$0xff]
    %v2245 = vld [vmem:[%s2192 + $0x1a0] sm:$0xff]
    %v2246 = vld [vmem:[%s2192 + $0x1a8] sm:$0xff]
    %v2247 = vld [vmem:[%s2192 + $0x1b0] sm:$0xff]
    %v2248 = vld [vmem:[%s2192 + $0x1b8] sm:$0xff]
    %v2249 = vld [vmem:[%s2192 + $0x1c0] sm:$0xff]
    %v2250 = vld [vmem:[%s2192 + $0x1c8] sm:$0xff]
    %v2251 = vld [vmem:[%s2192 + $0x1d0] sm:$0xff]
    %v2252 = vld [vmem:[%s2192 + $0x1d8] sm:$0xff]
    %v2253 = vld [vmem:[%s2192 + $0x1e0] sm:$0xff]
    %v2254 = vld [vmem:[%s2192 + $0x1e8] sm:$0xff]
    %v2255 = vld [vmem:[%s2192 + $0x1f0] sm:$0xff]
    %v2256 = vld [vmem:[%s2192 + $0x1f8] sm:$0xff]
    %2257 = vmatprep.subr.mxu0 %v2194
    %2258 = vmatpush1.msra.mxu0 %v2193
    %2259 = vmatprep.subr.mxu0 %v2196
    %2260 = vmatpush1.msra.mxu0 %v2195
    %2261 = vmatprep.subr.mxu0 %v2198
    %2262 = vmatpush1.msra.mxu0 %v2197
    %2263 = vmatprep.subr.mxu0 %v2200
    %2264 = vmatpush1.msra.mxu0 %v2199
    %2265 = vmatprep.subr.mxu0 %v2202
    %2266 = vmatpush1.msra.mxu0 %v2201
    %2267 = vmatprep.subr.mxu0 %v2204
    %2268 = vmatpush1.msra.mxu0 %v2203
    %2269 = vmatprep.subr.mxu0 %v2206
    %2270 = vmatpush1.msra.mxu0 %v2205
    %2271 = vmatprep.subr.mxu0 %v2208
    %2272 = vmatpush1.msra.mxu0 %v2207
    %2273 = vmatprep.subr.mxu0 %v2210
    %2274 = vmatpush1.msra.mxu0 %v2209
    %2275 = vmatprep.subr.mxu0 %v2212
    %2276 = vmatpush1.msra.mxu0 %v2211
    %2277 = vmatprep.subr.mxu0 %v2214
    %2278 = vmatpush1.msra.mxu0 %v2213
    %2279 = vmatprep.subr.mxu0 %v2216
    %2280 = vmatpush1.msra.mxu0 %v2215
    %2281 = vmatprep.subr.mxu0 %v2218
    %2282 = vmatpush1.msra.mxu0 %v2217
    %2283 = vmatprep.subr.mxu0 %v2220
    %2284 = vmatpush1.msra.mxu0 %v2219
    %2285 = vmatprep.subr.mxu0 %v2222
    %2286 = vmatpush1.msra.mxu0 %v2221
    %2287 = vmatprep.subr.mxu0 %v2224
    %2288 = vmatpush1.msra.mxu0 %v2223
    %2289 = vmatprep.subr.mxu0 %v2226
    %2290 = vmatpush1.msra.mxu0 %v2225
    %2291 = vmatprep.subr.mxu0 %v2228
    %2292 = vmatpush1.msra.mxu0 %v2227
    %2293 = vmatprep.subr.mxu0 %v2230
    %2294 = vmatpush1.msra.mxu0 %v2229
    %2295 = vmatprep.subr.mxu0 %v2232
    %2296 = vmatpush1.msra.mxu0 %v2231
    %2297 = vmatprep.subr.mxu0 %v2234
    %2298 = vmatpush1.msra.mxu0 %v2233
    %2299 = vmatprep.subr.mxu0 %v2236
    %2300 = vmatpush1.msra.mxu0 %v2235
    %2301 = vmatprep.subr.mxu0 %v2238
    %2302 = vmatpush1.msra.mxu0 %v2237
    %2303 = vmatprep.subr.mxu0 %v2240
    %2304 = vmatpush1.msra.mxu0 %v2239
    %2305 = vmatprep.subr.mxu0 %v2242
    %2306 = vmatpush1.msra.mxu0 %v2241
    %2307 = vmatprep.subr.mxu0 %v2244
    %2308 = vmatpush1.msra.mxu0 %v2243
    %2309 = vmatprep.subr.mxu0 %v2246
    %2310 = vmatpush1.msra.mxu0 %v2245
    %2311 = vmatprep.subr.mxu0 %v2248
    %2312 = vmatpush1.msra.mxu0 %v2247
    %2313 = vmatprep.subr.mxu0 %v2250
    %2314 = vmatpush1.msra.mxu0 %v2249
    %2315 = vmatprep.subr.mxu0 %v2252
    %2316 = vmatpush1.msra.mxu0 %v2251
    %2317 = vmatprep.subr.mxu0 %v2254
    %2318 = vmatpush1.msra.mxu0 %v2253
    %2319 = vmatprep.subr.mxu0 %v2256
    %2320 = vmatpush1.msra.mxu0 %v2255
    %2321 = vmatprep.mubr.f32.mxu0 %v2165
    %2322 = vmatmul.mubr.f32.gmra.mrb[0].mxu0 %v2162
    %v2323 = vpop.f32.mrb[0].mxu0
    %v2324 = vadd.f32 0.0, %v2323
    %v2325 = vpop.f32.mrb[0].mxu0
    %v2326 = vadd.f32 0.0, %v2325
    %2327 = vmatprep.mubr.f32.mxu0 %v2169
    %2328 = vmatmul.mubr.f32.gmra.mrb[0].mxu0 %v2167
    %v2329 = vpop.f32.mrb[0].mxu0
    %v2330 = vadd.f32 0.0, %v2329
    %v2331 = vpop.f32.mrb[0].mxu0
    %v2332 = vadd.f32 0.0, %v2331
    %2333 = vmatprep.mubr.f32.mxu0 %v2183
    %2334 = vmatmul.mubr.f32.gmra.mrb[0].mxu0 %v2180
    %v2335 = vpop.f32.mrb[0].mxu0
    %v2336 = vadd.f32 0.0, %v2335
    %v2337 = vpop.f32.mrb[0].mxu0
    %v2338 = vadd.f32 0.0, %v2337
    %2339 = vmatprep.mubr.f32.mxu0 %v2187
    %2340 = vmatmul.mubr.f32.gmra.mrb[0].mxu0 %v2185
    %v2341 = vpop.f32.mrb[0].mxu0
    %v2342 = vadd.f32 0.0, %v2341
    %v2343 = vpop.f32.mrb[0].mxu0
    %v2344 = vadd.f32 0.0, %v2343
    %2345 = vdwg.mxu0
    %v2346 = vadd.f32 %v2140, %v2324
    %v2347 = vadd.f32 %v2141, %v2326
    %v2348 = vadd.f32 %v2142, %v2330
    %v2349 = vadd.f32 %v2143, %v2332
    %v2350 = vadd.f32 %v2144, %v2336
    %v2351 = vadd.f32 %v2145, %v2338
    %v2352 = vadd.f32 %v2146, %v2342
    %v2353 = vadd.f32 %v2147, %v2344
    %v2354 = vld [vmem:[#allocation2] sm:$0xf0]
    %v2355 = vld [vmem:[#allocation2 + $0x8] sm:$0xf0]
    %v2356 = vld [vmem:[#allocation2 + $0x20] sm:$0xf]
    %v2357 = vld [vmem:[#allocation2 + $0x28] sm:$0xf]
    %v2358 = vld [vmem:[#allocation2 + $0x40] sm:$0xff]
    %v2359 = vld [vmem:[#allocation2 + $0x48] sm:$0xff]
    %v2364 = vrot.slane %v2354, 4
    %v2365 = vrot.slane %v1560, 4
    %v2366 = vsel %vm1574, %v2364, %v2365
    %v2367 = vrot.slane %v2355, 4
    %v2368 = vrot.slane %v1561, 4
    %v2369 = vsel %vm1574, %v2367, %v2368
    %v2370 = vrot.slane %v2356, 4
    %v2371 = vsel %vm1574, %v2365, %v2370
    %v2372 = vrot.slane %v2357, 4
    %v2373 = vsel %vm1574, %v2368, %v2372
    %s2378 = scalar_lea.vmem [#allocation13], 2048
    %v2379 = vld [vmem:[%s2378] sm:$0xff]
    %v2380 = vld [vmem:[%s2378 + $0x8] sm:$0xff]
    %v2381 = vld [vmem:[%s2378 + $0x10] sm:$0xff]
    %v2382 = vld [vmem:[%s2378 + $0x18] sm:$0xff]
    %v2383 = vld [vmem:[%s2378 + $0x20] sm:$0xff]
    %v2384 = vld [vmem:[%s2378 + $0x28] sm:$0xff]
    %v2385 = vld [vmem:[%s2378 + $0x30] sm:$0xff]
    %v2386 = vld [vmem:[%s2378 + $0x38] sm:$0xff]
    %v2387 = vld [vmem:[%s2378 + $0x40] sm:$0xff]
    %v2388 = vld [vmem:[%s2378 + $0x48] sm:$0xff]
    %v2389 = vld [vmem:[%s2378 + $0x50] sm:$0xff]
    %v2390 = vld [vmem:[%s2378 + $0x58] sm:$0xff]
    %v2391 = vld [vmem:[%s2378 + $0x60] sm:$0xff]
    %v2392 = vld [vmem:[%s2378 + $0x68] sm:$0xff]
    %v2393 = vld [vmem:[%s2378 + $0x70] sm:$0xff]
    %v2394 = vld [vmem:[%s2378 + $0x78] sm:$0xff]
    %v2395 = vld [vmem:[%s2378 + $0x80] sm:$0xff]
    %v2396 = vld [vmem:[%s2378 + $0x88] sm:$0xff]
    %v2397 = vld [vmem:[%s2378 + $0x90] sm:$0xff]
    %v2398 = vld [vmem:[%s2378 + $0x98] sm:$0xff]
    %v2399 = vld [vmem:[%s2378 + $0xa0] sm:$0xff]
    %v2400 = vld [vmem:[%s2378 + $0xa8] sm:$0xff]
    %v2401 = vld [vmem:[%s2378 + $0xb0] sm:$0xff]
    %v2402 = vld [vmem:[%s2378 + $0xb8] sm:$0xff]
    %v2403 = vld [vmem:[%s2378 + $0xc0] sm:$0xff]
    %v2404 = vld [vmem:[%s2378 + $0xc8] sm:$0xff]
    %v2405 = vld [vmem:[%s2378 + $0xd0] sm:$0xff]
    %v2406 = vld [vmem:[%s2378 + $0xd8] sm:$0xff]
    %v2407 = vld [vmem:[%s2378 + $0xe0] sm:$0xff]
    %v2408 = vld [vmem:[%s2378 + $0xe8] sm:$0xff]
    %v2409 = vld [vmem:[%s2378 + $0xf0] sm:$0xff]
    %v2410 = vld [vmem:[%s2378 + $0xf8] sm:$0xff]
    %v2411 = vld [vmem:[%s2378 + $0x100] sm:$0xff]
    %v2412 = vld [vmem:[%s2378 + $0x108] sm:$0xff]
    %v2413 = vld [vmem:[%s2378 + $0x110] sm:$0xff]
    %v2414 = vld [vmem:[%s2378 + $0x118] sm:$0xff]
    %v2415 = vld [vmem:[%s2378 + $0x120] sm:$0xff]
    %v2416 = vld [vmem:[%s2378 + $0x128] sm:$0xff]
    %v2417 = vld [vmem:[%s2378 + $0x130] sm:$0xff]
    %v2418 = vld [vmem:[%s2378 + $0x138] sm:$0xff]
    %v2419 = vld [vmem:[%s2378 + $0x140] sm:$0xff]
    %v2420 = vld [vmem:[%s2378 + $0x148] sm:$0xff]
    %v2421 = vld [vmem:[%s2378 + $0x150] sm:$0xff]
    %v2422 = vld [vmem:[%s2378 + $0x158] sm:$0xff]
    %v2423 = vld [vmem:[%s2378 + $0x160] sm:$0xff]
    %v2424 = vld [vmem:[%s2378 + $0x168] sm:$0xff]
    %v2425 = vld [vmem:[%s2378 + $0x170] sm:$0xff]
    %v2426 = vld [vmem:[%s2378 + $0x178] sm:$0xff]
    %v2427 = vld [vmem:[%s2378 + $0x180] sm:$0xff]
    %v2428 = vld [vmem:[%s2378 + $0x188] sm:$0xff]
    %v2429 = vld [vmem:[%s2378 + $0x190] sm:$0xff]
    %v2430 = vld [vmem:[%s2378 + $0x198] sm:$0xff]
    %v2431 = vld [vmem:[%s2378 + $0x1a0] sm:$0xff]
    %v2432 = vld [vmem:[%s2378 + $0x1a8] sm:$0xff]
    %v2433 = vld [vmem:[%s2378 + $0x1b0] sm:$0xff]
    %v2434 = vld [vmem:[%s2378 + $0x1b8] sm:$0xff]
    %v2435 = vld [vmem:[%s2378 + $0x1c0] sm:$0xff]
    %v2436 = vld [vmem:[%s2378 + $0x1c8] sm:$0xff]
    %v2437 = vld [vmem:[%s2378 + $0x1d0] sm:$0xff]
    %v2438 = vld [vmem:[%s2378 + $0x1d8] sm:$0xff]
    %v2439 = vld [vmem:[%s2378 + $0x1e0] sm:$0xff]
    %v2440 = vld [vmem:[%s2378 + $0x1e8] sm:$0xff]
    %v2441 = vld [vmem:[%s2378 + $0x1f0] sm:$0xff]
    %v2442 = vld [vmem:[%s2378 + $0x1f8] sm:$0xff]
    %2443 = vmatprep.subr.mxu0 %v2380
    %2444 = vmatpush1.msra.mxu0 %v2379
    %2445 = vmatprep.subr.mxu0 %v2382
    %2446 = vmatpush1.msra.mxu0 %v2381
    %2447 = vmatprep.subr.mxu0 %v2384
    %2448 = vmatpush1.msra.mxu0 %v2383
    %2449 = vmatprep.subr.mxu0 %v2386
    %2450 = vmatpush1.msra.mxu0 %v2385
    %2451 = vmatprep.subr.mxu0 %v2388
    %2452 = vmatpush1.msra.mxu0 %v2387
    %2453 = vmatprep.subr.mxu0 %v2390
    %2454 = vmatpush1.msra.mxu0 %v2389
    %2455 = vmatprep.subr.mxu0 %v2392
    %2456 = vmatpush1.msra.mxu0 %v2391
    %2457 = vmatprep.subr.mxu0 %v2394
    %2458 = vmatpush1.msra.mxu0 %v2393
    %2459 = vmatprep.subr.mxu0 %v2396
    %2460 = vmatpush1.msra.mxu0 %v2395
    %2461 = vmatprep.subr.mxu0 %v2398
    %2462 = vmatpush1.msra.mxu0 %v2397
    %2463 = vmatprep.subr.mxu0 %v2400
    %2464 = vmatpush1.msra.mxu0 %v2399
    %2465 = vmatprep.subr.mxu0 %v2402
    %2466 = vmatpush1.msra.mxu0 %v2401
    %2467 = vmatprep.subr.mxu0 %v2404
    %2468 = vmatpush1.msra.mxu0 %v2403
    %2469 = vmatprep.subr.mxu0 %v2406
    %2470 = vmatpush1.msra.mxu0 %v2405
    %2471 = vmatprep.subr.mxu0 %v2408
    %2472 = vmatpush1.msra.mxu0 %v2407
    %2473 = vmatprep.subr.mxu0 %v2410
    %2474 = vmatpush1.msra.mxu0 %v2409
    %2475 = vmatprep.subr.mxu0 %v2412
    %2476 = vmatpush1.msra.mxu0 %v2411
    %2477 = vmatprep.subr.mxu0 %v2414
    %2478 = vmatpush1.msra.mxu0 %v2413
    %2479 = vmatprep.subr.mxu0 %v2416
    %2480 = vmatpush1.msra.mxu0 %v2415
    %2481 = vmatprep.subr.mxu0 %v2418
    %2482 = vmatpush1.msra.mxu0 %v2417
    %2483 = vmatprep.subr.mxu0 %v2420
    %2484 = vmatpush1.msra.mxu0 %v2419
    %2485 = vmatprep.subr.mxu0 %v2422
    %2486 = vmatpush1.msra.mxu0 %v2421
    %2487 = vmatprep.subr.mxu0 %v2424
    %2488 = vmatpush1.msra.mxu0 %v2423
    %2489 = vmatprep.subr.mxu0 %v2426
    %2490 = vmatpush1.msra.mxu0 %v2425
    %2491 = vmatprep.subr.mxu0 %v2428
    %2492 = vmatpush1.msra.mxu0 %v2427
    %2493 = vmatprep.subr.mxu0 %v2430
    %2494 = vmatpush1.msra.mxu0 %v2429
    %2495 = vmatprep.subr.mxu0 %v2432
    %2496 = vmatpush1.msra.mxu0 %v2431
    %2497 = vmatprep.subr.mxu0 %v2434
    %2498 = vmatpush1.msra.mxu0 %v2433
    %2499 = vmatprep.subr.mxu0 %v2436
    %2500 = vmatpush1.msra.mxu0 %v2435
    %2501 = vmatprep.subr.mxu0 %v2438
    %2502 = vmatpush1.msra.mxu0 %v2437
    %2503 = vmatprep.subr.mxu0 %v2440
    %2504 = vmatpush1.msra.mxu0 %v2439
    %2505 = vmatprep.subr.mxu0 %v2442
    %2506 = vmatpush1.msra.mxu0 %v2441
    %2507 = vmatprep.mubr.f32.mxu0 %v2369
    %2508 = vmatmul.mubr.f32.gmra.mrb[0].mxu0 %v2366
    %v2509 = vpop.f32.mrb[0].mxu0
    %v2510 = vadd.f32 0.0, %v2509
    %v2511 = vpop.f32.mrb[0].mxu0
    %v2512 = vadd.f32 0.0, %v2511
    %2513 = vmatprep.mubr.f32.mxu0 %v2373
    %2514 = vmatmul.mubr.f32.gmra.mrb[0].mxu0 %v2371
    %v2515 = vpop.f32.mrb[0].mxu0
    %v2516 = vadd.f32 0.0, %v2515
    %v2517 = vpop.f32.mrb[0].mxu0
    %v2518 = vadd.f32 0.0, %v2517
    %2519 = vmatprep.mubr.f32.mxu0 %v1565
    %2520 = vmatmul.mubr.f32.gmra.mrb[0].mxu0 %v1564
    %v2521 = vpop.f32.mrb[0].mxu0
    %v2522 = vadd.f32 0.0, %v2521
    %v2523 = vpop.f32.mrb[0].mxu0
    %v2524 = vadd.f32 0.0, %v2523
    %2525 = vmatprep.mubr.f32.mxu0 %v2359
    %2526 = vmatmul.mubr.f32.gmra.mrb[0].mxu0 %v2358
    %v2527 = vpop.f32.mrb[0].mxu0
    %v2528 = vadd.f32 0.0, %v2527
    %v2529 = vpop.f32.mrb[0].mxu0
    %v2530 = vadd.f32 0.0, %v2529
    %2531 = vdwg.mxu0
    %v2532 = vadd.f32 %v2346, %v2510
    %v2533 = vadd.f32 %v2347, %v2512
    %v2534 = vadd.f32 %v2348, %v2516
    %v2535 = vadd.f32 %v2349, %v2518
    %v2536 = vadd.f32 %v2350, %v2522
    %v2537 = vadd.f32 %v2351, %v2524
    %v2538 = vadd.f32 %v2352, %v2528
    %v2539 = vadd.f32 %v2353, %v2530
    %v2540 = vadd.f32 %v2532, %v2534
    %v2541 = vadd.f32 %v2540, %v2536
    %v2542 = vadd.f32 %v2541, %v2538
    %v2543 = vrot.slane %v2542, 4
    %v2544 = vadd.f32 %v2542, %v2543
    %v2545 = vrot.slane %v2544, 2
    %v2546 = vadd.f32 %v2544, %v2545
    %v2547 = vrot.slane %v2546, 1
    %v2548 = vadd.f32 %v2546, %v2547
    %v2549 = vadd.f32 %v2533, %v2535
    %v2550 = vadd.f32 %v2549, %v2537
    %v2551 = vadd.f32 %v2550, %v2539
    %v2552 = vrot.slane %v2551, 4
    %v2553 = vadd.f32 %v2551, %v2552
    %v2554 = vrot.slane %v2553, 2
    %v2555 = vadd.f32 %v2553, %v2554
    %v2556 = vrot.slane %v2555, 1
    %v2557 = vadd.f32 %v2555, %v2556
    %v2558 = vmul.f32 %v2532, %v2532
    %v2559 = vmul.f32 %v2533, %v2533
    %v2560 = vmul.f32 %v2534, %v2534
    %v2561 = vmul.f32 %v2535, %v2535
    %v2562 = vmul.f32 %v2536, %v2536
    %v2563 = vmul.f32 %v2537, %v2537
    %v2564 = vmul.f32 %v2538, %v2538
    %v2565 = vmul.f32 %v2539, %v2539
    %v2566 = vadd.f32 %v2558, %v2560
    %v2567 = vadd.f32 %v2566, %v2562
    %v2568 = vadd.f32 %v2567, %v2564
    %v2569 = vrot.slane %v2568, 4
    %v2570 = vadd.f32 %v2568, %v2569
    %v2571 = vrot.slane %v2570, 2
    %v2572 = vadd.f32 %v2570, %v2571
    %v2573 = vrot.slane %v2572, 1
    %v2574 = vadd.f32 %v2572, %v2573
    %v2575 = vadd.f32 %v2559, %v2561
    %v2576 = vadd.f32 %v2575, %v2563
    %v2577 = vadd.f32 %v2576, %v2565
    %v2578 = vrot.slane %v2577, 4
    %v2579 = vadd.f32 %v2577, %v2578
    %v2580 = vrot.slane %v2579, 2
    %v2581 = vadd.f32 %v2579, %v2580
    %v2582 = vrot.slane %v2581, 1
    %v2583 = vadd.f32 %v2581, %v2582
    %v2584 = vadd.f32 %v2548, %v2557
    %v2585 = vadd.f32 %v2574, %v2583
    %2587 = vrot.lane.b32.xlu0 %v2584, 64
    %v2588 = vpop.permute.xlu0 %2587
    %v2590 = vadd.f32 %v2584, %v2588
    %2592 = vrot.lane.b32.xlu0 %v2585, 64
    %v2593 = vpop.permute.xlu0 %2592
    %v2595 = vadd.f32 %v2585, %v2593
    %2597 = vrot.lane.b32.xlu0 %v2590, 96
    %v2598 = vpop.permute.xlu0 %2597
    %v2600 = vadd.f32 %v2590, %v2598
    %2602 = vrot.lane.b32.xlu0 %v2595, 96
    %v2603 = vpop.permute.xlu0 %2602
    %v2605 = vadd.f32 %v2595, %v2603
    %2607 = vrot.lane.b32.xlu0 %v2600, 112
    %v2608 = vpop.permute.xlu0 %2607
    %v2610 = vadd.f32 %v2600, %v2608
    %2612 = vrot.lane.b32.xlu0 %v2605, 112
    %v2613 = vpop.permute.xlu0 %2612
    %v2615 = vadd.f32 %v2605, %v2613
    %v2616 = vmul.f32 %v2610, 0.001953125
    %v2617 = vmul.f32 %v2615, 0.001953125
    %v2618 = vmul.f32 %v2616, %v2616
    %v2619 = vsub.f32 %v2617, %v2618
    %v2620 = vld [vmem:[#allocation14] sm:$0x1]
    %v2621 = vadd.f32 %v2619, 1e-05
    %v2622 = vrsqrt.pop %v2621
    %v2623 = vmul.f32 %v2620, %v2622
    %v2624 = vld [vmem:[#allocation16] sm:$0x1]
    %v2625 = vmul.f32 %v2616, %v2623
    %v2626 = vsub.f32 %v2624, %v2625
    %v2628 = vlaneseq
    %v2629 = vshrl.u32 %v2628, 7
    %v2630 = vsub.s32 0, %v2629
    %v2631 = vrot.slane %v2623, %v2630
    %2632 = vrot.lane.b32.xlu0 %v2631, 16
    %v2633 = vpop.permute.xlu0 %2632
    %2635 = vrot.lane.b32.xlu0 %v2631, 32
    %v2636 = vpop.permute.xlu0 %2635
    %2638 = vrot.lane.b32.xlu0 %v2631, 48
    %v2639 = vpop.permute.xlu0 %2638
    %2641 = vrot.lane.b32.xlu0 %v2631, 64
    %v2642 = vpop.permute.xlu0 %2641
    %2644 = vrot.lane.b32.xlu0 %v2631, 80
    %v2645 = vpop.permute.xlu0 %2644
    %2647 = vrot.lane.b32.xlu0 %v2631, 96
    %v2648 = vpop.permute.xlu0 %2647
    %2650 = vrot.lane.b32.xlu0 %v2631, 112
    %v2651 = vpop.permute.xlu0 %2650
    %v2653 = vsel %vm188, %v2623, %v2633
    %v2654 = vsel %vm565, %v2653, %v2636
    %v2655 = vsel %vm567, %v2654, %v2639
    %v2656 = vsel %vm569, %v2655, %v2642
    %v2657 = vsel %vm571, %v2656, %v2645
    %v2658 = vsel %vm573, %v2657, %v2648
    %v2659 = vsel %vm575, %v2658, %v2651
    %v2661 = vlaneseq
    %v2662 = vshrl.u32 %v2661, 7
    %v2663 = vsub.s32 0, %v2662
    %v2664 = vrot.slane %v2626, %v2663
    %2665 = vrot.lane.b32.xlu0 %v2664, 16
    %v2666 = vpop.permute.xlu0 %2665
    %2668 = vrot.lane.b32.xlu0 %v2664, 32
    %v2669 = vpop.permute.xlu0 %2668
    %2671 = vrot.lane.b32.xlu0 %v2664, 48
    %v2672 = vpop.permute.xlu0 %2671
    %2674 = vrot.lane.b32.xlu0 %v2664, 64
    %v2675 = vpop.permute.xlu0 %2674
    %2677 = vrot.lane.b32.xlu0 %v2664, 80
    %v2678 = vpop.permute.xlu0 %2677
    %2680 = vrot.lane.b32.xlu0 %v2664, 96
    %v2681 = vpop.permute.xlu0 %2680
    %2683 = vrot.lane.b32.xlu0 %v2664, 112
    %v2684 = vpop.permute.xlu0 %2683
    %v2686 = vsel %vm188, %v2626, %v2666
    %v2687 = vsel %vm565, %v2686, %v2669
    %v2688 = vsel %vm567, %v2687, %v2672
    %v2689 = vsel %vm569, %v2688, %v2675
    %v2690 = vsel %vm571, %v2689, %v2678
    %v2691 = vsel %vm573, %v2690, %v2681
    %v2692 = vsel %vm575, %v2691, %v2684
    %v2693 = vlaneseq
    %v2694 = vshrl.u32 %v2693, 7
    %v2695 = vsub.s32 0, %v2694
    %v2696 = vrot.slane %v2659, %v2695
    %v2697 = vmul.f32 %v2532, %v2696
    %v2698 = vmul.f32 %v2533, %v2696
    %v2699 = vmul.f32 %v2534, %v2696
    %v2700 = vmul.f32 %v2535, %v2696
    %v2701 = vmul.f32 %v2536, %v2696
    %v2702 = vmul.f32 %v2537, %v2696
    %v2703 = vmul.f32 %v2538, %v2696
    %v2704 = vmul.f32 %v2539, %v2696
    %v2705 = vlaneseq
    %v2706 = vshrl.u32 %v2705, 7
    %v2707 = vsub.s32 0, %v2706
    %v2708 = vrot.slane %v2692, %v2707
    %v2709 = vadd.f32 %v2697, %v2708
    %v2710 = vadd.f32 %v2698, %v2708
    %v2711 = vadd.f32 %v2699, %v2708
    %v2712 = vadd.f32 %v2700, %v2708
    %v2713 = vadd.f32 %v2701, %v2708
    %v2714 = vadd.f32 %v2702, %v2708
    %v2715 = vadd.f32 %v2703, %v2708
    %v2716 = vadd.f32 %v2704, %v2708
    %vm2717 = vcmp.gt.f32.partialorder %v2709, 0.0
    %vm2718 = vcmp.gt.f32.partialorder %v2710, 0.0
    %vm2719 = vcmp.gt.f32.partialorder %v2711, 0.0
    %vm2720 = vcmp.gt.f32.partialorder %v2712, 0.0
    %vm2721 = vcmp.gt.f32.partialorder %v2713, 0.0
    %vm2722 = vcmp.gt.f32.partialorder %v2714, 0.0
    %vm2723 = vcmp.gt.f32.partialorder %v2715, 0.0
    %vm2724 = vcmp.gt.f32.partialorder %v2716, 0.0
    %v2725 = vmul.f32 %v2709, 0.01
    %v2726 = vmul.f32 %v2710, 0.01
    %v2727 = vmul.f32 %v2711, 0.01
    %v2728 = vmul.f32 %v2712, 0.01
    %v2729 = vmul.f32 %v2713, 0.01
    %v2730 = vmul.f32 %v2714, 0.01
    %v2731 = vmul.f32 %v2715, 0.01
    %v2732 = vmul.f32 %v2716, 0.01
    %v2733 = vsel %vm2717, %v2709, %v2725
    %v2734 = vsel %vm2718, %v2710, %v2726
    %v2735 = vsel %vm2719, %v2711, %v2727
    %v2736 = vsel %vm2720, %v2712, %v2728
    %v2737 = vsel %vm2721, %v2713, %v2729
    %v2738 = vsel %vm2722, %v2714, %v2730
    %v2739 = vsel %vm2723, %v2715, %v2731
    %v2740 = vsel %vm2724, %v2716, %v2732
    %v2745 = vrot.slane %v2733, 6
    %v2746 = vrot.slane %v2734, 6
    %v2747 = vrot.slane %v2735, 6
    %v2748 = vsel %vm179, %v2745, %v2747
    %v2749 = vrot.slane %v2736, 6
    %v2750 = vsel %vm179, %v2746, %v2749
    %2757 = vst [vmem:[#allocation2] sm:$0xfc] %v2745
    %2758 = vst [vmem:[#allocation2 + $0x8] sm:$0xfc] %v2746
    %2759 = vst [vmem:[#allocation2 + $0x10] sm:$0xff] %v2748
    %2760 = vst [vmem:[#allocation2 + $0x18] sm:$0xff] %v2750
    %2761 = vst [vmem:[#allocation2 + $0x20] sm:$0x3] %v2747
    %2762 = vst [vmem:[#allocation2 + $0x28] sm:$0x3] %v2749
    %v2767 = vrot.slane %v2737, 2
    %v2768 = vrot.slane %v2738, 2
    %v2769 = vrot.slane %v2739, 2
    %v2770 = vsel %vm194, %v2767, %v2769
    %v2771 = vrot.slane %v2740, 2
    %v2772 = vsel %vm194, %v2768, %v2771
    %2779 = vst [vmem:[#allocation2 + $0x20] sm:$0xc0] %v2767
    %2780 = vst [vmem:[#allocation2 + $0x28] sm:$0xc0] %v2768
    %2781 = vst [vmem:[#allocation2 + $0x30] sm:$0xff] %v2770
    %2782 = vst [vmem:[#allocation2 + $0x38] sm:$0xff] %v2772
    %2783 = vst [vmem:[#allocation2 + $0x40] sm:$0x3f] %v2769
    %2784 = vst [vmem:[#allocation2 + $0x48] sm:$0x3f] %v2771
    %v2785 = vld [vmem:[#allocation2] sm:$0xfe]
    %v2786 = vld [vmem:[#allocation2 + $0x8] sm:$0xfe]
    %v2787 = vld [vmem:[#allocation2 + $0x10] sm:$0xff]
    %v2788 = vld [vmem:[#allocation2 + $0x18] sm:$0xff]
    %v2789 = vld [vmem:[#allocation2 + $0x20] sm:$0x1]
    %v2790 = vld [vmem:[#allocation2 + $0x28] sm:$0x1]
    %v2791 = vld [vmem:[#allocation2 + $0x20] sm:$0xe0]
    %v2792 = vld [vmem:[#allocation2 + $0x28] sm:$0xe0]
    %v2793 = vld [vmem:[#allocation2 + $0x30] sm:$0xff]
    %v2794 = vld [vmem:[#allocation2 + $0x38] sm:$0xff]
    %v2795 = vld [vmem:[#allocation2 + $0x40] sm:$0x1f]
    %v2796 = vld [vmem:[#allocation2 + $0x48] sm:$0x1f]
    %v2803 = vrot.slane %v2785, 1
    %v2804 = vrot.slane %v2787, 1
    %v2805 = vsel %vm720, %v2803, %v2804
    %v2806 = vrot.slane %v2786, 1
    %v2807 = vrot.slane %v2788, 1
    %v2808 = vsel %vm720, %v2806, %v2807
    %v2809 = vrot.slane %v2789, 1
    %v2810 = vsel %vm720, %v2804, %v2809
    %v2811 = vrot.slane %v2790, 1
    %v2812 = vsel %vm720, %v2807, %v2811
    %v2823 = vrot.slane %v2791, 5
    %v2824 = vrot.slane %v2793, 5
    %v2825 = vsel %vm741, %v2823, %v2824
    %v2826 = vrot.slane %v2792, 5
    %v2827 = vrot.slane %v2794, 5
    %v2828 = vsel %vm741, %v2826, %v2827
    %v2829 = vrot.slane %v2795, 5
    %v2830 = vsel %vm741, %v2824, %v2829
    %v2831 = vrot.slane %v2796, 5
    %v2832 = vsel %vm741, %v2827, %v2831
    %v2837 = vld [vmem:[%s10] sm:$0xff]
    %v2838 = vld [vmem:[%s10 + $0x8] sm:$0xff]
    %v2839 = vld [vmem:[%s10 + $0x10] sm:$0xff]
    %v2840 = vld [vmem:[%s10 + $0x18] sm:$0xff]
    %v2841 = vld [vmem:[%s10 + $0x20] sm:$0xff]
    %v2842 = vld [vmem:[%s10 + $0x28] sm:$0xff]
    %v2843 = vld [vmem:[%s10 + $0x30] sm:$0xff]
    %v2844 = vld [vmem:[%s10 + $0x38] sm:$0xff]
    %v2845 = vld [vmem:[%s10 + $0x40] sm:$0xff]
    %v2846 = vld [vmem:[%s10 + $0x48] sm:$0xff]
    %v2847 = vld [vmem:[%s10 + $0x50] sm:$0xff]
    %v2848 = vld [vmem:[%s10 + $0x58] sm:$0xff]
    %v2849 = vld [vmem:[%s10 + $0x60] sm:$0xff]
    %v2850 = vld [vmem:[%s10 + $0x68] sm:$0xff]
    %v2851 = vld [vmem:[%s10 + $0x70] sm:$0xff]
    %v2852 = vld [vmem:[%s10 + $0x78] sm:$0xff]
    %v2853 = vld [vmem:[%s10 + $0x80] sm:$0xff]
    %v2854 = vld [vmem:[%s10 + $0x88] sm:$0xff]
    %v2855 = vld [vmem:[%s10 + $0x90] sm:$0xff]
    %v2856 = vld [vmem:[%s10 + $0x98] sm:$0xff]
    %v2857 = vld [vmem:[%s10 + $0xa0] sm:$0xff]
    %v2858 = vld [vmem:[%s10 + $0xa8] sm:$0xff]
    %v2859 = vld [vmem:[%s10 + $0xb0] sm:$0xff]
    %v2860 = vld [vmem:[%s10 + $0xb8] sm:$0xff]
    %v2861 = vld [vmem:[%s10 + $0xc0] sm:$0xff]
    %v2862 = vld [vmem:[%s10 + $0xc8] sm:$0xff]
    %v2863 = vld [vmem:[%s10 + $0xd0] sm:$0xff]
    %v2864 = vld [vmem:[%s10 + $0xd8] sm:$0xff]
    %v2865 = vld [vmem:[%s10 + $0xe0] sm:$0xff]
    %v2866 = vld [vmem:[%s10 + $0xe8] sm:$0xff]
    %v2867 = vld [vmem:[%s10 + $0xf0] sm:$0xff]
    %v2868 = vld [vmem:[%s10 + $0xf8] sm:$0xff]
    %v2869 = vld [vmem:[#allocation2] sm:$0xfc]
    %v2870 = vld [vmem:[#allocation2 + $0x8] sm:$0xfc]
    %v2871 = vld [vmem:[#allocation2 + $0x20] sm:$0x3]
    %v2872 = vld [vmem:[#allocation2 + $0x28] sm:$0x3]
    %v2873 = vld [vmem:[#allocation2 + $0x20] sm:$0xc0]
    %v2874 = vld [vmem:[#allocation2 + $0x28] sm:$0xc0]
    %v2875 = vld [vmem:[#allocation2 + $0x40] sm:$0x3f]
    %v2876 = vld [vmem:[#allocation2 + $0x48] sm:$0x3f]
    %v2881 = vrot.slane %v2869, 2
    %v2882 = vrot.slane %v2787, 2
    %v2883 = vsel %vm194, %v2881, %v2882
    %v2884 = vrot.slane %v2870, 2
    %v2885 = vrot.slane %v2788, 2
    %v2886 = vsel %vm194, %v2884, %v2885
    %v2887 = vrot.slane %v2871, 2
    %v2888 = vsel %vm194, %v2882, %v2887
    %v2889 = vrot.slane %v2872, 2
    %v2890 = vsel %vm194, %v2885, %v2889
    %v2899 = vrot.slane %v2873, 6
    %v2900 = vrot.slane %v2793, 6
    %v2901 = vsel %vm179, %v2899, %v2900
    %v2902 = vrot.slane %v2874, 6
    %v2903 = vrot.slane %v2794, 6
    %v2904 = vsel %vm179, %v2902, %v2903
    %v2905 = vrot.slane %v2875, 6
    %v2906 = vsel %vm179, %v2900, %v2905
    %v2907 = vrot.slane %v2876, 6
    %v2908 = vsel %vm179, %v2903, %v2907
    %s2913 = scalar_lea.vmem %s10, 256
    %v2914 = vld [vmem:[%s2913] sm:$0xff]
    %v2915 = vld [vmem:[%s2913 + $0x8] sm:$0xff]
    %v2916 = vld [vmem:[%s2913 + $0x10] sm:$0xff]
    %v2917 = vld [vmem:[%s2913 + $0x18] sm:$0xff]
    %v2918 = vld [vmem:[%s2913 + $0x20] sm:$0xff]
    %v2919 = vld [vmem:[%s2913 + $0x28] sm:$0xff]
    %v2920 = vld [vmem:[%s2913 + $0x30] sm:$0xff]
    %v2921 = vld [vmem:[%s2913 + $0x38] sm:$0xff]
    %v2922 = vld [vmem:[%s2913 + $0x40] sm:$0xff]
    %v2923 = vld [vmem:[%s2913 + $0x48] sm:$0xff]
    %v2924 = vld [vmem:[%s2913 + $0x50] sm:$0xff]
    %v2925 = vld [vmem:[%s2913 + $0x58] sm:$0xff]
    %v2926 = vld [vmem:[%s2913 + $0x60] sm:$0xff]
    %v2927 = vld [vmem:[%s2913 + $0x68] sm:$0xff]
    %v2928 = vld [vmem:[%s2913 + $0x70] sm:$0xff]
    %v2929 = vld [vmem:[%s2913 + $0x78] sm:$0xff]
    %v2930 = vld [vmem:[%s2913 + $0x80] sm:$0xff]
    %v2931 = vld [vmem:[%s2913 + $0x88] sm:$0xff]
    %v2932 = vld [vmem:[%s2913 + $0x90] sm:$0xff]
    %v2933 = vld [vmem:[%s2913 + $0x98] sm:$0xff]
    %v2934 = vld [vmem:[%s2913 + $0xa0] sm:$0xff]
    %v2935 = vld [vmem:[%s2913 + $0xa8] sm:$0xff]
    %v2936 = vld [vmem:[%s2913 + $0xb0] sm:$0xff]
    %v2937 = vld [vmem:[%s2913 + $0xb8] sm:$0xff]
    %v2938 = vld [vmem:[%s2913 + $0xc0] sm:$0xff]
    %v2939 = vld [vmem:[%s2913 + $0xc8] sm:$0xff]
    %v2940 = vld [vmem:[%s2913 + $0xd0] sm:$0xff]
    %v2941 = vld [vmem:[%s2913 + $0xd8] sm:$0xff]
    %v2942 = vld [vmem:[%s2913 + $0xe0] sm:$0xff]
    %v2943 = vld [vmem:[%s2913 + $0xe8] sm:$0xff]
    %v2944 = vld [vmem:[%s2913 + $0xf0] sm:$0xff]
    %v2945 = vld [vmem:[%s2913 + $0xf8] sm:$0xff]
    %2946 = vmatprep.subr.mxu0 0.0
    %2947 = vmatpush1.msra.mxu0 %v2914
    %2948 = vmatprep.subr.mxu0 0.0
    %2949 = vmatpush1.msra.mxu0 %v2915
    %2950 = vmatprep.subr.mxu0 0.0
    %2951 = vmatpush1.msra.mxu0 %v2916
    %2952 = vmatprep.subr.mxu0 0.0
    %2953 = vmatpush1.msra.mxu0 %v2917
    %2954 = vmatprep.subr.mxu0 0.0
    %2955 = vmatpush1.msra.mxu0 %v2918
    %2956 = vmatprep.subr.mxu0 0.0
    %2957 = vmatpush1.msra.mxu0 %v2919
    %2958 = vmatprep.subr.mxu0 0.0
    %2959 = vmatpush1.msra.mxu0 %v2920
    %2960 = vmatprep.subr.mxu0 0.0
    %2961 = vmatpush1.msra.mxu0 %v2921
    %2962 = vmatprep.subr.mxu0 0.0
    %2963 = vmatpush1.msra.mxu0 %v2922
    %2964 = vmatprep.subr.mxu0 0.0
    %2965 = vmatpush1.msra.mxu0 %v2923
    %2966 = vmatprep.subr.mxu0 0.0
    %2967 = vmatpush1.msra.mxu0 %v2924
    %2968 = vmatprep.subr.mxu0 0.0
    %2969 = vmatpush1.msra.mxu0 %v2925
    %2970 = vmatprep.subr.mxu0 0.0
    %2971 = vmatpush1.msra.mxu0 %v2926
    %2972 = vmatprep.subr.mxu0 0.0
    %2973 = vmatpush1.msra.mxu0 %v2927
    %2974 = vmatprep.subr.mxu0 0.0
    %2975 = vmatpush1.msra.mxu0 %v2928
    %2976 = vmatprep.subr.mxu0 0.0
    %2977 = vmatpush1.msra.mxu0 %v2929
    %2978 = vmatprep.subr.mxu0 0.0
    %2979 = vmatpush1.msra.mxu0 %v2930
    %2980 = vmatprep.subr.mxu0 0.0
    %2981 = vmatpush1.msra.mxu0 %v2931
    %2982 = vmatprep.subr.mxu0 0.0
    %2983 = vmatpush1.msra.mxu0 %v2932
    %2984 = vmatprep.subr.mxu0 0.0
    %2985 = vmatpush1.msra.mxu0 %v2933
    %2986 = vmatprep.subr.mxu0 0.0
    %2987 = vmatpush1.msra.mxu0 %v2934
    %2988 = vmatprep.subr.mxu0 0.0
    %2989 = vmatpush1.msra.mxu0 %v2935
    %2990 = vmatprep.subr.mxu0 0.0
    %2991 = vmatpush1.msra.mxu0 %v2936
    %2992 = vmatprep.subr.mxu0 0.0
    %2993 = vmatpush1.msra.mxu0 %v2937
    %2994 = vmatprep.subr.mxu0 0.0
    %2995 = vmatpush1.msra.mxu0 %v2938
    %2996 = vmatprep.subr.mxu0 0.0
    %2997 = vmatpush1.msra.mxu0 %v2939
    %2998 = vmatprep.subr.mxu0 0.0
    %2999 = vmatpush1.msra.mxu0 %v2940
    %3000 = vmatprep.subr.mxu0 0.0
    %3001 = vmatpush1.msra.mxu0 %v2941
    %3002 = vmatprep.subr.mxu0 0.0
    %3003 = vmatpush1.msra.mxu0 %v2942
    %3004 = vmatprep.subr.mxu0 0.0
    %3005 = vmatpush1.msra.mxu0 %v2943
    %3006 = vmatprep.subr.mxu0 0.0
    %3007 = vmatpush1.msra.mxu0 %v2944
    %3008 = vmatprep.subr.mxu0 0.0
    %3009 = vmatpush1.msra.mxu0 %v2945
    %3010 = vmatprep.mubr.f32.mxu0 %v2886
    %3011 = vmatmul.mubr.f32.gmra.mrb[0].mxu0 %v2883
    %v3012 = vpop.f32.mrb[0].mxu0
    %v3013 = vadd.f32 0.0, %v3012
    %v3014 = vpop.f32.mrb[0].mxu0
    %3015 = vmatprep.mubr.f32.mxu0 %v2890
    %3016 = vmatmul.mubr.f32.gmra.mrb[0].mxu0 %v2888
    %v3017 = vpop.f32.mrb[0].mxu0
    %v3018 = vadd.f32 0.0, %v3017
    %v3019 = vpop.f32.mrb[0].mxu0
    %3020 = vmatprep.mubr.f32.mxu0 %v2904
    %3021 = vmatmul.mubr.f32.gmra.mrb[0].mxu0 %v2901
    %v3022 = vpop.f32.mrb[0].mxu0
    %v3023 = vadd.f32 0.0, %v3022
    %v3024 = vpop.f32.mrb[0].mxu0
    %3025 = vmatprep.mubr.f32.mxu0 %v2908
    %3026 = vmatmul.mubr.f32.gmra.mrb[0].mxu0 %v2906
    %v3027 = vpop.f32.mrb[0].mxu0
    %v3028 = vadd.f32 0.0, %v3027
    %v3029 = vpop.f32.mrb[0].mxu0
    %3030 = vdwg.mxu0
    %3031 = vmatprep.subr.mxu0 0.0
    %3032 = vmatpush1.msra.mxu0 %v2837
    %3033 = vmatprep.subr.mxu0 0.0
    %3034 = vmatpush1.msra.mxu0 %v2838
    %3035 = vmatprep.subr.mxu0 0.0
    %3036 = vmatpush1.msra.mxu0 %v2839
    %3037 = vmatprep.subr.mxu0 0.0
    %3038 = vmatpush1.msra.mxu0 %v2840
    %3039 = vmatprep.subr.mxu0 0.0
    %3040 = vmatpush1.msra.mxu0 %v2841
    %3041 = vmatprep.subr.mxu0 0.0
    %3042 = vmatpush1.msra.mxu0 %v2842
    %3043 = vmatprep.subr.mxu0 0.0
    %3044 = vmatpush1.msra.mxu0 %v2843
    %3045 = vmatprep.subr.mxu0 0.0
    %3046 = vmatpush1.msra.mxu0 %v2844
    %3047 = vmatprep.subr.mxu0 0.0
    %3048 = vmatpush1.msra.mxu0 %v2845
    %3049 = vmatprep.subr.mxu0 0.0
    %3050 = vmatpush1.msra.mxu0 %v2846
    %3051 = vmatprep.subr.mxu0 0.0
    %3052 = vmatpush1.msra.mxu0 %v2847
    %3053 = vmatprep.subr.mxu0 0.0
    %3054 = vmatpush1.msra.mxu0 %v2848
    %3055 = vmatprep.subr.mxu0 0.0
    %3056 = vmatpush1.msra.mxu0 %v2849
    %3057 = vmatprep.subr.mxu0 0.0
    %3058 = vmatpush1.msra.mxu0 %v2850
    %3059 = vmatprep.subr.mxu0 0.0
    %3060 = vmatpush1.msra.mxu0 %v2851
    %3061 = vmatprep.subr.mxu0 0.0
    %3062 = vmatpush1.msra.mxu0 %v2852
    %3063 = vmatprep.subr.mxu0 0.0
    %3064 = vmatpush1.msra.mxu0 %v2853
    %3065 = vmatprep.subr.mxu0 0.0
    %3066 = vmatpush1.msra.mxu0 %v2854
    %3067 = vmatprep.subr.mxu0 0.0
    %3068 = vmatpush1.msra.mxu0 %v2855
    %3069 = vmatprep.subr.mxu0 0.0
    %3070 = vmatpush1.msra.mxu0 %v2856
    %3071 = vmatprep.subr.mxu0 0.0
    %3072 = vmatpush1.msra.mxu0 %v2857
    %3073 = vmatprep.subr.mxu0 0.0
    %3074 = vmatpush1.msra.mxu0 %v2858
    %3075 = vmatprep.subr.mxu0 0.0
    %3076 = vmatpush1.msra.mxu0 %v2859
    %3077 = vmatprep.subr.mxu0 0.0
    %3078 = vmatpush1.msra.mxu0 %v2860
    %3079 = vmatprep.subr.mxu0 0.0
    %3080 = vmatpush1.msra.mxu0 %v2861
    %3081 = vmatprep.subr.mxu0 0.0
    %3082 = vmatpush1.msra.mxu0 %v2862
    %3083 = vmatprep.subr.mxu0 0.0
    %3084 = vmatpush1.msra.mxu0 %v2863
    %3085 = vmatprep.subr.mxu0 0.0
    %3086 = vmatpush1.msra.mxu0 %v2864
    %3087 = vmatprep.subr.mxu0 0.0
    %3088 = vmatpush1.msra.mxu0 %v2865
    %3089 = vmatprep.subr.mxu0 0.0
    %3090 = vmatpush1.msra.mxu0 %v2866
    %3091 = vmatprep.subr.mxu0 0.0
    %3092 = vmatpush1.msra.mxu0 %v2867
    %3093 = vmatprep.subr.mxu0 0.0
    %3094 = vmatpush1.msra.mxu0 %v2868
    %3095 = vmatprep.mubr.f32.mxu0 %v2808
    %3096 = vmatmul.mubr.f32.gmra.mrb[0].mxu0 %v2805
    %v3097 = vpop.f32.mrb[0].mxu0
    %v3098 = vadd.f32 %v3013, %v3097
    %v3099 = vpop.f32.mrb[0].mxu0
    %3100 = vmatprep.mubr.f32.mxu0 %v2812
    %3101 = vmatmul.mubr.f32.gmra.mrb[0].mxu0 %v2810
    %v3102 = vpop.f32.mrb[0].mxu0
    %v3103 = vadd.f32 %v3018, %v3102
    %v3104 = vpop.f32.mrb[0].mxu0
    %3105 = vmatprep.mubr.f32.mxu0 %v2828
    %3106 = vmatmul.mubr.f32.gmra.mrb[0].mxu0 %v2825
    %v3107 = vpop.f32.mrb[0].mxu0
    %v3108 = vadd.f32 %v3023, %v3107
    %v3109 = vpop.f32.mrb[0].mxu0
    %3110 = vmatprep.mubr.f32.mxu0 %v2832
    %3111 = vmatmul.mubr.f32.gmra.mrb[0].mxu0 %v2830
    %v3112 = vpop.f32.mrb[0].mxu0
    %v3113 = vadd.f32 %v3028, %v3112
    %v3114 = vpop.f32.mrb[0].mxu0
    %3115 = vdwg.mxu0
    %v3116 = vld [vmem:[#allocation2] sm:$0xf8]
    %v3117 = vld [vmem:[#allocation2 + $0x8] sm:$0xf8]
    %v3118 = vld [vmem:[#allocation2 + $0x20] sm:$0x7]
    %v3119 = vld [vmem:[#allocation2 + $0x28] sm:$0x7]
    %v3120 = vld [vmem:[#allocation2 + $0x20] sm:$0x80]
    %v3121 = vld [vmem:[#allocation2 + $0x28] sm:$0x80]
    %v3122 = vld [vmem:[#allocation2 + $0x40] sm:$0x7f]
    %v3123 = vld [vmem:[#allocation2 + $0x48] sm:$0x7f]
    %v3128 = vrot.slane %v3116, 3
    %v3129 = vrot.slane %v2787, 3
    %v3130 = vsel %vm238, %v3128, %v3129
    %v3131 = vrot.slane %v3117, 3
    %v3132 = vrot.slane %v2788, 3
    %v3133 = vsel %vm238, %v3131, %v3132
    %v3134 = vrot.slane %v3118, 3
    %v3135 = vsel %vm238, %v3129, %v3134
    %v3136 = vrot.slane %v3119, 3
    %v3137 = vsel %vm238, %v3132, %v3136
    %v3146 = vrot.slane %v3120, 7
    %v3147 = vrot.slane %v2793, 7
    %v3148 = vsel %vm246, %v3146, %v3147
    %v3149 = vrot.slane %v3121, 7
    %v3150 = vrot.slane %v2794, 7
    %v3151 = vsel %vm246, %v3149, %v3150
    %v3152 = vrot.slane %v3122, 7
    %v3153 = vsel %vm246, %v3147, %v3152
    %v3154 = vrot.slane %v3123, 7
    %v3155 = vsel %vm246, %v3150, %v3154
    %s3160 = scalar_lea.vmem %s10, 512
    %v3161 = vld [vmem:[%s3160] sm:$0xff]
    %v3162 = vld [vmem:[%s3160 + $0x8] sm:$0xff]
    %v3163 = vld [vmem:[%s3160 + $0x10] sm:$0xff]
    %v3164 = vld [vmem:[%s3160 + $0x18] sm:$0xff]
    %v3165 = vld [vmem:[%s3160 + $0x20] sm:$0xff]
    %v3166 = vld [vmem:[%s3160 + $0x28] sm:$0xff]
    %v3167 = vld [vmem:[%s3160 + $0x30] sm:$0xff]
    %v3168 = vld [vmem:[%s3160 + $0x38] sm:$0xff]
    %v3169 = vld [vmem:[%s3160 + $0x40] sm:$0xff]
    %v3170 = vld [vmem:[%s3160 + $0x48] sm:$0xff]
    %v3171 = vld [vmem:[%s3160 + $0x50] sm:$0xff]
    %v3172 = vld [vmem:[%s3160 + $0x58] sm:$0xff]
    %v3173 = vld [vmem:[%s3160 + $0x60] sm:$0xff]
    %v3174 = vld [vmem:[%s3160 + $0x68] sm:$0xff]
    %v3175 = vld [vmem:[%s3160 + $0x70] sm:$0xff]
    %v3176 = vld [vmem:[%s3160 + $0x78] sm:$0xff]
    %v3177 = vld [vmem:[%s3160 + $0x80] sm:$0xff]
    %v3178 = vld [vmem:[%s3160 + $0x88] sm:$0xff]
    %v3179 = vld [vmem:[%s3160 + $0x90] sm:$0xff]
    %v3180 = vld [vmem:[%s3160 + $0x98] sm:$0xff]
    %v3181 = vld [vmem:[%s3160 + $0xa0] sm:$0xff]
    %v3182 = vld [vmem:[%s3160 + $0xa8] sm:$0xff]
    %v3183 = vld [vmem:[%s3160 + $0xb0] sm:$0xff]
    %v3184 = vld [vmem:[%s3160 + $0xb8] sm:$0xff]
    %v3185 = vld [vmem:[%s3160 + $0xc0] sm:$0xff]
    %v3186 = vld [vmem:[%s3160 + $0xc8] sm:$0xff]
    %v3187 = vld [vmem:[%s3160 + $0xd0] sm:$0xff]
    %v3188 = vld [vmem:[%s3160 + $0xd8] sm:$0xff]
    %v3189 = vld [vmem:[%s3160 + $0xe0] sm:$0xff]
    %v3190 = vld [vmem:[%s3160 + $0xe8] sm:$0xff]
    %v3191 = vld [vmem:[%s3160 + $0xf0] sm:$0xff]
    %v3192 = vld [vmem:[%s3160 + $0xf8] sm:$0xff]
    %3193 = vmatprep.subr.mxu0 0.0
    %3194 = vmatpush1.msra.mxu0 %v3161
    %3195 = vmatprep.subr.mxu0 0.0
    %3196 = vmatpush1.msra.mxu0 %v3162
    %3197 = vmatprep.subr.mxu0 0.0
    %3198 = vmatpush1.msra.mxu0 %v3163
    %3199 = vmatprep.subr.mxu0 0.0
    %3200 = vmatpush1.msra.mxu0 %v3164
    %3201 = vmatprep.subr.mxu0 0.0
    %3202 = vmatpush1.msra.mxu0 %v3165
    %3203 = vmatprep.subr.mxu0 0.0
    %3204 = vmatpush1.msra.mxu0 %v3166
    %3205 = vmatprep.subr.mxu0 0.0
    %3206 = vmatpush1.msra.mxu0 %v3167
    %3207 = vmatprep.subr.mxu0 0.0
    %3208 = vmatpush1.msra.mxu0 %v3168
    %3209 = vmatprep.subr.mxu0 0.0
    %3210 = vmatpush1.msra.mxu0 %v3169
    %3211 = vmatprep.subr.mxu0 0.0
    %3212 = vmatpush1.msra.mxu0 %v3170
    %3213 = vmatprep.subr.mxu0 0.0
    %3214 = vmatpush1.msra.mxu0 %v3171
    %3215 = vmatprep.subr.mxu0 0.0
    %3216 = vmatpush1.msra.mxu0 %v3172
    %3217 = vmatprep.subr.mxu0 0.0
    %3218 = vmatpush1.msra.mxu0 %v3173
    %3219 = vmatprep.subr.mxu0 0.0
    %3220 = vmatpush1.msra.mxu0 %v3174
    %3221 = vmatprep.subr.mxu0 0.0
    %3222 = vmatpush1.msra.mxu0 %v3175
    %3223 = vmatprep.subr.mxu0 0.0
    %3224 = vmatpush1.msra.mxu0 %v3176
    %3225 = vmatprep.subr.mxu0 0.0
    %3226 = vmatpush1.msra.mxu0 %v3177
    %3227 = vmatprep.subr.mxu0 0.0
    %3228 = vmatpush1.msra.mxu0 %v3178
    %3229 = vmatprep.subr.mxu0 0.0
    %3230 = vmatpush1.msra.mxu0 %v3179
    %3231 = vmatprep.subr.mxu0 0.0
    %3232 = vmatpush1.msra.mxu0 %v3180
    %3233 = vmatprep.subr.mxu0 0.0
    %3234 = vmatpush1.msra.mxu0 %v3181
    %3235 = vmatprep.subr.mxu0 0.0
    %3236 = vmatpush1.msra.mxu0 %v3182
    %3237 = vmatprep.subr.mxu0 0.0
    %3238 = vmatpush1.msra.mxu0 %v3183
    %3239 = vmatprep.subr.mxu0 0.0
    %3240 = vmatpush1.msra.mxu0 %v3184
    %3241 = vmatprep.subr.mxu0 0.0
    %3242 = vmatpush1.msra.mxu0 %v3185
    %3243 = vmatprep.subr.mxu0 0.0
    %3244 = vmatpush1.msra.mxu0 %v3186
    %3245 = vmatprep.subr.mxu0 0.0
    %3246 = vmatpush1.msra.mxu0 %v3187
    %3247 = vmatprep.subr.mxu0 0.0
    %3248 = vmatpush1.msra.mxu0 %v3188
    %3249 = vmatprep.subr.mxu0 0.0
    %3250 = vmatpush1.msra.mxu0 %v3189
    %3251 = vmatprep.subr.mxu0 0.0
    %3252 = vmatpush1.msra.mxu0 %v3190
    %3253 = vmatprep.subr.mxu0 0.0
    %3254 = vmatpush1.msra.mxu0 %v3191
    %3255 = vmatprep.subr.mxu0 0.0
    %3256 = vmatpush1.msra.mxu0 %v3192
    %3257 = vmatprep.mubr.f32.mxu0 %v3133
    %3258 = vmatmul.mubr.f32.gmra.mrb[0].mxu0 %v3130
    %v3259 = vpop.f32.mrb[0].mxu0
    %v3260 = vadd.f32 0.0, %v3259
    %v3261 = vpop.f32.mrb[0].mxu0
    %3262 = vmatprep.mubr.f32.mxu0 %v3137
    %3263 = vmatmul.mubr.f32.gmra.mrb[0].mxu0 %v3135
    %v3264 = vpop.f32.mrb[0].mxu0
    %v3265 = vadd.f32 0.0, %v3264
    %v3266 = vpop.f32.mrb[0].mxu0
    %3267 = vmatprep.mubr.f32.mxu0 %v3151
    %3268 = vmatmul.mubr.f32.gmra.mrb[0].mxu0 %v3148
    %v3269 = vpop.f32.mrb[0].mxu0
    %v3270 = vadd.f32 0.0, %v3269
    %v3271 = vpop.f32.mrb[0].mxu0
    %3272 = vmatprep.mubr.f32.mxu0 %v3155
    %3273 = vmatmul.mubr.f32.gmra.mrb[0].mxu0 %v3153
    %v3274 = vpop.f32.mrb[0].mxu0
    %v3275 = vadd.f32 0.0, %v3274
    %v3276 = vpop.f32.mrb[0].mxu0
    %3277 = vdwg.mxu0
    %v3278 = vadd.f32 %v3098, %v3260
    %v3279 = vadd.f32 %v3103, %v3265
    %v3280 = vadd.f32 %v3108, %v3270
    %v3281 = vadd.f32 %v3113, %v3275
    %v3282 = vld [vmem:[#allocation17] sm:$0x1]
    %v3284 = vlaneseq
    %v3285 = vshrl.u32 %v3284, 7
    %v3286 = vsub.s32 0, %v3285
    %v3287 = vrot.slane %v3282, %v3286
    %v3289 = vadd.f32 %v3278, %v3287
    %v3290 = vadd.f32 %v3279, %v3287
    %v3291 = vadd.f32 %v3280, %v3287
    %v3292 = vadd.f32 %v3281, %v3287
    %3293 = vst.msk [vmem:[%s12] sm:$0xff] %vm188, %v3289
    %3294 = vst.msk [vmem:[%s12 + $0x8] sm:$0xff] %vm188, %v3290
    %3295 = vst.msk [vmem:[%s12 + $0x10] sm:$0xff] %vm188, %v3291
    %3296 = vst.msk [vmem:[%s12 + $0x18] sm:$0xff] %vm188, %v3292
    // Predicated region
    $region90: #{tpu_custom_call.1} parent=1 // pred_check
      _
    $region91: #{tpu_custom_call.1} parent=1 // pred_check_branch
      %3298 = sbr.rel (0) target = $region93
    $region92: #{tpu_custom_call.1} parent=1 // pred_region
      _
    $region93: #{tpu_custom_call.1} parent=1 // pred_fallthru
      _
    // Predicated region
    $region94: #{tpu_custom_call.1} parent=1 // pred_check
      _
    $region95: #{tpu_custom_call.1} parent=1 // pred_check_branch
      %3300 = sbr.rel (0) target = $region97
    $region96: #{tpu_custom_call.1} parent=1 // pred_region
      _
    $region97: #{tpu_custom_call.1} parent=1 // pred_fallthru
      _
    %3301 = vsyncpa [#allocation4], 1
    %3302 = vsyncpa [#allocation6], 1
    %3303 = vsyncpa [#allocation9], 1
    %3304 = vsyncpa [#allocation12], 1
    %3305 = vsyncpa [#allocation15], 1
    %3306 = vsyncpa [#allocation18], 1

</llo_original>
